<compile_context>
chip_gen: v6e
topology: v6e:2x2x1
jax: 0.10.0
libtpu: 0.0.40
codegen_flags: <defaults>
</compile_context>

<pallas_src>
import math

import jax
import jax.numpy as jnp
import numpy as np
from jax import lax
from jax.experimental import pallas as pl
from jax.experimental.pallas import tpu as pltpu

_MIB = 1024 * 1024
_ROW_UNROLL_LIMIT = 256  # max K * rows_per_tile fully unrolled in-kernel


def _ntuple(x, N):
    if isinstance(x, (tuple, list)):
        assert len(x) == N, f"expected length-{N} tuple, got {x}"
        return tuple(int(v) for v in x)
    return (int(x),) * N


def _cdiv(a, b):
    return -(-a // b)


def _round_up(a, b):
    return _cdiv(a, b) * b


def _vmem_block_elems(block_shape):
    """Elements a block occupies in VMEM after (8, 128) tiling of the minor dims."""
    bs = tuple(int(d) for d in block_shape)
    if len(bs) == 1:
        return _round_up(bs[0], 128)
    lead = 1
    for d in bs[:-2]:
        lead *= d
    return lead * _round_up(bs[-2], 8) * _round_up(bs[-1], 128)


def _vmem_budget():
    """(vmem_limit_bytes for Mosaic, byte budget for our tile accounting)."""
    cap = 64 * _MIB  # conservative default == v7x physical per-core VMEM
    try:
        cap = int(pltpu.get_tpu_info().vmem_capacity_bytes)
    except Exception:
        pass
    limit = min((cap * 3) // 4, 96 * _MIB)  # ~96MiB on v5e/v6e, ~48MiB on v7x
    budget = max(8 * _MIB, limit - 4 * _MIB)  # headroom for Mosaic internal scratch
    return limit, budget


def _choose_rows_per_tile(R, W_out, itemsize):
    """Output rows packed into one lane-dense L tile (L_tile = rows * W_out).

    Keeps L_tile a multiple of 128 lanes, or equal to the full L.
    """
    target_lanes = max(256, 8192 // max(1, itemsize))  # ~2048 lanes for f32
    target_rows = max(1, _cdiv(target_lanes, W_out))
    if W_out % 128 == 0:
        return min(R, target_rows)
    g = 128 // math.gcd(W_out, 128)  # min rows giving a 128-aligned lane count
    if g >= R:
        return R  # single full-L tile (block == full dim: always legal)
    m = max(1, min(R // g, _cdiv(target_rows, g)))
    return g * m


def _shrink_rows(TR, R, W_out):
    """Next-smaller legal row tile, or None if it cannot shrink further."""
    if TR <= 1:
        return None
    if W_out % 128 == 0:
        return max(1, TR // 2)
    g = 128 // math.gcd(W_out, 128)
    if TR % g != 0 or TR // g <= 1:
        return None
    return g * max(1, (TR // g) // 2)


def _choose_c_tile(C, in_sp_blk, K, L_tile, itemsize, budget, c_on_sublanes):
    """Channels per block, sized against the per-generation VMEM budget."""

    def block_bytes(ct):
        in_e = _vmem_block_elems((1, ct) + in_sp_blk)
        out_e = _vmem_block_elems((1, ct, K, L_tile))
        return 2 * (in_e + out_e) * itemsize  # double-buffered in + out

    if c_on_sublanes:  # N == 1, no phase dim: C_tile sits on the block's sublanes
        cands = [C] + [8 * m for m in range(C // 8, 0, -1)]
    else:
        cands = range(C, 0, -1)
    for ct in cands:
        if block_bytes(ct) <= budget:
            if not c_on_sublanes:
                ct = _cdiv(C, _cdiv(C, ct))  # balance channel blocks
            return ct
    return 0


def unfold_nd(x, kernel_size, dilation=1, padding=0, stride=1):
    """Pallas implementation of unfoldNd / torch.nn.Unfold (supports N=1,2,3)."""
    B, C = int(x.shape[0]), int(x.shape[1])
    spatial = tuple(int(s) for s in x.shape[2:])
    N = len(spatial)
    if N not in (1, 2, 3):
        raise ValueError(f"Only 1,2,3-dimensional unfold is supported. Got N={N}.")

    ks = _ntuple(kernel_size, N)
    dil = _ntuple(dilation, N)
    pad = _ntuple(padding, N)
    st = _ntuple(stride, N)

    K = int(math.prod(ks))
    padded = tuple(spatial[i] + 2 * pad[i] for i in range(N))
    out_sp = tuple(
        (padded[i] - dil[i] * (ks[i] - 1) - 1) // st[i] + 1 for i in range(N)
    )
    if any(o <= 0 for o in out_sp):
        raise ValueError(f"Non-positive output spatial size {out_sp}.")
    L = int(math.prod(out_sp))
    W_out = out_sp[-1]
    R = L // W_out  # flattened "output rows" (all leading out-spatial dims)
    OH_out = out_sp[-2] if N >= 2 else 1
    itemsize = jnp.dtype(x.dtype).itemsize

    # stride>1 on the minor spatial dim: de-interleave W in the wrapper so the
    # kernel only does contiguous lane reads (no lane-strided loads).
    st_w = st[-1]
    has_phase = st_w > 1
    if has_phase:
        W_di = _cdiv(padded[-1], st_w)
        right_extra = st_w * W_di - padded[-1]
        cfg = [(0, 0), (0, 0)] + [(pad[i], pad[i]) for i in range(N - 1)]
        cfg.append((pad[-1], pad[-1] + right_extra))
        xp = jnp.pad(x, cfg)
        xp = xp.reshape(xp.shape[:-1] + (W_di, st_w))
        xp = jnp.moveaxis(xp, -1, 2)  # (B, C, st_w, *padded[:-1], W_di)
        in_sp_blk = (st_w,) + padded[:-1] + (W_di,)
    else:
        if any(pad):
            # TODO(synk): fold user padding into the kernel with masked edge
            # loads (broadcasted_iota + where) instead of a separate HBM pass.
            xp = jnp.pad(x, [(0, 0), (0, 0)] + [(p, p) for p in pad])
        else:
            xp = x
        in_sp_blk = padded

    limit_bytes, budget = _vmem_budget()

    TR = _choose_rows_per_tile(R, W_out, itemsize)
    c_on_sublanes = (N == 1) and not has_phase
    while True:
        L_tile = TR * W_out
        C_tile = _choose_c_tile(C, in_sp_blk, K, L_tile, itemsize, budget,
                                c_on_sublanes)
        if C_tile:
            break
        TR_new = _shrink_rows(TR, R, W_out)
        if TR_new is None:
            # TODO(synk): spatial (halo) tiling of the input plane for inputs
            # whose single-channel block does not fit VMEM.
            raise ValueError(
                "unfold_nd: one channel's spatial block does not fit in VMEM.")
        TR = TR_new

    n_c = _cdiv(C, C_tile)
    n_outer = _cdiv(R, TR)
    ragged = (R % TR) != 0
    unroll_rows = (K * TR) <= _ROW_UNROLL_LIMIT
    n_sp = len(in_sp_blk)

    def kernel(x_ref, o_ref):
        # x_ref: (1, C_tile, *in_sp_blk)    o_ref: (1, C_tile, K, L_tile)
        row_base = 0 if n_outer == 1 else pl.program_id(2) * TR

        def emit_row(k, offs, r):
            rr = row_base + r
            if ragged:
                # Clamp source rows for the partial last L-tile; the extra
                # lanes are masked out by the partial-block writeback.
                rr = jnp.minimum(rr, R - 1)
            idx = [0, slice(None)]
            col0 = offs[-1] * dil[-1]
            if has_phase:
                idx.append(col0 % st_w)  # static phase index
                q = col0 // st_w
            else:
                q = col0
            if N == 3:
                od = rr // OH_out
                oh = rr - od * OH_out
                idx.append(od * st[0] + offs[0] * dil[0])
                idx.append(oh * st[1] + offs[1] * dil[1])
            elif N == 2:
                idx.append(rr * st[0] + offs[0] * dil[0])
            idx.append(pl.ds(q, W_out))
            vals = x_ref[tuple(idx)]  # (C_tile, W_out)
            start = r * W_out
            if (W_out % 128 == 0) and not isinstance(start, int):
                start = pl.multiple_of(start, 128)
            o_ref[0, :, k, pl.ds(start, W_out)] = vals

        # K folded out of the grid: static unroll over kernel offsets.
        for k in range(K):
            offs = []
            rem = k
            for i in range(N - 1, -1, -1):
                offs.append(rem % ks[i])
                rem //= ks[i]
            offs = offs[::-1]  # row-major -> matches c*K + k channel ordering
            if unroll_rows:
                for r in range(TR):
                    emit_row(k, offs, r)
            else:
                def body(r, carry, k=k, offs=tuple(offs)):
                    emit_row(k, offs, r)
                    return carry
                lax.fori_loop(0, TR, body, 0)

    grid = (B, n_c, n_outer)
    in_block = (1, C_tile) + in_sp_blk
    out_block = (1, C_tile, K, L_tile)

    in_bytes = B * C * math.prod(in_sp_blk) * itemsize
    out_bytes = B * C * K * L * itemsize

    out4 = pl.pallas_call(
        kernel,
        out_shape=jax.ShapeDtypeStruct((B, C, K, L), x.dtype),
        grid=grid,
        in_specs=[
            # Input plane/volume for C_tile channels stays resident across all
            # L-tiles (index_map ignores ob).
            pl.BlockSpec(in_block, lambda b, ci, ob: (b, ci) + (0,) * n_sp),
        ],
        out_specs=pl.BlockSpec(out_block, lambda b, ci, ob: (b, ci, 0, ob)),
        compiler_params=pltpu.CompilerParams(
            dimension_semantics=("parallel", "parallel", "parallel"),
            vmem_limit_bytes=limit_bytes,
        ),
        cost_estimate=pl.CostEstimate(
            flops=0,
            transcendentals=0,
            bytes_accessed=int(in_bytes + out_bytes),
        ),
    )(xp)

    # (B, C, K, L) -> (B, C*K, L): contiguous dim-merge, free.
    return out4.reshape(B, C * K, L)


class UnfoldNd:
    """JAX/Pallas counterpart of the PyTorch UnfoldNd module."""

    def __init__(self, kernel_size, dilation=1, padding=0, stride=1):
        self._kernel_size = kernel_size
        self._dilation = dilation
        self._padding = padding
        self._stride = stride

    def __call__(self, x):
        return unfold_nd(
            x,
            self._kernel_size,
            dilation=self._dilation,
            padding=self._padding,
            stride=self._stride,
        )


def _reference_unfold(x, kernel_size, dilation=1, padding=0, stride=1):
    """Independent numpy reference (direct im2col gather), N = 1, 2, 3."""
    xa = np.asarray(x)
    B, C = xa.shape[:2]
    sp = xa.shape[2:]
    N = len(sp)
    ks = _ntuple(kernel_size, N)
    dil = _ntuple(dilation, N)
    pad = _ntuple(padding, N)
    st = _ntuple(stride, N)
    xp = np.pad(xa, [(0, 0), (0, 0)] + [(p, p) for p in pad])
    out_sp = tuple(
        (sp[i] + 2 * pad[i] - dil[i] * (ks[i] - 1) - 1) // st[i] + 1
        for i in range(N)
    )
    K = int(np.prod(ks))
    L = int(np.prod(out_sp))
    out = np.empty((B, C, K, L), dtype=xa.dtype)
    for k in range(K):
        offs = np.unravel_index(k, ks)
        sl = tuple(
            slice(int(offs[i]) * dil[i],
                  int(offs[i]) * dil[i] + (out_sp[i] - 1) * st[i] + 1,
                  st[i])
            for i in range(N)
        )
        patch = xp[(slice(None), slice(None)) + sl]
        out[:, :, k, :] = patch.reshape(B, C, L)
    return out.reshape(B, C * K, L)


if __name__ == "__main__":
    root = jax.random.PRNGKey(0)
    cases = [
        # (kwargs, input shape)
        (dict(kernel_size=3, padding=1), (2, 4, 16, 16)),            # basic 2-D
        (dict(kernel_size=2), (2, 4, 16, 16)),                       # full-L tile
        (dict(kernel_size=3), (2, 4, 21, 130)),                      # ragged L-tile, aligned W_out
        (dict(kernel_size=3, dilation=2, padding=2, stride=2), (2, 4, 16, 16)),  # strided minor dim
        (dict(kernel_size=2, padding=1), (2, 3, 5, 6, 7)),           # 3-D, ragged rows across planes
        (dict(kernel_size=3, padding=1), (2, 4, 64)),                # 1-D
    ]
    for i, (kw, shape) in enumerate(cases):
        key = jax.random.fold_in(root, i)
        x = jax.random.normal(key, shape, dtype=jnp.float32)
        module = UnfoldNd(**kw)
        out = jax.block_until_ready(module(x))
        ref = _reference_unfold(np.asarray(x), **kw)
        assert out.shape == ref.shape, (kw, shape, out.shape, ref.shape)
        assert out.dtype == x.dtype
        np.testing.assert_allclose(np.asarray(out), ref, rtol=1e-6, atol=1e-6)
    print("KERNEL_OK")
</pallas_src>

<mosaic_0001>
module attributes {stable_mosaic.version = 11 : i64} {
  func.func @kernel(%arg0: i32, %arg1: i32, %arg2: i32, %arg3: memref<1x4x18x18xf32, #tpu.memory_space<vmem>>, %arg4: memref<1x4x9x256xf32, #tpu.memory_space<vmem>>) attributes {dimension_semantics = [#tpu.dimension_semantics<parallel>, #tpu.dimension_semantics<parallel>, #tpu.dimension_semantics<parallel>], iteration_bounds = array<i64: 2, 1, 1>, scalar_prefetch = 0 : i64, scratch_operands = 0 : i64, tpu.core_type = #tpu.core_type<tc>, window_params = [{transform_indices = @transform_0, window_bounds = array<i64: 1, 4, 18, 18>}, {transform_indices = @transform_1, window_bounds = array<i64: 1, 4, 9, 256>}]} {
    %c0 = arith.constant 0 : index
    %c0_0 = arith.constant 0 : index
    %c0_1 = arith.constant 0 : index
    %c0_2 = arith.constant 0 : index
    %0 = vector.load %arg3[%c0, %c0_0, %c0_1, %c0_2] : memref<1x4x18x18xf32, #tpu.memory_space<vmem>>, vector<1x4x1x16xf32>
    %1 = vector.shape_cast %0 : vector<1x4x1x16xf32> to vector<4x16xf32>
    %c0_3 = arith.constant 0 : index
    %c0_4 = arith.constant 0 : index
    %c0_5 = arith.constant 0 : index
    %c0_6 = arith.constant 0 : index
    %2 = vector.load %arg4[%c0_3, %c0_4, %c0_5, %c0_6] : memref<1x4x9x256xf32, #tpu.memory_space<vmem>>, vector<1x4x1x16xf32>
    %3 = vector.shape_cast %2 : vector<1x4x1x16xf32> to vector<4x16xf32>
    %4 = vector.shape_cast %1 : vector<4x16xf32> to vector<1x4x1x16xf32>
    tpu.vector_store %arg4[%c0_3, %c0_4, %c0_5, %c0_6], %4 {strides = array<i32>} : memref<1x4x9x256xf32, #tpu.memory_space<vmem>>, vector<1x4x1x16xf32>,
    %c0_7 = arith.constant 0 : index
    %c0_8 = arith.constant 0 : index
    %c1 = arith.constant 1 : index
    %c0_9 = arith.constant 0 : index
    %5 = vector.load %arg3[%c0_7, %c0_8, %c1, %c0_9] : memref<1x4x18x18xf32, #tpu.memory_space<vmem>>, vector<1x4x1x16xf32>
    %6 = vector.shape_cast %5 : vector<1x4x1x16xf32> to vector<4x16xf32>
    %c0_10 = arith.constant 0 : index
    %c0_11 = arith.constant 0 : index
    %c0_12 = arith.constant 0 : index
    %c16 = arith.constant 16 : index
    %7 = vector.load %arg4[%c0_10, %c0_11, %c0_12, %c16] : memref<1x4x9x256xf32, #tpu.memory_space<vmem>>, vector<1x4x1x16xf32>
    %8 = vector.shape_cast %7 : vector<1x4x1x16xf32> to vector<4x16xf32>
    %9 = vector.shape_cast %6 : vector<4x16xf32> to vector<1x4x1x16xf32>
    tpu.vector_store %arg4[%c0_10, %c0_11, %c0_12, %c16], %9 {strides = array<i32>} : memref<1x4x9x256xf32, #tpu.memory_space<vmem>>, vector<1x4x1x16xf32>,
    %c0_13 = arith.constant 0 : index
    %c0_14 = arith.constant 0 : index
    %c2 = arith.constant 2 : index
    %c0_15 = arith.constant 0 : index
    %10 = vector.load %arg3[%c0_13, %c0_14, %c2, %c0_15] : memref<1x4x18x18xf32, #tpu.memory_space<vmem>>, vector<1x4x1x16xf32>
    %11 = vector.shape_cast %10 : vector<1x4x1x16xf32> to vector<4x16xf32>
    %c0_16 = arith.constant 0 : index
    %c0_17 = arith.constant 0 : index
    %c0_18 = arith.constant 0 : index
    %c32 = arith.constant 32 : index
    %12 = vector.load %arg4[%c0_16, %c0_17, %c0_18, %c32] : memref<1x4x9x256xf32, #tpu.memory_space<vmem>>, vector<1x4x1x16xf32>
    %13 = vector.shape_cast %12 : vector<1x4x1x16xf32> to vector<4x16xf32>
    %14 = vector.shape_cast %11 : vector<4x16xf32> to vector<1x4x1x16xf32>
    tpu.vector_store %arg4[%c0_16, %c0_17, %c0_18, %c32], %14 {strides = array<i32>} : memref<1x4x9x256xf32, #tpu.memory_space<vmem>>, vector<1x4x1x16xf32>,
    %c0_19 = arith.constant 0 : index
    %c0_20 = arith.constant 0 : index
    %c3 = arith.constant 3 : index
    %c0_21 = arith.constant 0 : index
    %15 = vector.load %arg3[%c0_19, %c0_20, %c3, %c0_21] : memref<1x4x18x18xf32, #tpu.memory_space<vmem>>, vector<1x4x1x16xf32>
    %16 = vector.shape_cast %15 : vector<1x4x1x16xf32> to vector<4x16xf32>
    %c0_22 = arith.constant 0 : index
    %c0_23 = arith.constant 0 : index
    %c0_24 = arith.constant 0 : index
    %c48 = arith.constant 48 : index
    %17 = vector.load %arg4[%c0_22, %c0_23, %c0_24, %c48] : memref<1x4x9x256xf32, #tpu.memory_space<vmem>>, vector<1x4x1x16xf32>
    %18 = vector.shape_cast %17 : vector<1x4x1x16xf32> to vector<4x16xf32>
    %19 = vector.shape_cast %16 : vector<4x16xf32> to vector<1x4x1x16xf32>
    tpu.vector_store %arg4[%c0_22, %c0_23, %c0_24, %c48], %19 {strides = array<i32>} : memref<1x4x9x256xf32, #tpu.memory_space<vmem>>, vector<1x4x1x16xf32>,
    %c0_25 = arith.constant 0 : index
    %c0_26 = arith.constant 0 : index
    %c4 = arith.constant 4 : index
    %c0_27 = arith.constant 0 : index
    %20 = vector.load %arg3[%c0_25, %c0_26, %c4, %c0_27] : memref<1x4x18x18xf32, #tpu.memory_space<vmem>>, vector<1x4x1x16xf32>
    %21 = vector.shape_cast %20 : vector<1x4x1x16xf32> to vector<4x16xf32>
    %c0_28 = arith.constant 0 : index
    %c0_29 = arith.constant 0 : index
    %c0_30 = arith.constant 0 : index
    %c64 = arith.constant 64 : index
    %22 = vector.load %arg4[%c0_28, %c0_29, %c0_30, %c64] : memref<1x4x9x256xf32, #tpu.memory_space<vmem>>, vector<1x4x1x16xf32>
    %23 = vector.shape_cast %22 : vector<1x4x1x16xf32> to vector<4x16xf32>
    %24 = vector.shape_cast %21 : vector<4x16xf32> to vector<1x4x1x16xf32>
    tpu.vector_store %arg4[%c0_28, %c0_29, %c0_30, %c64], %24 {strides = array<i32>} : memref<1x4x9x256xf32, #tpu.memory_space<vmem>>, vector<1x4x1x16xf32>,
    %c0_31 = arith.constant 0 : index
    %c0_32 = arith.constant 0 : index
    %c5 = arith.constant 5 : index
    %c0_33 = arith.constant 0 : index
    %25 = vector.load %arg3[%c0_31, %c0_32, %c5, %c0_33] : memref<1x4x18x18xf32, #tpu.memory_space<vmem>>, vector<1x4x1x16xf32>
    %26 = vector.shape_cast %25 : vector<1x4x1x16xf32> to vector<4x16xf32>
    %c0_34 = arith.constant 0 : index
    %c0_35 = arith.constant 0 : index
    %c0_36 = arith.constant 0 : index
    %c80 = arith.constant 80 : index
    %27 = vector.load %arg4[%c0_34, %c0_35, %c0_36, %c80] : memref<1x4x9x256xf32, #tpu.memory_space<vmem>>, vector<1x4x1x16xf32>
    %28 = vector.shape_cast %27 : vector<1x4x1x16xf32> to vector<4x16xf32>
    %29 = vector.shape_cast %26 : vector<4x16xf32> to vector<1x4x1x16xf32>
    tpu.vector_store %arg4[%c0_34, %c0_35, %c0_36, %c80], %29 {strides = array<i32>} : memref<1x4x9x256xf32, #tpu.memory_space<vmem>>, vector<1x4x1x16xf32>,
    %c0_37 = arith.constant 0 : index
    %c0_38 = arith.constant 0 : index
    %c6 = arith.constant 6 : index
    %c0_39 = arith.constant 0 : index
    %30 = vector.load %arg3[%c0_37, %c0_38, %c6, %c0_39] : memref<1x4x18x18xf32, #tpu.memory_space<vmem>>, vector<1x4x1x16xf32>
    %31 = vector.shape_cast %30 : vector<1x4x1x16xf32> to vector<4x16xf32>
    %c0_40 = arith.constant 0 : index
    %c0_41 = arith.constant 0 : index
    %c0_42 = arith.constant 0 : index
    %c96 = arith.constant 96 : index
    %32 = vector.load %arg4[%c0_40, %c0_41, %c0_42, %c96] : memref<1x4x9x256xf32, #tpu.memory_space<vmem>>, vector<1x4x1x16xf32>
    %33 = vector.shape_cast %32 : vector<1x4x1x16xf32> to vector<4x16xf32>
    %34 = vector.shape_cast %31 : vector<4x16xf32> to vector<1x4x1x16xf32>
    tpu.vector_store %arg4[%c0_40, %c0_41, %c0_42, %c96], %34 {strides = array<i32>} : memref<1x4x9x256xf32, #tpu.memory_space<vmem>>, vector<1x4x1x16xf32>,
    %c0_43 = arith.constant 0 : index
    %c0_44 = arith.constant 0 : index
    %c7 = arith.constant 7 : index
    %c0_45 = arith.constant 0 : index
    %35 = vector.load %arg3[%c0_43, %c0_44, %c7, %c0_45] : memref<1x4x18x18xf32, #tpu.memory_space<vmem>>, vector<1x4x1x16xf32>
    %36 = vector.shape_cast %35 : vector<1x4x1x16xf32> to vector<4x16xf32>
    %c0_46 = arith.constant 0 : index
    %c0_47 = arith.constant 0 : index
    %c0_48 = arith.constant 0 : index
    %c112 = arith.constant 112 : index
    %37 = vector.load %arg4[%c0_46, %c0_47, %c0_48, %c112] : memref<1x4x9x256xf32, #tpu.memory_space<vmem>>, vector<1x4x1x16xf32>
    %38 = vector.shape_cast %37 : vector<1x4x1x16xf32> to vector<4x16xf32>
    %39 = vector.shape_cast %36 : vector<4x16xf32> to vector<1x4x1x16xf32>
    tpu.vector_store %arg4[%c0_46, %c0_47, %c0_48, %c112], %39 {strides = array<i32>} : memref<1x4x9x256xf32, #tpu.memory_space<vmem>>, vector<1x4x1x16xf32>,
    %c0_49 = arith.constant 0 : index
    %c0_50 = arith.constant 0 : index
    %c8 = arith.constant 8 : index
    %c0_51 = arith.constant 0 : index
    %40 = vector.load %arg3[%c0_49, %c0_50, %c8, %c0_51] : memref<1x4x18x18xf32, #tpu.memory_space<vmem>>, vector<1x4x1x16xf32>
    %41 = vector.shape_cast %40 : vector<1x4x1x16xf32> to vector<4x16xf32>
    %c0_52 = arith.constant 0 : index
    %c0_53 = arith.constant 0 : index
    %c0_54 = arith.constant 0 : index
    %c128 = arith.constant 128 : index
    %42 = vector.load %arg4[%c0_52, %c0_53, %c0_54, %c128] : memref<1x4x9x256xf32, #tpu.memory_space<vmem>>, vector<1x4x1x16xf32>
    %43 = vector.shape_cast %42 : vector<1x4x1x16xf32> to vector<4x16xf32>
    %44 = vector.shape_cast %41 : vector<4x16xf32> to vector<1x4x1x16xf32>
    tpu.vector_store %arg4[%c0_52, %c0_53, %c0_54, %c128], %44 {strides = array<i32>} : memref<1x4x9x256xf32, #tpu.memory_space<vmem>>, vector<1x4x1x16xf32>,
    %c0_55 = arith.constant 0 : index
    %c0_56 = arith.constant 0 : index
    %c9 = arith.constant 9 : index
    %c0_57 = arith.constant 0 : index
    %45 = vector.load %arg3[%c0_55, %c0_56, %c9, %c0_57] : memref<1x4x18x18xf32, #tpu.memory_space<vmem>>, vector<1x4x1x16xf32>
    %46 = vector.shape_cast %45 : vector<1x4x1x16xf32> to vector<4x16xf32>
    %c0_58 = arith.constant 0 : index
    %c0_59 = arith.constant 0 : index
    %c0_60 = arith.constant 0 : index
    %c144 = arith.constant 144 : index
    %47 = vector.load %arg4[%c0_58, %c0_59, %c0_60, %c144] : memref<1x4x9x256xf32, #tpu.memory_space<vmem>>, vector<1x4x1x16xf32>
    %48 = vector.shape_cast %47 : vector<1x4x1x16xf32> to vector<4x16xf32>
    %49 = vector.shape_cast %46 : vector<4x16xf32> to vector<1x4x1x16xf32>
    tpu.vector_store %arg4[%c0_58, %c0_59, %c0_60, %c144], %49 {strides = array<i32>} : memref<1x4x9x256xf32, #tpu.memory_space<vmem>>, vector<1x4x1x16xf32>,
    %c0_61 = arith.constant 0 : index
    %c0_62 = arith.constant 0 : index
    %c10 = arith.constant 10 : index
    %c0_63 = arith.constant 0 : index
    %50 = vector.load %arg3[%c0_61, %c0_62, %c10, %c0_63] : memref<1x4x18x18xf32, #tpu.memory_space<vmem>>, vector<1x4x1x16xf32>
    %51 = vector.shape_cast %50 : vector<1x4x1x16xf32> to vector<4x16xf32>
    %c0_64 = arith.constant 0 : index
    %c0_65 = arith.constant 0 : index
    %c0_66 = arith.constant 0 : index
    %c160 = arith.constant 160 : index
    %52 = vector.load %arg4[%c0_64, %c0_65, %c0_66, %c160] : memref<1x4x9x256xf32, #tpu.memory_space<vmem>>, vector<1x4x1x16xf32>
    %53 = vector.shape_cast %52 : vector<1x4x1x16xf32> to vector<4x16xf32>
    %54 = vector.shape_cast %51 : vector<4x16xf32> to vector<1x4x1x16xf32>
    tpu.vector_store %arg4[%c0_64, %c0_65, %c0_66, %c160], %54 {strides = array<i32>} : memref<1x4x9x256xf32, #tpu.memory_space<vmem>>, vector<1x4x1x16xf32>,
    %c0_67 = arith.constant 0 : index
    %c0_68 = arith.constant 0 : index
    %c11 = arith.constant 11 : index
    %c0_69 = arith.constant 0 : index
    %55 = vector.load %arg3[%c0_67, %c0_68, %c11, %c0_69] : memref<1x4x18x18xf32, #tpu.memory_space<vmem>>, vector<1x4x1x16xf32>
    %56 = vector.shape_cast %55 : vector<1x4x1x16xf32> to vector<4x16xf32>
    %c0_70 = arith.constant 0 : index
    %c0_71 = arith.constant 0 : index
    %c0_72 = arith.constant 0 : index
    %c176 = arith.constant 176 : index
    %57 = vector.load %arg4[%c0_70, %c0_71, %c0_72, %c176] : memref<1x4x9x256xf32, #tpu.memory_space<vmem>>, vector<1x4x1x16xf32>
    %58 = vector.shape_cast %57 : vector<1x4x1x16xf32> to vector<4x16xf32>
    %59 = vector.shape_cast %56 : vector<4x16xf32> to vector<1x4x1x16xf32>
    tpu.vector_store %arg4[%c0_70, %c0_71, %c0_72, %c176], %59 {strides = array<i32>} : memref<1x4x9x256xf32, #tpu.memory_space<vmem>>, vector<1x4x1x16xf32>,
    %c0_73 = arith.constant 0 : index
    %c0_74 = arith.constant 0 : index
    %c12 = arith.constant 12 : index
    %c0_75 = arith.constant 0 : index
    %60 = vector.load %arg3[%c0_73, %c0_74, %c12, %c0_75] : memref<1x4x18x18xf32, #tpu.memory_space<vmem>>, vector<1x4x1x16xf32>
    %61 = vector.shape_cast %60 : vector<1x4x1x16xf32> to vector<4x16xf32>
    %c0_76 = arith.constant 0 : index
    %c0_77 = arith.constant 0 : index
    %c0_78 = arith.constant 0 : index
    %c192 = arith.constant 192 : index
    %62 = vector.load %arg4[%c0_76, %c0_77, %c0_78, %c192] : memref<1x4x9x256xf32, #tpu.memory_space<vmem>>, vector<1x4x1x16xf32>
    %63 = vector.shape_cast %62 : vector<1x4x1x16xf32> to vector<4x16xf32>
    %64 = vector.shape_cast %61 : vector<4x16xf32> to vector<1x4x1x16xf32>
    tpu.vector_store %arg4[%c0_76, %c0_77, %c0_78, %c192], %64 {strides = array<i32>} : memref<1x4x9x256xf32, #tpu.memory_space<vmem>>, vector<1x4x1x16xf32>,
    %c0_79 = arith.constant 0 : index
    %c0_80 = arith.constant 0 : index
    %c13 = arith.constant 13 : index
    %c0_81 = arith.constant 0 : index
    %65 = vector.load %arg3[%c0_79, %c0_80, %c13, %c0_81] : memref<1x4x18x18xf32, #tpu.memory_space<vmem>>, vector<1x4x1x16xf32>
    %66 = vector.shape_cast %65 : vector<1x4x1x16xf32> to vector<4x16xf32>
    %c0_82 = arith.constant 0 : index
    %c0_83 = arith.constant 0 : index
    %c0_84 = arith.constant 0 : index
    %c208 = arith.constant 208 : index
    %67 = vector.load %arg4[%c0_82, %c0_83, %c0_84, %c208] : memref<1x4x9x256xf32, #tpu.memory_space<vmem>>, vector<1x4x1x16xf32>
    %68 = vector.shape_cast %67 : vector<1x4x1x16xf32> to vector<4x16xf32>
    %69 = vector.shape_cast %66 : vector<4x16xf32> to vector<1x4x1x16xf32>
    tpu.vector_store %arg4[%c0_82, %c0_83, %c0_84, %c208], %69 {strides = array<i32>} : memref<1x4x9x256xf32, #tpu.memory_space<vmem>>, vector<1x4x1x16xf32>,
    %c0_85 = arith.constant 0 : index
    %c0_86 = arith.constant 0 : index
    %c14 = arith.constant 14 : index
    %c0_87 = arith.constant 0 : index
    %70 = vector.load %arg3[%c0_85, %c0_86, %c14, %c0_87] : memref<1x4x18x18xf32, #tpu.memory_space<vmem>>, vector<1x4x1x16xf32>
    %71 = vector.shape_cast %70 : vector<1x4x1x16xf32> to vector<4x16xf32>
    %c0_88 = arith.constant 0 : index
    %c0_89 = arith.constant 0 : index
    %c0_90 = arith.constant 0 : index
    %c224 = arith.constant 224 : index
    %72 = vector.load %arg4[%c0_88, %c0_89, %c0_90, %c224] : memref<1x4x9x256xf32, #tpu.memory_space<vmem>>, vector<1x4x1x16xf32>
    %73 = vector.shape_cast %72 : vector<1x4x1x16xf32> to vector<4x16xf32>
    %74 = vector.shape_cast %71 : vector<4x16xf32> to vector<1x4x1x16xf32>
    tpu.vector_store %arg4[%c0_88, %c0_89, %c0_90, %c224], %74 {strides = array<i32>} : memref<1x4x9x256xf32, #tpu.memory_space<vmem>>, vector<1x4x1x16xf32>,
    %c0_91 = arith.constant 0 : index
    %c0_92 = arith.constant 0 : index
    %c15 = arith.constant 15 : index
    %c0_93 = arith.constant 0 : index
    %75 = vector.load %arg3[%c0_91, %c0_92, %c15, %c0_93] : memref<1x4x18x18xf32, #tpu.memory_space<vmem>>, vector<1x4x1x16xf32>
    %76 = vector.shape_cast %75 : vector<1x4x1x16xf32> to vector<4x16xf32>
    %c0_94 = arith.constant 0 : index
    %c0_95 = arith.constant 0 : index
    %c0_96 = arith.constant 0 : index
    %c240 = arith.constant 240 : index
    %77 = vector.load %arg4[%c0_94, %c0_95, %c0_96, %c240] : memref<1x4x9x256xf32, #tpu.memory_space<vmem>>, vector<1x4x1x16xf32>
    %78 = vector.shape_cast %77 : vector<1x4x1x16xf32> to vector<4x16xf32>
    %79 = vector.shape_cast %76 : vector<4x16xf32> to vector<1x4x1x16xf32>
    tpu.vector_store %arg4[%c0_94, %c0_95, %c0_96, %c240], %79 {strides = array<i32>} : memref<1x4x9x256xf32, #tpu.memory_space<vmem>>, vector<1x4x1x16xf32>,
    %c0_97 = arith.constant 0 : index
    %c0_98 = arith.constant 0 : index
    %c0_99 = arith.constant 0 : index
    %c1_100 = arith.constant 1 : index
    %80 = vector.load %arg3[%c0_97, %c0_98, %c0_99, %c1_100] : memref<1x4x18x18xf32, #tpu.memory_space<vmem>>, vector<1x4x1x16xf32>
    %81 = vector.shape_cast %80 : vector<1x4x1x16xf32> to vector<4x16xf32>
    %c0_101 = arith.constant 0 : index
    %c0_102 = arith.constant 0 : index
    %c1_103 = arith.constant 1 : index
    %c0_104 = arith.constant 0 : index
    %82 = vector.load %arg4[%c0_101, %c0_102, %c1_103, %c0_104] : memref<1x4x9x256xf32, #tpu.memory_space<vmem>>, vector<1x4x1x16xf32>
    %83 = vector.shape_cast %82 : vector<1x4x1x16xf32> to vector<4x16xf32>
    %84 = vector.shape_cast %81 : vector<4x16xf32> to vector<1x4x1x16xf32>
    tpu.vector_store %arg4[%c0_101, %c0_102, %c1_103, %c0_104], %84 {strides = array<i32>} : memref<1x4x9x256xf32, #tpu.memory_space<vmem>>, vector<1x4x1x16xf32>,
    %c0_105 = arith.constant 0 : index
    %c0_106 = arith.constant 0 : index
    %c1_107 = arith.constant 1 : index
    %c1_108 = arith.constant 1 : index
    %85 = vector.load %arg3[%c0_105, %c0_106, %c1_107, %c1_108] : memref<1x4x18x18xf32, #tpu.memory_space<vmem>>, vector<1x4x1x16xf32>
    %86 = vector.shape_cast %85 : vector<1x4x1x16xf32> to vector<4x16xf32>
    %c0_109 = arith.constant 0 : index
    %c0_110 = arith.constant 0 : index
    %c1_111 = arith.constant 1 : index
    %c16_112 = arith.constant 16 : index
    %87 = vector.load %arg4[%c0_109, %c0_110, %c1_111, %c16_112] : memref<1x4x9x256xf32, #tpu.memory_space<vmem>>, vector<1x4x1x16xf32>
    %88 = vector.shape_cast %87 : vector<1x4x1x16xf32> to vector<4x16xf32>
    %89 = vector.shape_cast %86 : vector<4x16xf32> to vector<1x4x1x16xf32>
    tpu.vector_store %arg4[%c0_109, %c0_110, %c1_111, %c16_112], %89 {strides = array<i32>} : memref<1x4x9x256xf32, #tpu.memory_space<vmem>>, vector<1x4x1x16xf32>,
    %c0_113 = arith.constant 0 : index
    %c0_114 = arith.constant 0 : index
    %c2_115 = arith.constant 2 : index
    %c1_116 = arith.constant 1 : index
    %90 = vector.load %arg3[%c0_113, %c0_114, %c2_115, %c1_116] : memref<1x4x18x18xf32, #tpu.memory_space<vmem>>, vector<1x4x1x16xf32>
    %91 = vector.shape_cast %90 : vector<1x4x1x16xf32> to vector<4x16xf32>
    %c0_117 = arith.constant 0 : index
    %c0_118 = arith.constant 0 : index
    %c1_119 = arith.constant 1 : index
    %c32_120 = arith.constant 32 : index
    %92 = vector.load %arg4[%c0_117, %c0_118, %c1_119, %c32_120] : memref<1x4x9x256xf32, #tpu.memory_space<vmem>>, vector<1x4x1x16xf32>
    %93 = vector.shape_cast %92 : vector<1x4x1x16xf32> to vector<4x16xf32>
    %94 = vector.shape_cast %91 : vector<4x16xf32> to vector<1x4x1x16xf32>
    tpu.vector_store %arg4[%c0_117, %c0_118, %c1_119, %c32_120], %94 {strides = array<i32>} : memref<1x4x9x256xf32, #tpu.memory_space<vmem>>, vector<1x4x1x16xf32>,
    %c0_121 = arith.constant 0 : index
    %c0_122 = arith.constant 0 : index
    %c3_123 = arith.constant 3 : index
    %c1_124 = arith.constant 1 : index
    %95 = vector.load %arg3[%c0_121, %c0_122, %c3_123, %c1_124] : memref<1x4x18x18xf32, #tpu.memory_space<vmem>>, vector<1x4x1x16xf32>
    %96 = vector.shape_cast %95 : vector<1x4x1x16xf32> to vector<4x16xf32>
    %c0_125 = arith.constant 0 : index
    %c0_126 = arith.constant 0 : index
    %c1_127 = arith.constant 1 : index
    %c48_128 = arith.constant 48 : index
    %97 = vector.load %arg4[%c0_125, %c0_126, %c1_127, %c48_128] : memref<1x4x9x256xf32, #tpu.memory_space<vmem>>, vector<1x4x1x16xf32>
    %98 = vector.shape_cast %97 : vector<1x4x1x16xf32> to vector<4x16xf32>
    %99 = vector.shape_cast %96 : vector<4x16xf32> to vector<1x4x1x16xf32>
    tpu.vector_store %arg4[%c0_125, %c0_126, %c1_127, %c48_128], %99 {strides = array<i32>} : memref<1x4x9x256xf32, #tpu.memory_space<vmem>>, vector<1x4x1x16xf32>,
    %c0_129 = arith.constant 0 : index
    %c0_130 = arith.constant 0 : index
    %c4_131 = arith.constant 4 : index
    %c1_132 = arith.constant 1 : index
    %100 = vector.load %arg3[%c0_129, %c0_130, %c4_131, %c1_132] : memref<1x4x18x18xf32, #tpu.memory_space<vmem>>, vector<1x4x1x16xf32>
    %101 = vector.shape_cast %100 : vector<1x4x1x16xf32> to vector<4x16xf32>
    %c0_133 = arith.constant 0 : index
    %c0_134 = arith.constant 0 : index
    %c1_135 = arith.constant 1 : index
    %c64_136 = arith.constant 64 : index
    %102 = vector.load %arg4[%c0_133, %c0_134, %c1_135, %c64_136] : memref<1x4x9x256xf32, #tpu.memory_space<vmem>>, vector<1x4x1x16xf32>
    %103 = vector.shape_cast %102 : vector<1x4x1x16xf32> to vector<4x16xf32>
    %104 = vector.shape_cast %101 : vector<4x16xf32> to vector<1x4x1x16xf32>
    tpu.vector_store %arg4[%c0_133, %c0_134, %c1_135, %c64_136], %104 {strides = array<i32>} : memref<1x4x9x256xf32, #tpu.memory_space<vmem>>, vector<1x4x1x16xf32>,
    %c0_137 = arith.constant 0 : index
    %c0_138 = arith.constant 0 : index
    %c5_139 = arith.constant 5 : index
    %c1_140 = arith.constant 1 : index
    %105 = vector.load %arg3[%c0_137, %c0_138, %c5_139, %c1_140] : memref<1x4x18x18xf32, #tpu.memory_space<vmem>>, vector<1x4x1x16xf32>
    %106 = vector.shape_cast %105 : vector<1x4x1x16xf32> to vector<4x16xf32>
    %c0_141 = arith.constant 0 : index
    %c0_142 = arith.constant 0 : index
    %c1_143 = arith.constant 1 : index
    %c80_144 = arith.constant 80 : index
    %107 = vector.load %arg4[%c0_141, %c0_142, %c1_143, %c80_144] : memref<1x4x9x256xf32, #tpu.memory_space<vmem>>, vector<1x4x1x16xf32>
    %108 = vector.shape_cast %107 : vector<1x4x1x16xf32> to vector<4x16xf32>
    %109 = vector.shape_cast %106 : vector<4x16xf32> to vector<1x4x1x16xf32>
    tpu.vector_store %arg4[%c0_141, %c0_142, %c1_143, %c80_144], %109 {strides = array<i32>} : memref<1x4x9x256xf32, #tpu.memory_space<vmem>>, vector<1x4x1x16xf32>,
    %c0_145 = arith.constant 0 : index
    %c0_146 = arith.constant 0 : index
    %c6_147 = arith.constant 6 : index
    %c1_148 = arith.constant 1 : index
    %110 = vector.load %arg3[%c0_145, %c0_146, %c6_147, %c1_148] : memref<1x4x18x18xf32, #tpu.memory_space<vmem>>, vector<1x4x1x16xf32>
    %111 = vector.shape_cast %110 : vector<1x4x1x16xf32> to vector<4x16xf32>
    %c0_149 = arith.constant 0 : index
    %c0_150 = arith.constant 0 : index
    %c1_151 = arith.constant 1 : index
    %c96_152 = arith.constant 96 : index
    %112 = vector.load %arg4[%c0_149, %c0_150, %c1_151, %c96_152] : memref<1x4x9x256xf32, #tpu.memory_space<vmem>>, vector<1x4x1x16xf32>
    %113 = vector.shape_cast %112 : vector<1x4x1x16xf32> to vector<4x16xf32>
    %114 = vector.shape_cast %111 : vector<4x16xf32> to vector<1x4x1x16xf32>
    tpu.vector_store %arg4[%c0_149, %c0_150, %c1_151, %c96_152], %114 {strides = array<i32>} : memref<1x4x9x256xf32, #tpu.memory_space<vmem>>, vector<1x4x1x16xf32>,
    %c0_153 = arith.constant 0 : index
    %c0_154 = arith.constant 0 : index
    %c7_155 = arith.constant 7 : index
    %c1_156 = arith.constant 1 : index
    %115 = vector.load %arg3[%c0_153, %c0_154, %c7_155, %c1_156] : memref<1x4x18x18xf32, #tpu.memory_space<vmem>>, vector<1x4x1x16xf32>
    %116 = vector.shape_cast %115 : vector<1x4x1x16xf32> to vector<4x16xf32>
    %c0_157 = arith.constant 0 : index
    %c0_158 = arith.constant 0 : index
    %c1_159 = arith.constant 1 : index
    %c112_160 = arith.constant 112 : index
    %117 = vector.load %arg4[%c0_157, %c0_158, %c1_159, %c112_160] : memref<1x4x9x256xf32, #tpu.memory_space<vmem>>, vector<1x4x1x16xf32>
    %118 = vector.shape_cast %117 : vector<1x4x1x16xf32> to vector<4x16xf32>
    %119 = vector.shape_cast %116 : vector<4x16xf32> to vector<1x4x1x16xf32>
    tpu.vector_store %arg4[%c0_157, %c0_158, %c1_159, %c112_160], %119 {strides = array<i32>} : memref<1x4x9x256xf32, #tpu.memory_space<vmem>>, vector<1x4x1x16xf32>,
    %c0_161 = arith.constant 0 : index
    %c0_162 = arith.constant 0 : index
    %c8_163 = arith.constant 8 : index
    %c1_164 = arith.constant 1 : index
    %120 = vector.load %arg3[%c0_161, %c0_162, %c8_163, %c1_164] : memref<1x4x18x18xf32, #tpu.memory_space<vmem>>, vector<1x4x1x16xf32>
    %121 = vector.shape_cast %120 : vector<1x4x1x16xf32> to vector<4x16xf32>
    %c0_165 = arith.constant 0 : index
    %c0_166 = arith.constant 0 : index
    %c1_167 = arith.constant 1 : index
    %c128_168 = arith.constant 128 : index
    %122 = vector.load %arg4[%c0_165, %c0_166, %c1_167, %c128_168] : memref<1x4x9x256xf32, #tpu.memory_space<vmem>>, vector<1x4x1x16xf32>
    %123 = vector.shape_cast %122 : vector<1x4x1x16xf32> to vector<4x16xf32>
    %124 = vector.shape_cast %121 : vector<4x16xf32> to vector<1x4x1x16xf32>
    tpu.vector_store %arg4[%c0_165, %c0_166, %c1_167, %c128_168], %124 {strides = array<i32>} : memref<1x4x9x256xf32, #tpu.memory_space<vmem>>, vector<1x4x1x16xf32>,
    %c0_169 = arith.constant 0 : index
    %c0_170 = arith.constant 0 : index
    %c9_171 = arith.constant 9 : index
    %c1_172 = arith.constant 1 : index
    %125 = vector.load %arg3[%c0_169, %c0_170, %c9_171, %c1_172] : memref<1x4x18x18xf32, #tpu.memory_space<vmem>>, vector<1x4x1x16xf32>
    %126 = vector.shape_cast %125 : vector<1x4x1x16xf32> to vector<4x16xf32>
    %c0_173 = arith.constant 0 : index
    %c0_174 = arith.constant 0 : index
    %c1_175 = arith.constant 1 : index
    %c144_176 = arith.constant 144 : index
    %127 = vector.load %arg4[%c0_173, %c0_174, %c1_175, %c144_176] : memref<1x4x9x256xf32, #tpu.memory_space<vmem>>, vector<1x4x1x16xf32>
    %128 = vector.shape_cast %127 : vector<1x4x1x16xf32> to vector<4x16xf32>
    %129 = vector.shape_cast %126 : vector<4x16xf32> to vector<1x4x1x16xf32>
    tpu.vector_store %arg4[%c0_173, %c0_174, %c1_175, %c144_176], %129 {strides = array<i32>} : memref<1x4x9x256xf32, #tpu.memory_space<vmem>>, vector<1x4x1x16xf32>,
    %c0_177 = arith.constant 0 : index
    %c0_178 = arith.constant 0 : index
    %c10_179 = arith.constant 10 : index
    %c1_180 = arith.constant 1 : index
    %130 = vector.load %arg3[%c0_177, %c0_178, %c10_179, %c1_180] : memref<1x4x18x18xf32, #tpu.memory_space<vmem>>, vector<1x4x1x16xf32>
    %131 = vector.shape_cast %130 : vector<1x4x1x16xf32> to vector<4x16xf32>
    %c0_181 = arith.constant 0 : index
    %c0_182 = arith.constant 0 : index
    %c1_183 = arith.constant 1 : index
    %c160_184 = arith.constant 160 : index
    %132 = vector.load %arg4[%c0_181, %c0_182, %c1_183, %c160_184] : memref<1x4x9x256xf32, #tpu.memory_space<vmem>>, vector<1x4x1x16xf32>
    %133 = vector.shape_cast %132 : vector<1x4x1x16xf32> to vector<4x16xf32>
    %134 = vector.shape_cast %131 : vector<4x16xf32> to vector<1x4x1x16xf32>
    tpu.vector_store %arg4[%c0_181, %c0_182, %c1_183, %c160_184], %134 {strides = array<i32>} : memref<1x4x9x256xf32, #tpu.memory_space<vmem>>, vector<1x4x1x16xf32>,
    %c0_185 = arith.constant 0 : index
    %c0_186 = arith.constant 0 : index
    %c11_187 = arith.constant 11 : index
    %c1_188 = arith.constant 1 : index
    %135 = vector.load %arg3[%c0_185, %c0_186, %c11_187, %c1_188] : memref<1x4x18x18xf32, #tpu.memory_space<vmem>>, vector<1x4x1x16xf32>
    %136 = vector.shape_cast %135 : vector<1x4x1x16xf32> to vector<4x16xf32>
    %c0_189 = arith.constant 0 : index
    %c0_190 = arith.constant 0 : index
    %c1_191 = arith.constant 1 : index
    %c176_192 = arith.constant 176 : index
    %137 = vector.load %arg4[%c0_189, %c0_190, %c1_191, %c176_192] : memref<1x4x9x256xf32, #tpu.memory_space<vmem>>, vector<1x4x1x16xf32>
    %138 = vector.shape_cast %137 : vector<1x4x1x16xf32> to vector<4x16xf32>
    %139 = vector.shape_cast %136 : vector<4x16xf32> to vector<1x4x1x16xf32>
    tpu.vector_store %arg4[%c0_189, %c0_190, %c1_191, %c176_192], %139 {strides = array<i32>} : memref<1x4x9x256xf32, #tpu.memory_space<vmem>>, vector<1x4x1x16xf32>,
    %c0_193 = arith.constant 0 : index
    %c0_194 = arith.constant 0 : index
    %c12_195 = arith.constant 12 : index
    %c1_196 = arith.constant 1 : index
    %140 = vector.load %arg3[%c0_193, %c0_194, %c12_195, %c1_196] : memref<1x4x18x18xf32, #tpu.memory_space<vmem>>, vector<1x4x1x16xf32>
    %141 = vector.shape_cast %140 : vector<1x4x1x16xf32> to vector<4x16xf32>
    %c0_197 = arith.constant 0 : index
    %c0_198 = arith.constant 0 : index
    %c1_199 = arith.constant 1 : index
    %c192_200 = arith.constant 192 : index
    %142 = vector.load %arg4[%c0_197, %c0_198, %c1_199, %c192_200] : memref<1x4x9x256xf32, #tpu.memory_space<vmem>>, vector<1x4x1x16xf32>
    %143 = vector.shape_cast %142 : vector<1x4x1x16xf32> to vector<4x16xf32>
    %144 = vector.shape_cast %141 : vector<4x16xf32> to vector<1x4x1x16xf32>
    tpu.vector_store %arg4[%c0_197, %c0_198, %c1_199, %c192_200], %144 {strides = array<i32>} : memref<1x4x9x256xf32, #tpu.memory_space<vmem>>, vector<1x4x1x16xf32>,
    %c0_201 = arith.constant 0 : index
    %c0_202 = arith.constant 0 : index
    %c13_203 = arith.constant 13 : index
    %c1_204 = arith.constant 1 : index
    %145 = vector.load %arg3[%c0_201, %c0_202, %c13_203, %c1_204] : memref<1x4x18x18xf32, #tpu.memory_space<vmem>>, vector<1x4x1x16xf32>
    %146 = vector.shape_cast %145 : vector<1x4x1x16xf32> to vector<4x16xf32>
    %c0_205 = arith.constant 0 : index
    %c0_206 = arith.constant 0 : index
    %c1_207 = arith.constant 1 : index
    %c208_208 = arith.constant 208 : index
    %147 = vector.load %arg4[%c0_205, %c0_206, %c1_207, %c208_208] : memref<1x4x9x256xf32, #tpu.memory_space<vmem>>, vector<1x4x1x16xf32>
    %148 = vector.shape_cast %147 : vector<1x4x1x16xf32> to vector<4x16xf32>
    %149 = vector.shape_cast %146 : vector<4x16xf32> to vector<1x4x1x16xf32>
    tpu.vector_store %arg4[%c0_205, %c0_206, %c1_207, %c208_208], %149 {strides = array<i32>} : memref<1x4x9x256xf32, #tpu.memory_space<vmem>>, vector<1x4x1x16xf32>,
    %c0_209 = arith.constant 0 : index
    %c0_210 = arith.constant 0 : index
    %c14_211 = arith.constant 14 : index
    %c1_212 = arith.constant 1 : index
    %150 = vector.load %arg3[%c0_209, %c0_210, %c14_211, %c1_212] : memref<1x4x18x18xf32, #tpu.memory_space<vmem>>, vector<1x4x1x16xf32>
    %151 = vector.shape_cast %150 : vector<1x4x1x16xf32> to vector<4x16xf32>
    %c0_213 = arith.constant 0 : index
    %c0_214 = arith.constant 0 : index
    %c1_215 = arith.constant 1 : index
    %c224_216 = arith.constant 224 : index
    %152 = vector.load %arg4[%c0_213, %c0_214, %c1_215, %c224_216] : memref<1x4x9x256xf32, #tpu.memory_space<vmem>>, vector<1x4x1x16xf32>
    %153 = vector.shape_cast %152 : vector<1x4x1x16xf32> to vector<4x16xf32>
    %154 = vector.shape_cast %151 : vector<4x16xf32> to vector<1x4x1x16xf32>
    tpu.vector_store %arg4[%c0_213, %c0_214, %c1_215, %c224_216], %154 {strides = array<i32>} : memref<1x4x9x256xf32, #tpu.memory_space<vmem>>, vector<1x4x1x16xf32>,
    %c0_217 = arith.constant 0 : index
    %c0_218 = arith.constant 0 : index
    %c15_219 = arith.constant 15 : index
    %c1_220 = arith.constant 1 : index
    %155 = vector.load %arg3[%c0_217, %c0_218, %c15_219, %c1_220] : memref<1x4x18x18xf32, #tpu.memory_space<vmem>>, vector<1x4x1x16xf32>
    %156 = vector.shape_cast %155 : vector<1x4x1x16xf32> to vector<4x16xf32>
    %c0_221 = arith.constant 0 : index
    %c0_222 = arith.constant 0 : index
    %c1_223 = arith.constant 1 : index
    %c240_224 = arith.constant 240 : index
    %157 = vector.load %arg4[%c0_221, %c0_222, %c1_223, %c240_224] : memref<1x4x9x256xf32, #tpu.memory_space<vmem>>, vector<1x4x1x16xf32>
    %158 = vector.shape_cast %157 : vector<1x4x1x16xf32> to vector<4x16xf32>
    %159 = vector.shape_cast %156 : vector<4x16xf32> to vector<1x4x1x16xf32>
    tpu.vector_store %arg4[%c0_221, %c0_222, %c1_223, %c240_224], %159 {strides = array<i32>} : memref<1x4x9x256xf32, #tpu.memory_space<vmem>>, vector<1x4x1x16xf32>,
    %c0_225 = arith.constant 0 : index
    %c0_226 = arith.constant 0 : index
    %c0_227 = arith.constant 0 : index
    %c2_228 = arith.constant 2 : index
    %160 = vector.load %arg3[%c0_225, %c0_226, %c0_227, %c2_228] : memref<1x4x18x18xf32, #tpu.memory_space<vmem>>, vector<1x4x1x16xf32>
    %161 = vector.shape_cast %160 : vector<1x4x1x16xf32> to vector<4x16xf32>
    %c0_229 = arith.constant 0 : index
    %c0_230 = arith.constant 0 : index
    %c2_231 = arith.constant 2 : index
    %c0_232 = arith.constant 0 : index
    %162 = vector.load %arg4[%c0_229, %c0_230, %c2_231, %c0_232] : memref<1x4x9x256xf32, #tpu.memory_space<vmem>>, vector<1x4x1x16xf32>
    %163 = vector.shape_cast %162 : vector<1x4x1x16xf32> to vector<4x16xf32>
    %164 = vector.shape_cast %161 : vector<4x16xf32> to vector<1x4x1x16xf32>
    tpu.vector_store %arg4[%c0_229, %c0_230, %c2_231, %c0_232], %164 {strides = array<i32>} : memref<1x4x9x256xf32, #tpu.memory_space<vmem>>, vector<1x4x1x16xf32>,
    %c0_233 = arith.constant 0 : index
    %c0_234 = arith.constant 0 : index
    %c1_235 = arith.constant 1 : index
    %c2_236 = arith.constant 2 : index
    %165 = vector.load %arg3[%c0_233, %c0_234, %c1_235, %c2_236] : memref<1x4x18x18xf32, #tpu.memory_space<vmem>>, vector<1x4x1x16xf32>
    %166 = vector.shape_cast %165 : vector<1x4x1x16xf32> to vector<4x16xf32>
    %c0_237 = arith.constant 0 : index
    %c0_238 = arith.constant 0 : index
    %c2_239 = arith.constant 2 : index
    %c16_240 = arith.constant 16 : index
    %167 = vector.load %arg4[%c0_237, %c0_238, %c2_239, %c16_240] : memref<1x4x9x256xf32, #tpu.memory_space<vmem>>, vector<1x4x1x16xf32>
    %168 = vector.shape_cast %167 : vector<1x4x1x16xf32> to vector<4x16xf32>
    %169 = vector.shape_cast %166 : vector<4x16xf32> to vector<1x4x1x16xf32>
    tpu.vector_store %arg4[%c0_237, %c0_238, %c2_239, %c16_240], %169 {strides = array<i32>} : memref<1x4x9x256xf32, #tpu.memory_space<vmem>>, vector<1x4x1x16xf32>,
    %c0_241 = arith.constant 0 : index
    %c0_242 = arith.constant 0 : index
    %c2_243 = arith.constant 2 : index
    %c2_244 = arith.constant 2 : index
    %170 = vector.load %arg3[%c0_241, %c0_242, %c2_243, %c2_244] : memref<1x4x18x18xf32, #tpu.memory_space<vmem>>, vector<1x4x1x16xf32>
    %171 = vector.shape_cast %170 : vector<1x4x1x16xf32> to vector<4x16xf32>
    %c0_245 = arith.constant 0 : index
    %c0_246 = arith.constant 0 : index
    %c2_247 = arith.constant 2 : index
    %c32_248 = arith.constant 32 : index
    %172 = vector.load %arg4[%c0_245, %c0_246, %c2_247, %c32_248] : memref<1x4x9x256xf32, #tpu.memory_space<vmem>>, vector<1x4x1x16xf32>
    %173 = vector.shape_cast %172 : vector<1x4x1x16xf32> to vector<4x16xf32>
    %174 = vector.shape_cast %171 : vector<4x16xf32> to vector<1x4x1x16xf32>
    tpu.vector_store %arg4[%c0_245, %c0_246, %c2_247, %c32_248], %174 {strides = array<i32>} : memref<1x4x9x256xf32, #tpu.memory_space<vmem>>, vector<1x4x1x16xf32>,
    %c0_249 = arith.constant 0 : index
    %c0_250 = arith.constant 0 : index
    %c3_251 = arith.constant 3 : index
    %c2_252 = arith.constant 2 : index
    %175 = vector.load %arg3[%c0_249, %c0_250, %c3_251, %c2_252] : memref<1x4x18x18xf32, #tpu.memory_space<vmem>>, vector<1x4x1x16xf32>
    %176 = vector.shape_cast %175 : vector<1x4x1x16xf32> to vector<4x16xf32>
    %c0_253 = arith.constant 0 : index
    %c0_254 = arith.constant 0 : index
    %c2_255 = arith.constant 2 : index
    %c48_256 = arith.constant 48 : index
    %177 = vector.load %arg4[%c0_253, %c0_254, %c2_255, %c48_256] : memref<1x4x9x256xf32, #tpu.memory_space<vmem>>, vector<1x4x1x16xf32>
    %178 = vector.shape_cast %177 : vector<1x4x1x16xf32> to vector<4x16xf32>
    %179 = vector.shape_cast %176 : vector<4x16xf32> to vector<1x4x1x16xf32>
    tpu.vector_store %arg4[%c0_253, %c0_254, %c2_255, %c48_256], %179 {strides = array<i32>} : memref<1x4x9x256xf32, #tpu.memory_space<vmem>>, vector<1x4x1x16xf32>,
    %c0_257 = arith.constant 0 : index
    %c0_258 = arith.constant 0 : index
    %c4_259 = arith.constant 4 : index
    %c2_260 = arith.constant 2 : index
    %180 = vector.load %arg3[%c0_257, %c0_258, %c4_259, %c2_260] : memref<1x4x18x18xf32, #tpu.memory_space<vmem>>, vector<1x4x1x16xf32>
    %181 = vector.shape_cast %180 : vector<1x4x1x16xf32> to vector<4x16xf32>
    %c0_261 = arith.constant 0 : index
    %c0_262 = arith.constant 0 : index
    %c2_263 = arith.constant 2 : index
    %c64_264 = arith.constant 64 : index
    %182 = vector.load %arg4[%c0_261, %c0_262, %c2_263, %c64_264] : memref<1x4x9x256xf32, #tpu.memory_space<vmem>>, vector<1x4x1x16xf32>
    %183 = vector.shape_cast %182 : vector<1x4x1x16xf32> to vector<4x16xf32>
    %184 = vector.shape_cast %181 : vector<4x16xf32> to vector<1x4x1x16xf32>
    tpu.vector_store %arg4[%c0_261, %c0_262, %c2_263, %c64_264], %184 {strides = array<i32>} : memref<1x4x9x256xf32, #tpu.memory_space<vmem>>, vector<1x4x1x16xf32>,
    %c0_265 = arith.constant 0 : index
    %c0_266 = arith.constant 0 : index
    %c5_267 = arith.constant 5 : index
    %c2_268 = arith.constant 2 : index
    %185 = vector.load %arg3[%c0_265, %c0_266, %c5_267, %c2_268] : memref<1x4x18x18xf32, #tpu.memory_space<vmem>>, vector<1x4x1x16xf32>
    %186 = vector.shape_cast %185 : vector<1x4x1x16xf32> to vector<4x16xf32>
    %c0_269 = arith.constant 0 : index
    %c0_270 = arith.constant 0 : index
    %c2_271 = arith.constant 2 : index
    %c80_272 = arith.constant 80 : index
    %187 = vector.load %arg4[%c0_269, %c0_270, %c2_271, %c80_272] : memref<1x4x9x256xf32, #tpu.memory_space<vmem>>, vector<1x4x1x16xf32>
    %188 = vector.shape_cast %187 : vector<1x4x1x16xf32> to vector<4x16xf32>
    %189 = vector.shape_cast %186 : vector<4x16xf32> to vector<1x4x1x16xf32>
    tpu.vector_store %arg4[%c0_269, %c0_270, %c2_271, %c80_272], %189 {strides = array<i32>} : memref<1x4x9x256xf32, #tpu.memory_space<vmem>>, vector<1x4x1x16xf32>,
    %c0_273 = arith.constant 0 : index
    %c0_274 = arith.constant 0 : index
    %c6_275 = arith.constant 6 : index
    %c2_276 = arith.constant 2 : index
    %190 = vector.load %arg3[%c0_273, %c0_274, %c6_275, %c2_276] : memref<1x4x18x18xf32, #tpu.memory_space<vmem>>, vector<1x4x1x16xf32>
    %191 = vector.shape_cast %190 : vector<1x4x1x16xf32> to vector<4x16xf32>
    %c0_277 = arith.constant 0 : index
    %c0_278 = arith.constant 0 : index
    %c2_279 = arith.constant 2 : index
    %c96_280 = arith.constant 96 : index
    %192 = vector.load %arg4[%c0_277, %c0_278, %c2_279, %c96_280] : memref<1x4x9x256xf32, #tpu.memory_space<vmem>>, vector<1x4x1x16xf32>
    %193 = vector.shape_cast %192 : vector<1x4x1x16xf32> to vector<4x16xf32>
    %194 = vector.shape_cast %191 : vector<4x16xf32> to vector<1x4x1x16xf32>
    tpu.vector_store %arg4[%c0_277, %c0_278, %c2_279, %c96_280], %194 {strides = array<i32>} : memref<1x4x9x256xf32, #tpu.memory_space<vmem>>, vector<1x4x1x16xf32>,
    %c0_281 = arith.constant 0 : index
    %c0_282 = arith.constant 0 : index
    %c7_283 = arith.constant 7 : index
    %c2_284 = arith.constant 2 : index
    %195 = vector.load %arg3[%c0_281, %c0_282, %c7_283, %c2_284] : memref<1x4x18x18xf32, #tpu.memory_space<vmem>>, vector<1x4x1x16xf32>
    %196 = vector.shape_cast %195 : vector<1x4x1x16xf32> to vector<4x16xf32>
    %c0_285 = arith.constant 0 : index
    %c0_286 = arith.constant 0 : index
    %c2_287 = arith.constant 2 : index
    %c112_288 = arith.constant 112 : index
    %197 = vector.load %arg4[%c0_285, %c0_286, %c2_287, %c112_288] : memref<1x4x9x256xf32, #tpu.memory_space<vmem>>, vector<1x4x1x16xf32>
    %198 = vector.shape_cast %197 : vector<1x4x1x16xf32> to vector<4x16xf32>
    %199 = vector.shape_cast %196 : vector<4x16xf32> to vector<1x4x1x16xf32>
    tpu.vector_store %arg4[%c0_285, %c0_286, %c2_287, %c112_288], %199 {strides = array<i32>} : memref<1x4x9x256xf32, #tpu.memory_space<vmem>>, vector<1x4x1x16xf32>,
    %c0_289 = arith.constant 0 : index
    %c0_290 = arith.constant 0 : index
    %c8_291 = arith.constant 8 : index
    %c2_292 = arith.constant 2 : index
    %200 = vector.load %arg3[%c0_289, %c0_290, %c8_291, %c2_292] : memref<1x4x18x18xf32, #tpu.memory_space<vmem>>, vector<1x4x1x16xf32>
    %201 = vector.shape_cast %200 : vector<1x4x1x16xf32> to vector<4x16xf32>
    %c0_293 = arith.constant 0 : index
    %c0_294 = arith.constant 0 : index
    %c2_295 = arith.constant 2 : index
    %c128_296 = arith.constant 128 : index
    %202 = vector.load %arg4[%c0_293, %c0_294, %c2_295, %c128_296] : memref<1x4x9x256xf32, #tpu.memory_space<vmem>>, vector<1x4x1x16xf32>
    %203 = vector.shape_cast %202 : vector<1x4x1x16xf32> to vector<4x16xf32>
    %204 = vector.shape_cast %201 : vector<4x16xf32> to vector<1x4x1x16xf32>
    tpu.vector_store %arg4[%c0_293, %c0_294, %c2_295, %c128_296], %204 {strides = array<i32>} : memref<1x4x9x256xf32, #tpu.memory_space<vmem>>, vector<1x4x1x16xf32>,
    %c0_297 = arith.constant 0 : index
    %c0_298 = arith.constant 0 : index
    %c9_299 = arith.constant 9 : index
    %c2_300 = arith.constant 2 : index
    %205 = vector.load %arg3[%c0_297, %c0_298, %c9_299, %c2_300] : memref<1x4x18x18xf32, #tpu.memory_space<vmem>>, vector<1x4x1x16xf32>
    %206 = vector.shape_cast %205 : vector<1x4x1x16xf32> to vector<4x16xf32>
    %c0_301 = arith.constant 0 : index
    %c0_302 = arith.constant 0 : index
    %c2_303 = arith.constant 2 : index
    %c144_304 = arith.constant 144 : index
    %207 = vector.load %arg4[%c0_301, %c0_302, %c2_303, %c144_304] : memref<1x4x9x256xf32, #tpu.memory_space<vmem>>, vector<1x4x1x16xf32>
    %208 = vector.shape_cast %207 : vector<1x4x1x16xf32> to vector<4x16xf32>
    %209 = vector.shape_cast %206 : vector<4x16xf32> to vector<1x4x1x16xf32>
    tpu.vector_store %arg4[%c0_301, %c0_302, %c2_303, %c144_304], %209 {strides = array<i32>} : memref<1x4x9x256xf32, #tpu.memory_space<vmem>>, vector<1x4x1x16xf32>,
    %c0_305 = arith.constant 0 : index
    %c0_306 = arith.constant 0 : index
    %c10_307 = arith.constant 10 : index
    %c2_308 = arith.constant 2 : index
    %210 = vector.load %arg3[%c0_305, %c0_306, %c10_307, %c2_308] : memref<1x4x18x18xf32, #tpu.memory_space<vmem>>, vector<1x4x1x16xf32>
    %211 = vector.shape_cast %210 : vector<1x4x1x16xf32> to vector<4x16xf32>
    %c0_309 = arith.constant 0 : index
    %c0_310 = arith.constant 0 : index
    %c2_311 = arith.constant 2 : index
    %c160_312 = arith.constant 160 : index
    %212 = vector.load %arg4[%c0_309, %c0_310, %c2_311, %c160_312] : memref<1x4x9x256xf32, #tpu.memory_space<vmem>>, vector<1x4x1x16xf32>
    %213 = vector.shape_cast %212 : vector<1x4x1x16xf32> to vector<4x16xf32>
    %214 = vector.shape_cast %211 : vector<4x16xf32> to vector<1x4x1x16xf32>
    tpu.vector_store %arg4[%c0_309, %c0_310, %c2_311, %c160_312], %214 {strides = array<i32>} : memref<1x4x9x256xf32, #tpu.memory_space<vmem>>, vector<1x4x1x16xf32>,
    %c0_313 = arith.constant 0 : index
    %c0_314 = arith.constant 0 : index
    %c11_315 = arith.constant 11 : index
    %c2_316 = arith.constant 2 : index
    %215 = vector.load %arg3[%c0_313, %c0_314, %c11_315, %c2_316] : memref<1x4x18x18xf32, #tpu.memory_space<vmem>>, vector<1x4x1x16xf32>
    %216 = vector.shape_cast %215 : vector<1x4x1x16xf32> to vector<4x16xf32>
    %c0_317 = arith.constant 0 : index
    %c0_318 = arith.constant 0 : index
    %c2_319 = arith.constant 2 : index
    %c176_320 = arith.constant 176 : index
    %217 = vector.load %arg4[%c0_317, %c0_318, %c2_319, %c176_320] : memref<1x4x9x256xf32, #tpu.memory_space<vmem>>, vector<1x4x1x16xf32>
    %218 = vector.shape_cast %217 : vector<1x4x1x16xf32> to vector<4x16xf32>
    %219 = vector.shape_cast %216 : vector<4x16xf32> to vector<1x4x1x16xf32>
    tpu.vector_store %arg4[%c0_317, %c0_318, %c2_319, %c176_320], %219 {strides = array<i32>} : memref<1x4x9x256xf32, #tpu.memory_space<vmem>>, vector<1x4x1x16xf32>,
    %c0_321 = arith.constant 0 : index
    %c0_322 = arith.constant 0 : index
    %c12_323 = arith.constant 12 : index
    %c2_324 = arith.constant 2 : index
    %220 = vector.load %arg3[%c0_321, %c0_322, %c12_323, %c2_324] : memref<1x4x18x18xf32, #tpu.memory_space<vmem>>, vector<1x4x1x16xf32>
    %221 = vector.shape_cast %220 : vector<1x4x1x16xf32> to vector<4x16xf32>
    %c0_325 = arith.constant 0 : index
    %c0_326 = arith.constant 0 : index
    %c2_327 = arith.constant 2 : index
    %c192_328 = arith.constant 192 : index
    %222 = vector.load %arg4[%c0_325, %c0_326, %c2_327, %c192_328] : memref<1x4x9x256xf32, #tpu.memory_space<vmem>>, vector<1x4x1x16xf32>
    %223 = vector.shape_cast %222 : vector<1x4x1x16xf32> to vector<4x16xf32>
    %224 = vector.shape_cast %221 : vector<4x16xf32> to vector<1x4x1x16xf32>
    tpu.vector_store %arg4[%c0_325, %c0_326, %c2_327, %c192_328], %224 {strides = array<i32>} : memref<1x4x9x256xf32, #tpu.memory_space<vmem>>, vector<1x4x1x16xf32>,
    %c0_329 = arith.constant 0 : index
    %c0_330 = arith.constant 0 : index
    %c13_331 = arith.constant 13 : index
    %c2_332 = arith.constant 2 : index
    %225 = vector.load %arg3[%c0_329, %c0_330, %c13_331, %c2_332] : memref<1x4x18x18xf32, #tpu.memory_space<vmem>>, vector<1x4x1x16xf32>
    %226 = vector.shape_cast %225 : vector<1x4x1x16xf32> to vector<4x16xf32>
    %c0_333 = arith.constant 0 : index
    %c0_334 = arith.constant 0 : index
    %c2_335 = arith.constant 2 : index
    %c208_336 = arith.constant 208 : index
    %227 = vector.load %arg4[%c0_333, %c0_334, %c2_335, %c208_336] : memref<1x4x9x256xf32, #tpu.memory_space<vmem>>, vector<1x4x1x16xf32>
    %228 = vector.shape_cast %227 : vector<1x4x1x16xf32> to vector<4x16xf32>
    %229 = vector.shape_cast %226 : vector<4x16xf32> to vector<1x4x1x16xf32>
    tpu.vector_store %arg4[%c0_333, %c0_334, %c2_335, %c208_336], %229 {strides = array<i32>} : memref<1x4x9x256xf32, #tpu.memory_space<vmem>>, vector<1x4x1x16xf32>,
    %c0_337 = arith.constant 0 : index
    %c0_338 = arith.constant 0 : index
    %c14_339 = arith.constant 14 : index
    %c2_340 = arith.constant 2 : index
    %230 = vector.load %arg3[%c0_337, %c0_338, %c14_339, %c2_340] : memref<1x4x18x18xf32, #tpu.memory_space<vmem>>, vector<1x4x1x16xf32>
    %231 = vector.shape_cast %230 : vector<1x4x1x16xf32> to vector<4x16xf32>
    %c0_341 = arith.constant 0 : index
    %c0_342 = arith.constant 0 : index
    %c2_343 = arith.constant 2 : index
    %c224_344 = arith.constant 224 : index
    %232 = vector.load %arg4[%c0_341, %c0_342, %c2_343, %c224_344] : memref<1x4x9x256xf32, #tpu.memory_space<vmem>>, vector<1x4x1x16xf32>
    %233 = vector.shape_cast %232 : vector<1x4x1x16xf32> to vector<4x16xf32>
    %234 = vector.shape_cast %231 : vector<4x16xf32> to vector<1x4x1x16xf32>
    tpu.vector_store %arg4[%c0_341, %c0_342, %c2_343, %c224_344], %234 {strides = array<i32>} : memref<1x4x9x256xf32, #tpu.memory_space<vmem>>, vector<1x4x1x16xf32>,
    %c0_345 = arith.constant 0 : index
    %c0_346 = arith.constant 0 : index
    %c15_347 = arith.constant 15 : index
    %c2_348 = arith.constant 2 : index
    %235 = vector.load %arg3[%c0_345, %c0_346, %c15_347, %c2_348] : memref<1x4x18x18xf32, #tpu.memory_space<vmem>>, vector<1x4x1x16xf32>
    %236 = vector.shape_cast %235 : vector<1x4x1x16xf32> to vector<4x16xf32>
    %c0_349 = arith.constant 0 : index
    %c0_350 = arith.constant 0 : index
    %c2_351 = arith.constant 2 : index
    %c240_352 = arith.constant 240 : index
    %237 = vector.load %arg4[%c0_349, %c0_350, %c2_351, %c240_352] : memref<1x4x9x256xf32, #tpu.memory_space<vmem>>, vector<1x4x1x16xf32>
    %238 = vector.shape_cast %237 : vector<1x4x1x16xf32> to vector<4x16xf32>
    %239 = vector.shape_cast %236 : vector<4x16xf32> to vector<1x4x1x16xf32>
    tpu.vector_store %arg4[%c0_349, %c0_350, %c2_351, %c240_352], %239 {strides = array<i32>} : memref<1x4x9x256xf32, #tpu.memory_space<vmem>>, vector<1x4x1x16xf32>,
    %c0_353 = arith.constant 0 : index
    %c0_354 = arith.constant 0 : index
    %c1_355 = arith.constant 1 : index
    %c0_356 = arith.constant 0 : index
    %240 = vector.load %arg3[%c0_353, %c0_354, %c1_355, %c0_356] : memref<1x4x18x18xf32, #tpu.memory_space<vmem>>, vector<1x4x1x16xf32>
    %241 = vector.shape_cast %240 : vector<1x4x1x16xf32> to vector<4x16xf32>
    %c0_357 = arith.constant 0 : index
    %c0_358 = arith.constant 0 : index
    %c3_359 = arith.constant 3 : index
    %c0_360 = arith.constant 0 : index
    %242 = vector.load %arg4[%c0_357, %c0_358, %c3_359, %c0_360] : memref<1x4x9x256xf32, #tpu.memory_space<vmem>>, vector<1x4x1x16xf32>
    %243 = vector.shape_cast %242 : vector<1x4x1x16xf32> to vector<4x16xf32>
    %244 = vector.shape_cast %241 : vector<4x16xf32> to vector<1x4x1x16xf32>
    tpu.vector_store %arg4[%c0_357, %c0_358, %c3_359, %c0_360], %244 {strides = array<i32>} : memref<1x4x9x256xf32, #tpu.memory_space<vmem>>, vector<1x4x1x16xf32>,
    %c0_361 = arith.constant 0 : index
    %c0_362 = arith.constant 0 : index
    %c2_363 = arith.constant 2 : index
    %c0_364 = arith.constant 0 : index
    %245 = vector.load %arg3[%c0_361, %c0_362, %c2_363, %c0_364] : memref<1x4x18x18xf32, #tpu.memory_space<vmem>>, vector<1x4x1x16xf32>
    %246 = vector.shape_cast %245 : vector<1x4x1x16xf32> to vector<4x16xf32>
    %c0_365 = arith.constant 0 : index
    %c0_366 = arith.constant 0 : index
    %c3_367 = arith.constant 3 : index
    %c16_368 = arith.constant 16 : index
    %247 = vector.load %arg4[%c0_365, %c0_366, %c3_367, %c16_368] : memref<1x4x9x256xf32, #tpu.memory_space<vmem>>, vector<1x4x1x16xf32>
    %248 = vector.shape_cast %247 : vector<1x4x1x16xf32> to vector<4x16xf32>
    %249 = vector.shape_cast %246 : vector<4x16xf32> to vector<1x4x1x16xf32>
    tpu.vector_store %arg4[%c0_365, %c0_366, %c3_367, %c16_368], %249 {strides = array<i32>} : memref<1x4x9x256xf32, #tpu.memory_space<vmem>>, vector<1x4x1x16xf32>,
    %c0_369 = arith.constant 0 : index
    %c0_370 = arith.constant 0 : index
    %c3_371 = arith.constant 3 : index
    %c0_372 = arith.constant 0 : index
    %250 = vector.load %arg3[%c0_369, %c0_370, %c3_371, %c0_372] : memref<1x4x18x18xf32, #tpu.memory_space<vmem>>, vector<1x4x1x16xf32>
    %251 = vector.shape_cast %250 : vector<1x4x1x16xf32> to vector<4x16xf32>
    %c0_373 = arith.constant 0 : index
    %c0_374 = arith.constant 0 : index
    %c3_375 = arith.constant 3 : index
    %c32_376 = arith.constant 32 : index
    %252 = vector.load %arg4[%c0_373, %c0_374, %c3_375, %c32_376] : memref<1x4x9x256xf32, #tpu.memory_space<vmem>>, vector<1x4x1x16xf32>
    %253 = vector.shape_cast %252 : vector<1x4x1x16xf32> to vector<4x16xf32>
    %254 = vector.shape_cast %251 : vector<4x16xf32> to vector<1x4x1x16xf32>
    tpu.vector_store %arg4[%c0_373, %c0_374, %c3_375, %c32_376], %254 {strides = array<i32>} : memref<1x4x9x256xf32, #tpu.memory_space<vmem>>, vector<1x4x1x16xf32>,
    %c0_377 = arith.constant 0 : index
    %c0_378 = arith.constant 0 : index
    %c4_379 = arith.constant 4 : index
    %c0_380 = arith.constant 0 : index
    %255 = vector.load %arg3[%c0_377, %c0_378, %c4_379, %c0_380] : memref<1x4x18x18xf32, #tpu.memory_space<vmem>>, vector<1x4x1x16xf32>
    %256 = vector.shape_cast %255 : vector<1x4x1x16xf32> to vector<4x16xf32>
    %c0_381 = arith.constant 0 : index
    %c0_382 = arith.constant 0 : index
    %c3_383 = arith.constant 3 : index
    %c48_384 = arith.constant 48 : index
    %257 = vector.load %arg4[%c0_381, %c0_382, %c3_383, %c48_384] : memref<1x4x9x256xf32, #tpu.memory_space<vmem>>, vector<1x4x1x16xf32>
    %258 = vector.shape_cast %257 : vector<1x4x1x16xf32> to vector<4x16xf32>
    %259 = vector.shape_cast %256 : vector<4x16xf32> to vector<1x4x1x16xf32>
    tpu.vector_store %arg4[%c0_381, %c0_382, %c3_383, %c48_384], %259 {strides = array<i32>} : memref<1x4x9x256xf32, #tpu.memory_space<vmem>>, vector<1x4x1x16xf32>,
    %c0_385 = arith.constant 0 : index
    %c0_386 = arith.constant 0 : index
    %c5_387 = arith.constant 5 : index
    %c0_388 = arith.constant 0 : index
    %260 = vector.load %arg3[%c0_385, %c0_386, %c5_387, %c0_388] : memref<1x4x18x18xf32, #tpu.memory_space<vmem>>, vector<1x4x1x16xf32>
    %261 = vector.shape_cast %260 : vector<1x4x1x16xf32> to vector<4x16xf32>
    %c0_389 = arith.constant 0 : index
    %c0_390 = arith.constant 0 : index
    %c3_391 = arith.constant 3 : index
    %c64_392 = arith.constant 64 : index
    %262 = vector.load %arg4[%c0_389, %c0_390, %c3_391, %c64_392] : memref<1x4x9x256xf32, #tpu.memory_space<vmem>>, vector<1x4x1x16xf32>
    %263 = vector.shape_cast %262 : vector<1x4x1x16xf32> to vector<4x16xf32>
    %264 = vector.shape_cast %261 : vector<4x16xf32> to vector<1x4x1x16xf32>
    tpu.vector_store %arg4[%c0_389, %c0_390, %c3_391, %c64_392], %264 {strides = array<i32>} : memref<1x4x9x256xf32, #tpu.memory_space<vmem>>, vector<1x4x1x16xf32>,
    %c0_393 = arith.constant 0 : index
    %c0_394 = arith.constant 0 : index
    %c6_395 = arith.constant 6 : index
    %c0_396 = arith.constant 0 : index
    %265 = vector.load %arg3[%c0_393, %c0_394, %c6_395, %c0_396] : memref<1x4x18x18xf32, #tpu.memory_space<vmem>>, vector<1x4x1x16xf32>
    %266 = vector.shape_cast %265 : vector<1x4x1x16xf32> to vector<4x16xf32>
    %c0_397 = arith.constant 0 : index
    %c0_398 = arith.constant 0 : index
    %c3_399 = arith.constant 3 : index
    %c80_400 = arith.constant 80 : index
    %267 = vector.load %arg4[%c0_397, %c0_398, %c3_399, %c80_400] : memref<1x4x9x256xf32, #tpu.memory_space<vmem>>, vector<1x4x1x16xf32>
    %268 = vector.shape_cast %267 : vector<1x4x1x16xf32> to vector<4x16xf32>
    %269 = vector.shape_cast %266 : vector<4x16xf32> to vector<1x4x1x16xf32>
    tpu.vector_store %arg4[%c0_397, %c0_398, %c3_399, %c80_400], %269 {strides = array<i32>} : memref<1x4x9x256xf32, #tpu.memory_space<vmem>>, vector<1x4x1x16xf32>,
    %c0_401 = arith.constant 0 : index
    %c0_402 = arith.constant 0 : index
    %c7_403 = arith.constant 7 : index
    %c0_404 = arith.constant 0 : index
    %270 = vector.load %arg3[%c0_401, %c0_402, %c7_403, %c0_404] : memref<1x4x18x18xf32, #tpu.memory_space<vmem>>, vector<1x4x1x16xf32>
    %271 = vector.shape_cast %270 : vector<1x4x1x16xf32> to vector<4x16xf32>
    %c0_405 = arith.constant 0 : index
    %c0_406 = arith.constant 0 : index
    %c3_407 = arith.constant 3 : index
    %c96_408 = arith.constant 96 : index
    %272 = vector.load %arg4[%c0_405, %c0_406, %c3_407, %c96_408] : memref<1x4x9x256xf32, #tpu.memory_space<vmem>>, vector<1x4x1x16xf32>
    %273 = vector.shape_cast %272 : vector<1x4x1x16xf32> to vector<4x16xf32>
    %274 = vector.shape_cast %271 : vector<4x16xf32> to vector<1x4x1x16xf32>
    tpu.vector_store %arg4[%c0_405, %c0_406, %c3_407, %c96_408], %274 {strides = array<i32>} : memref<1x4x9x256xf32, #tpu.memory_space<vmem>>, vector<1x4x1x16xf32>,
    %c0_409 = arith.constant 0 : index
    %c0_410 = arith.constant 0 : index
    %c8_411 = arith.constant 8 : index
    %c0_412 = arith.constant 0 : index
    %275 = vector.load %arg3[%c0_409, %c0_410, %c8_411, %c0_412] : memref<1x4x18x18xf32, #tpu.memory_space<vmem>>, vector<1x4x1x16xf32>
    %276 = vector.shape_cast %275 : vector<1x4x1x16xf32> to vector<4x16xf32>
    %c0_413 = arith.constant 0 : index
    %c0_414 = arith.constant 0 : index
    %c3_415 = arith.constant 3 : index
    %c112_416 = arith.constant 112 : index
    %277 = vector.load %arg4[%c0_413, %c0_414, %c3_415, %c112_416] : memref<1x4x9x256xf32, #tpu.memory_space<vmem>>, vector<1x4x1x16xf32>
    %278 = vector.shape_cast %277 : vector<1x4x1x16xf32> to vector<4x16xf32>
    %279 = vector.shape_cast %276 : vector<4x16xf32> to vector<1x4x1x16xf32>
    tpu.vector_store %arg4[%c0_413, %c0_414, %c3_415, %c112_416], %279 {strides = array<i32>} : memref<1x4x9x256xf32, #tpu.memory_space<vmem>>, vector<1x4x1x16xf32>,
    %c0_417 = arith.constant 0 : index
    %c0_418 = arith.constant 0 : index
    %c9_419 = arith.constant 9 : index
    %c0_420 = arith.constant 0 : index
    %280 = vector.load %arg3[%c0_417, %c0_418, %c9_419, %c0_420] : memref<1x4x18x18xf32, #tpu.memory_space<vmem>>, vector<1x4x1x16xf32>
    %281 = vector.shape_cast %280 : vector<1x4x1x16xf32> to vector<4x16xf32>
    %c0_421 = arith.constant 0 : index
    %c0_422 = arith.constant 0 : index
    %c3_423 = arith.constant 3 : index
    %c128_424 = arith.constant 128 : index
    %282 = vector.load %arg4[%c0_421, %c0_422, %c3_423, %c128_424] : memref<1x4x9x256xf32, #tpu.memory_space<vmem>>, vector<1x4x1x16xf32>
    %283 = vector.shape_cast %282 : vector<1x4x1x16xf32> to vector<4x16xf32>
    %284 = vector.shape_cast %281 : vector<4x16xf32> to vector<1x4x1x16xf32>
    tpu.vector_store %arg4[%c0_421, %c0_422, %c3_423, %c128_424], %284 {strides = array<i32>} : memref<1x4x9x256xf32, #tpu.memory_space<vmem>>, vector<1x4x1x16xf32>,
    %c0_425 = arith.constant 0 : index
    %c0_426 = arith.constant 0 : index
    %c10_427 = arith.constant 10 : index
    %c0_428 = arith.constant 0 : index
    %285 = vector.load %arg3[%c0_425, %c0_426, %c10_427, %c0_428] : memref<1x4x18x18xf32, #tpu.memory_space<vmem>>, vector<1x4x1x16xf32>
    %286 = vector.shape_cast %285 : vector<1x4x1x16xf32> to vector<4x16xf32>
    %c0_429 = arith.constant 0 : index
    %c0_430 = arith.constant 0 : index
    %c3_431 = arith.constant 3 : index
    %c144_432 = arith.constant 144 : index
    %287 = vector.load %arg4[%c0_429, %c0_430, %c3_431, %c144_432] : memref<1x4x9x256xf32, #tpu.memory_space<vmem>>, vector<1x4x1x16xf32>
    %288 = vector.shape_cast %287 : vector<1x4x1x16xf32> to vector<4x16xf32>
    %289 = vector.shape_cast %286 : vector<4x16xf32> to vector<1x4x1x16xf32>
    tpu.vector_store %arg4[%c0_429, %c0_430, %c3_431, %c144_432], %289 {strides = array<i32>} : memref<1x4x9x256xf32, #tpu.memory_space<vmem>>, vector<1x4x1x16xf32>,
    %c0_433 = arith.constant 0 : index
    %c0_434 = arith.constant 0 : index
    %c11_435 = arith.constant 11 : index
    %c0_436 = arith.constant 0 : index
    %290 = vector.load %arg3[%c0_433, %c0_434, %c11_435, %c0_436] : memref<1x4x18x18xf32, #tpu.memory_space<vmem>>, vector<1x4x1x16xf32>
    %291 = vector.shape_cast %290 : vector<1x4x1x16xf32> to vector<4x16xf32>
    %c0_437 = arith.constant 0 : index
    %c0_438 = arith.constant 0 : index
    %c3_439 = arith.constant 3 : index
    %c160_440 = arith.constant 160 : index
    %292 = vector.load %arg4[%c0_437, %c0_438, %c3_439, %c160_440] : memref<1x4x9x256xf32, #tpu.memory_space<vmem>>, vector<1x4x1x16xf32>
    %293 = vector.shape_cast %292 : vector<1x4x1x16xf32> to vector<4x16xf32>
    %294 = vector.shape_cast %291 : vector<4x16xf32> to vector<1x4x1x16xf32>
    tpu.vector_store %arg4[%c0_437, %c0_438, %c3_439, %c160_440], %294 {strides = array<i32>} : memref<1x4x9x256xf32, #tpu.memory_space<vmem>>, vector<1x4x1x16xf32>,
    %c0_441 = arith.constant 0 : index
    %c0_442 = arith.constant 0 : index
    %c12_443 = arith.constant 12 : index
    %c0_444 = arith.constant 0 : index
    %295 = vector.load %arg3[%c0_441, %c0_442, %c12_443, %c0_444] : memref<1x4x18x18xf32, #tpu.memory_space<vmem>>, vector<1x4x1x16xf32>
    %296 = vector.shape_cast %295 : vector<1x4x1x16xf32> to vector<4x16xf32>
    %c0_445 = arith.constant 0 : index
    %c0_446 = arith.constant 0 : index
    %c3_447 = arith.constant 3 : index
    %c176_448 = arith.constant 176 : index
    %297 = vector.load %arg4[%c0_445, %c0_446, %c3_447, %c176_448] : memref<1x4x9x256xf32, #tpu.memory_space<vmem>>, vector<1x4x1x16xf32>
    %298 = vector.shape_cast %297 : vector<1x4x1x16xf32> to vector<4x16xf32>
    %299 = vector.shape_cast %296 : vector<4x16xf32> to vector<1x4x1x16xf32>
    tpu.vector_store %arg4[%c0_445, %c0_446, %c3_447, %c176_448], %299 {strides = array<i32>} : memref<1x4x9x256xf32, #tpu.memory_space<vmem>>, vector<1x4x1x16xf32>,
    %c0_449 = arith.constant 0 : index
    %c0_450 = arith.constant 0 : index
    %c13_451 = arith.constant 13 : index
    %c0_452 = arith.constant 0 : index
    %300 = vector.load %arg3[%c0_449, %c0_450, %c13_451, %c0_452] : memref<1x4x18x18xf32, #tpu.memory_space<vmem>>, vector<1x4x1x16xf32>
    %301 = vector.shape_cast %300 : vector<1x4x1x16xf32> to vector<4x16xf32>
    %c0_453 = arith.constant 0 : index
    %c0_454 = arith.constant 0 : index
    %c3_455 = arith.constant 3 : index
    %c192_456 = arith.constant 192 : index
    %302 = vector.load %arg4[%c0_453, %c0_454, %c3_455, %c192_456] : memref<1x4x9x256xf32, #tpu.memory_space<vmem>>, vector<1x4x1x16xf32>
    %303 = vector.shape_cast %302 : vector<1x4x1x16xf32> to vector<4x16xf32>
    %304 = vector.shape_cast %301 : vector<4x16xf32> to vector<1x4x1x16xf32>
    tpu.vector_store %arg4[%c0_453, %c0_454, %c3_455, %c192_456], %304 {strides = array<i32>} : memref<1x4x9x256xf32, #tpu.memory_space<vmem>>, vector<1x4x1x16xf32>,
    %c0_457 = arith.constant 0 : index
    %c0_458 = arith.constant 0 : index
    %c14_459 = arith.constant 14 : index
    %c0_460 = arith.constant 0 : index
    %305 = vector.load %arg3[%c0_457, %c0_458, %c14_459, %c0_460] : memref<1x4x18x18xf32, #tpu.memory_space<vmem>>, vector<1x4x1x16xf32>
    %306 = vector.shape_cast %305 : vector<1x4x1x16xf32> to vector<4x16xf32>
    %c0_461 = arith.constant 0 : index
    %c0_462 = arith.constant 0 : index
    %c3_463 = arith.constant 3 : index
    %c208_464 = arith.constant 208 : index
    %307 = vector.load %arg4[%c0_461, %c0_462, %c3_463, %c208_464] : memref<1x4x9x256xf32, #tpu.memory_space<vmem>>, vector<1x4x1x16xf32>
    %308 = vector.shape_cast %307 : vector<1x4x1x16xf32> to vector<4x16xf32>
    %309 = vector.shape_cast %306 : vector<4x16xf32> to vector<1x4x1x16xf32>
    tpu.vector_store %arg4[%c0_461, %c0_462, %c3_463, %c208_464], %309 {strides = array<i32>} : memref<1x4x9x256xf32, #tpu.memory_space<vmem>>, vector<1x4x1x16xf32>,
    %c0_465 = arith.constant 0 : index
    %c0_466 = arith.constant 0 : index
    %c15_467 = arith.constant 15 : index
    %c0_468 = arith.constant 0 : index
    %310 = vector.load %arg3[%c0_465, %c0_466, %c15_467, %c0_468] : memref<1x4x18x18xf32, #tpu.memory_space<vmem>>, vector<1x4x1x16xf32>
    %311 = vector.shape_cast %310 : vector<1x4x1x16xf32> to vector<4x16xf32>
    %c0_469 = arith.constant 0 : index
    %c0_470 = arith.constant 0 : index
    %c3_471 = arith.constant 3 : index
    %c224_472 = arith.constant 224 : index
    %312 = vector.load %arg4[%c0_469, %c0_470, %c3_471, %c224_472] : memref<1x4x9x256xf32, #tpu.memory_space<vmem>>, vector<1x4x1x16xf32>
    %313 = vector.shape_cast %312 : vector<1x4x1x16xf32> to vector<4x16xf32>
    %314 = vector.shape_cast %311 : vector<4x16xf32> to vector<1x4x1x16xf32>
    tpu.vector_store %arg4[%c0_469, %c0_470, %c3_471, %c224_472], %314 {strides = array<i32>} : memref<1x4x9x256xf32, #tpu.memory_space<vmem>>, vector<1x4x1x16xf32>,
    %c0_473 = arith.constant 0 : index
    %c0_474 = arith.constant 0 : index
    %c16_475 = arith.constant 16 : index
    %c0_476 = arith.constant 0 : index
    %315 = vector.load %arg3[%c0_473, %c0_474, %c16_475, %c0_476] : memref<1x4x18x18xf32, #tpu.memory_space<vmem>>, vector<1x4x1x16xf32>
    %316 = vector.shape_cast %315 : vector<1x4x1x16xf32> to vector<4x16xf32>
    %c0_477 = arith.constant 0 : index
    %c0_478 = arith.constant 0 : index
    %c3_479 = arith.constant 3 : index
    %c240_480 = arith.constant 240 : index
    %317 = vector.load %arg4[%c0_477, %c0_478, %c3_479, %c240_480] : memref<1x4x9x256xf32, #tpu.memory_space<vmem>>, vector<1x4x1x16xf32>
    %318 = vector.shape_cast %317 : vector<1x4x1x16xf32> to vector<4x16xf32>
    %319 = vector.shape_cast %316 : vector<4x16xf32> to vector<1x4x1x16xf32>
    tpu.vector_store %arg4[%c0_477, %c0_478, %c3_479, %c240_480], %319 {strides = array<i32>} : memref<1x4x9x256xf32, #tpu.memory_space<vmem>>, vector<1x4x1x16xf32>,
    %c0_481 = arith.constant 0 : index
    %c0_482 = arith.constant 0 : index
    %c1_483 = arith.constant 1 : index
    %c1_484 = arith.constant 1 : index
    %320 = vector.load %arg3[%c0_481, %c0_482, %c1_483, %c1_484] : memref<1x4x18x18xf32, #tpu.memory_space<vmem>>, vector<1x4x1x16xf32>
    %321 = vector.shape_cast %320 : vector<1x4x1x16xf32> to vector<4x16xf32>
    %c0_485 = arith.constant 0 : index
    %c0_486 = arith.constant 0 : index
    %c4_487 = arith.constant 4 : index
    %c0_488 = arith.constant 0 : index
    %322 = vector.load %arg4[%c0_485, %c0_486, %c4_487, %c0_488] : memref<1x4x9x256xf32, #tpu.memory_space<vmem>>, vector<1x4x1x16xf32>
    %323 = vector.shape_cast %322 : vector<1x4x1x16xf32> to vector<4x16xf32>
    %324 = vector.shape_cast %321 : vector<4x16xf32> to vector<1x4x1x16xf32>
    tpu.vector_store %arg4[%c0_485, %c0_486, %c4_487, %c0_488], %324 {strides = array<i32>} : memref<1x4x9x256xf32, #tpu.memory_space<vmem>>, vector<1x4x1x16xf32>,
    %c0_489 = arith.constant 0 : index
    %c0_490 = arith.constant 0 : index
    %c2_491 = arith.constant 2 : index
    %c1_492 = arith.constant 1 : index
    %325 = vector.load %arg3[%c0_489, %c0_490, %c2_491, %c1_492] : memref<1x4x18x18xf32, #tpu.memory_space<vmem>>, vector<1x4x1x16xf32>
    %326 = vector.shape_cast %325 : vector<1x4x1x16xf32> to vector<4x16xf32>
    %c0_493 = arith.constant 0 : index
    %c0_494 = arith.constant 0 : index
    %c4_495 = arith.constant 4 : index
    %c16_496 = arith.constant 16 : index
    %327 = vector.load %arg4[%c0_493, %c0_494, %c4_495, %c16_496] : memref<1x4x9x256xf32, #tpu.memory_space<vmem>>, vector<1x4x1x16xf32>
    %328 = vector.shape_cast %327 : vector<1x4x1x16xf32> to vector<4x16xf32>
    %329 = vector.shape_cast %326 : vector<4x16xf32> to vector<1x4x1x16xf32>
    tpu.vector_store %arg4[%c0_493, %c0_494, %c4_495, %c16_496], %329 {strides = array<i32>} : memref<1x4x9x256xf32, #tpu.memory_space<vmem>>, vector<1x4x1x16xf32>,
    %c0_497 = arith.constant 0 : index
    %c0_498 = arith.constant 0 : index
    %c3_499 = arith.constant 3 : index
    %c1_500 = arith.constant 1 : index
    %330 = vector.load %arg3[%c0_497, %c0_498, %c3_499, %c1_500] : memref<1x4x18x18xf32, #tpu.memory_space<vmem>>, vector<1x4x1x16xf32>
    %331 = vector.shape_cast %330 : vector<1x4x1x16xf32> to vector<4x16xf32>
    %c0_501 = arith.constant 0 : index
    %c0_502 = arith.constant 0 : index
    %c4_503 = arith.constant 4 : index
    %c32_504 = arith.constant 32 : index
    %332 = vector.load %arg4[%c0_501, %c0_502, %c4_503, %c32_504] : memref<1x4x9x256xf32, #tpu.memory_space<vmem>>, vector<1x4x1x16xf32>
    %333 = vector.shape_cast %332 : vector<1x4x1x16xf32> to vector<4x16xf32>
    %334 = vector.shape_cast %331 : vector<4x16xf32> to vector<1x4x1x16xf32>
    tpu.vector_store %arg4[%c0_501, %c0_502, %c4_503, %c32_504], %334 {strides = array<i32>} : memref<1x4x9x256xf32, #tpu.memory_space<vmem>>, vector<1x4x1x16xf32>,
    %c0_505 = arith.constant 0 : index
    %c0_506 = arith.constant 0 : index
    %c4_507 = arith.constant 4 : index
    %c1_508 = arith.constant 1 : index
    %335 = vector.load %arg3[%c0_505, %c0_506, %c4_507, %c1_508] : memref<1x4x18x18xf32, #tpu.memory_space<vmem>>, vector<1x4x1x16xf32>
    %336 = vector.shape_cast %335 : vector<1x4x1x16xf32> to vector<4x16xf32>
    %c0_509 = arith.constant 0 : index
    %c0_510 = arith.constant 0 : index
    %c4_511 = arith.constant 4 : index
    %c48_512 = arith.constant 48 : index
    %337 = vector.load %arg4[%c0_509, %c0_510, %c4_511, %c48_512] : memref<1x4x9x256xf32, #tpu.memory_space<vmem>>, vector<1x4x1x16xf32>
    %338 = vector.shape_cast %337 : vector<1x4x1x16xf32> to vector<4x16xf32>
    %339 = vector.shape_cast %336 : vector<4x16xf32> to vector<1x4x1x16xf32>
    tpu.vector_store %arg4[%c0_509, %c0_510, %c4_511, %c48_512], %339 {strides = array<i32>} : memref<1x4x9x256xf32, #tpu.memory_space<vmem>>, vector<1x4x1x16xf32>,
    %c0_513 = arith.constant 0 : index
    %c0_514 = arith.constant 0 : index
    %c5_515 = arith.constant 5 : index
    %c1_516 = arith.constant 1 : index
    %340 = vector.load %arg3[%c0_513, %c0_514, %c5_515, %c1_516] : memref<1x4x18x18xf32, #tpu.memory_space<vmem>>, vector<1x4x1x16xf32>
    %341 = vector.shape_cast %340 : vector<1x4x1x16xf32> to vector<4x16xf32>
    %c0_517 = arith.constant 0 : index
    %c0_518 = arith.constant 0 : index
    %c4_519 = arith.constant 4 : index
    %c64_520 = arith.constant 64 : index
    %342 = vector.load %arg4[%c0_517, %c0_518, %c4_519, %c64_520] : memref<1x4x9x256xf32, #tpu.memory_space<vmem>>, vector<1x4x1x16xf32>
    %343 = vector.shape_cast %342 : vector<1x4x1x16xf32> to vector<4x16xf32>
    %344 = vector.shape_cast %341 : vector<4x16xf32> to vector<1x4x1x16xf32>
    tpu.vector_store %arg4[%c0_517, %c0_518, %c4_519, %c64_520], %344 {strides = array<i32>} : memref<1x4x9x256xf32, #tpu.memory_space<vmem>>, vector<1x4x1x16xf32>,
    %c0_521 = arith.constant 0 : index
    %c0_522 = arith.constant 0 : index
    %c6_523 = arith.constant 6 : index
    %c1_524 = arith.constant 1 : index
    %345 = vector.load %arg3[%c0_521, %c0_522, %c6_523, %c1_524] : memref<1x4x18x18xf32, #tpu.memory_space<vmem>>, vector<1x4x1x16xf32>
    %346 = vector.shape_cast %345 : vector<1x4x1x16xf32> to vector<4x16xf32>
    %c0_525 = arith.constant 0 : index
    %c0_526 = arith.constant 0 : index
    %c4_527 = arith.constant 4 : index
    %c80_528 = arith.constant 80 : index
    %347 = vector.load %arg4[%c0_525, %c0_526, %c4_527, %c80_528] : memref<1x4x9x256xf32, #tpu.memory_space<vmem>>, vector<1x4x1x16xf32>
    %348 = vector.shape_cast %347 : vector<1x4x1x16xf32> to vector<4x16xf32>
    %349 = vector.shape_cast %346 : vector<4x16xf32> to vector<1x4x1x16xf32>
    tpu.vector_store %arg4[%c0_525, %c0_526, %c4_527, %c80_528], %349 {strides = array<i32>} : memref<1x4x9x256xf32, #tpu.memory_space<vmem>>, vector<1x4x1x16xf32>,
    %c0_529 = arith.constant 0 : index
    %c0_530 = arith.constant 0 : index
    %c7_531 = arith.constant 7 : index
    %c1_532 = arith.constant 1 : index
    %350 = vector.load %arg3[%c0_529, %c0_530, %c7_531, %c1_532] : memref<1x4x18x18xf32, #tpu.memory_space<vmem>>, vector<1x4x1x16xf32>
    %351 = vector.shape_cast %350 : vector<1x4x1x16xf32> to vector<4x16xf32>
    %c0_533 = arith.constant 0 : index
    %c0_534 = arith.constant 0 : index
    %c4_535 = arith.constant 4 : index
    %c96_536 = arith.constant 96 : index
    %352 = vector.load %arg4[%c0_533, %c0_534, %c4_535, %c96_536] : memref<1x4x9x256xf32, #tpu.memory_space<vmem>>, vector<1x4x1x16xf32>
    %353 = vector.shape_cast %352 : vector<1x4x1x16xf32> to vector<4x16xf32>
    %354 = vector.shape_cast %351 : vector<4x16xf32> to vector<1x4x1x16xf32>
    tpu.vector_store %arg4[%c0_533, %c0_534, %c4_535, %c96_536], %354 {strides = array<i32>} : memref<1x4x9x256xf32, #tpu.memory_space<vmem>>, vector<1x4x1x16xf32>,
    %c0_537 = arith.constant 0 : index
    %c0_538 = arith.constant 0 : index
    %c8_539 = arith.constant 8 : index
    %c1_540 = arith.constant 1 : index
    %355 = vector.load %arg3[%c0_537, %c0_538, %c8_539, %c1_540] : memref<1x4x18x18xf32, #tpu.memory_space<vmem>>, vector<1x4x1x16xf32>
    %356 = vector.shape_cast %355 : vector<1x4x1x16xf32> to vector<4x16xf32>
    %c0_541 = arith.constant 0 : index
    %c0_542 = arith.constant 0 : index
    %c4_543 = arith.constant 4 : index
    %c112_544 = arith.constant 112 : index
    %357 = vector.load %arg4[%c0_541, %c0_542, %c4_543, %c112_544] : memref<1x4x9x256xf32, #tpu.memory_space<vmem>>, vector<1x4x1x16xf32>
    %358 = vector.shape_cast %357 : vector<1x4x1x16xf32> to vector<4x16xf32>
    %359 = vector.shape_cast %356 : vector<4x16xf32> to vector<1x4x1x16xf32>
    tpu.vector_store %arg4[%c0_541, %c0_542, %c4_543, %c112_544], %359 {strides = array<i32>} : memref<1x4x9x256xf32, #tpu.memory_space<vmem>>, vector<1x4x1x16xf32>,
    %c0_545 = arith.constant 0 : index
    %c0_546 = arith.constant 0 : index
    %c9_547 = arith.constant 9 : index
    %c1_548 = arith.constant 1 : index
    %360 = vector.load %arg3[%c0_545, %c0_546, %c9_547, %c1_548] : memref<1x4x18x18xf32, #tpu.memory_space<vmem>>, vector<1x4x1x16xf32>
    %361 = vector.shape_cast %360 : vector<1x4x1x16xf32> to vector<4x16xf32>
    %c0_549 = arith.constant 0 : index
    %c0_550 = arith.constant 0 : index
    %c4_551 = arith.constant 4 : index
    %c128_552 = arith.constant 128 : index
    %362 = vector.load %arg4[%c0_549, %c0_550, %c4_551, %c128_552] : memref<1x4x9x256xf32, #tpu.memory_space<vmem>>, vector<1x4x1x16xf32>
    %363 = vector.shape_cast %362 : vector<1x4x1x16xf32> to vector<4x16xf32>
    %364 = vector.shape_cast %361 : vector<4x16xf32> to vector<1x4x1x16xf32>
    tpu.vector_store %arg4[%c0_549, %c0_550, %c4_551, %c128_552], %364 {strides = array<i32>} : memref<1x4x9x256xf32, #tpu.memory_space<vmem>>, vector<1x4x1x16xf32>,
    %c0_553 = arith.constant 0 : index
    %c0_554 = arith.constant 0 : index
    %c10_555 = arith.constant 10 : index
    %c1_556 = arith.constant 1 : index
    %365 = vector.load %arg3[%c0_553, %c0_554, %c10_555, %c1_556] : memref<1x4x18x18xf32, #tpu.memory_space<vmem>>, vector<1x4x1x16xf32>
    %366 = vector.shape_cast %365 : vector<1x4x1x16xf32> to vector<4x16xf32>
    %c0_557 = arith.constant 0 : index
    %c0_558 = arith.constant 0 : index
    %c4_559 = arith.constant 4 : index
    %c144_560 = arith.constant 144 : index
    %367 = vector.load %arg4[%c0_557, %c0_558, %c4_559, %c144_560] : memref<1x4x9x256xf32, #tpu.memory_space<vmem>>, vector<1x4x1x16xf32>
    %368 = vector.shape_cast %367 : vector<1x4x1x16xf32> to vector<4x16xf32>
    %369 = vector.shape_cast %366 : vector<4x16xf32> to vector<1x4x1x16xf32>
    tpu.vector_store %arg4[%c0_557, %c0_558, %c4_559, %c144_560], %369 {strides = array<i32>} : memref<1x4x9x256xf32, #tpu.memory_space<vmem>>, vector<1x4x1x16xf32>,
    %c0_561 = arith.constant 0 : index
    %c0_562 = arith.constant 0 : index
    %c11_563 = arith.constant 11 : index
    %c1_564 = arith.constant 1 : index
    %370 = vector.load %arg3[%c0_561, %c0_562, %c11_563, %c1_564] : memref<1x4x18x18xf32, #tpu.memory_space<vmem>>, vector<1x4x1x16xf32>
    %371 = vector.shape_cast %370 : vector<1x4x1x16xf32> to vector<4x16xf32>
    %c0_565 = arith.constant 0 : index
    %c0_566 = arith.constant 0 : index
    %c4_567 = arith.constant 4 : index
    %c160_568 = arith.constant 160 : index
    %372 = vector.load %arg4[%c0_565, %c0_566, %c4_567, %c160_568] : memref<1x4x9x256xf32, #tpu.memory_space<vmem>>, vector<1x4x1x16xf32>
    %373 = vector.shape_cast %372 : vector<1x4x1x16xf32> to vector<4x16xf32>
    %374 = vector.shape_cast %371 : vector<4x16xf32> to vector<1x4x1x16xf32>
    tpu.vector_store %arg4[%c0_565, %c0_566, %c4_567, %c160_568], %374 {strides = array<i32>} : memref<1x4x9x256xf32, #tpu.memory_space<vmem>>, vector<1x4x1x16xf32>,
    %c0_569 = arith.constant 0 : index
    %c0_570 = arith.constant 0 : index
    %c12_571 = arith.constant 12 : index
    %c1_572 = arith.constant 1 : index
    %375 = vector.load %arg3[%c0_569, %c0_570, %c12_571, %c1_572] : memref<1x4x18x18xf32, #tpu.memory_space<vmem>>, vector<1x4x1x16xf32>
    %376 = vector.shape_cast %375 : vector<1x4x1x16xf32> to vector<4x16xf32>
    %c0_573 = arith.constant 0 : index
    %c0_574 = arith.constant 0 : index
    %c4_575 = arith.constant 4 : index
    %c176_576 = arith.constant 176 : index
    %377 = vector.load %arg4[%c0_573, %c0_574, %c4_575, %c176_576] : memref<1x4x9x256xf32, #tpu.memory_space<vmem>>, vector<1x4x1x16xf32>
    %378 = vector.shape_cast %377 : vector<1x4x1x16xf32> to vector<4x16xf32>
    %379 = vector.shape_cast %376 : vector<4x16xf32> to vector<1x4x1x16xf32>
    tpu.vector_store %arg4[%c0_573, %c0_574, %c4_575, %c176_576], %379 {strides = array<i32>} : memref<1x4x9x256xf32, #tpu.memory_space<vmem>>, vector<1x4x1x16xf32>,
    %c0_577 = arith.constant 0 : index
    %c0_578 = arith.constant 0 : index
    %c13_579 = arith.constant 13 : index
    %c1_580 = arith.constant 1 : index
    %380 = vector.load %arg3[%c0_577, %c0_578, %c13_579, %c1_580] : memref<1x4x18x18xf32, #tpu.memory_space<vmem>>, vector<1x4x1x16xf32>
    %381 = vector.shape_cast %380 : vector<1x4x1x16xf32> to vector<4x16xf32>
    %c0_581 = arith.constant 0 : index
    %c0_582 = arith.constant 0 : index
    %c4_583 = arith.constant 4 : index
    %c192_584 = arith.constant 192 : index
    %382 = vector.load %arg4[%c0_581, %c0_582, %c4_583, %c192_584] : memref<1x4x9x256xf32, #tpu.memory_space<vmem>>, vector<1x4x1x16xf32>
    %383 = vector.shape_cast %382 : vector<1x4x1x16xf32> to vector<4x16xf32>
    %384 = vector.shape_cast %381 : vector<4x16xf32> to vector<1x4x1x16xf32>
    tpu.vector_store %arg4[%c0_581, %c0_582, %c4_583, %c192_584], %384 {strides = array<i32>} : memref<1x4x9x256xf32, #tpu.memory_space<vmem>>, vector<1x4x1x16xf32>,
    %c0_585 = arith.constant 0 : index
    %c0_586 = arith.constant 0 : index
    %c14_587 = arith.constant 14 : index
    %c1_588 = arith.constant 1 : index
    %385 = vector.load %arg3[%c0_585, %c0_586, %c14_587, %c1_588] : memref<1x4x18x18xf32, #tpu.memory_space<vmem>>, vector<1x4x1x16xf32>
    %386 = vector.shape_cast %385 : vector<1x4x1x16xf32> to vector<4x16xf32>
    %c0_589 = arith.constant 0 : index
    %c0_590 = arith.constant 0 : index
    %c4_591 = arith.constant 4 : index
    %c208_592 = arith.constant 208 : index
    %387 = vector.load %arg4[%c0_589, %c0_590, %c4_591, %c208_592] : memref<1x4x9x256xf32, #tpu.memory_space<vmem>>, vector<1x4x1x16xf32>
    %388 = vector.shape_cast %387 : vector<1x4x1x16xf32> to vector<4x16xf32>
    %389 = vector.shape_cast %386 : vector<4x16xf32> to vector<1x4x1x16xf32>
    tpu.vector_store %arg4[%c0_589, %c0_590, %c4_591, %c208_592], %389 {strides = array<i32>} : memref<1x4x9x256xf32, #tpu.memory_space<vmem>>, vector<1x4x1x16xf32>,
    %c0_593 = arith.constant 0 : index
    %c0_594 = arith.constant 0 : index
    %c15_595 = arith.constant 15 : index
    %c1_596 = arith.constant 1 : index
    %390 = vector.load %arg3[%c0_593, %c0_594, %c15_595, %c1_596] : memref<1x4x18x18xf32, #tpu.memory_space<vmem>>, vector<1x4x1x16xf32>
    %391 = vector.shape_cast %390 : vector<1x4x1x16xf32> to vector<4x16xf32>
    %c0_597 = arith.constant 0 : index
    %c0_598 = arith.constant 0 : index
    %c4_599 = arith.constant 4 : index
    %c224_600 = arith.constant 224 : index
    %392 = vector.load %arg4[%c0_597, %c0_598, %c4_599, %c224_600] : memref<1x4x9x256xf32, #tpu.memory_space<vmem>>, vector<1x4x1x16xf32>
    %393 = vector.shape_cast %392 : vector<1x4x1x16xf32> to vector<4x16xf32>
    %394 = vector.shape_cast %391 : vector<4x16xf32> to vector<1x4x1x16xf32>
    tpu.vector_store %arg4[%c0_597, %c0_598, %c4_599, %c224_600], %394 {strides = array<i32>} : memref<1x4x9x256xf32, #tpu.memory_space<vmem>>, vector<1x4x1x16xf32>,
    %c0_601 = arith.constant 0 : index
    %c0_602 = arith.constant 0 : index
    %c16_603 = arith.constant 16 : index
    %c1_604 = arith.constant 1 : index
    %395 = vector.load %arg3[%c0_601, %c0_602, %c16_603, %c1_604] : memref<1x4x18x18xf32, #tpu.memory_space<vmem>>, vector<1x4x1x16xf32>
    %396 = vector.shape_cast %395 : vector<1x4x1x16xf32> to vector<4x16xf32>
    %c0_605 = arith.constant 0 : index
    %c0_606 = arith.constant 0 : index
    %c4_607 = arith.constant 4 : index
    %c240_608 = arith.constant 240 : index
    %397 = vector.load %arg4[%c0_605, %c0_606, %c4_607, %c240_608] : memref<1x4x9x256xf32, #tpu.memory_space<vmem>>, vector<1x4x1x16xf32>
    %398 = vector.shape_cast %397 : vector<1x4x1x16xf32> to vector<4x16xf32>
    %399 = vector.shape_cast %396 : vector<4x16xf32> to vector<1x4x1x16xf32>
    tpu.vector_store %arg4[%c0_605, %c0_606, %c4_607, %c240_608], %399 {strides = array<i32>} : memref<1x4x9x256xf32, #tpu.memory_space<vmem>>, vector<1x4x1x16xf32>,
    %c0_609 = arith.constant 0 : index
    %c0_610 = arith.constant 0 : index
    %c1_611 = arith.constant 1 : index
    %c2_612 = arith.constant 2 : index
    %400 = vector.load %arg3[%c0_609, %c0_610, %c1_611, %c2_612] : memref<1x4x18x18xf32, #tpu.memory_space<vmem>>, vector<1x4x1x16xf32>
    %401 = vector.shape_cast %400 : vector<1x4x1x16xf32> to vector<4x16xf32>
    %c0_613 = arith.constant 0 : index
    %c0_614 = arith.constant 0 : index
    %c5_615 = arith.constant 5 : index
    %c0_616 = arith.constant 0 : index
    %402 = vector.load %arg4[%c0_613, %c0_614, %c5_615, %c0_616] : memref<1x4x9x256xf32, #tpu.memory_space<vmem>>, vector<1x4x1x16xf32>
    %403 = vector.shape_cast %402 : vector<1x4x1x16xf32> to vector<4x16xf32>
    %404 = vector.shape_cast %401 : vector<4x16xf32> to vector<1x4x1x16xf32>
    tpu.vector_store %arg4[%c0_613, %c0_614, %c5_615, %c0_616], %404 {strides = array<i32>} : memref<1x4x9x256xf32, #tpu.memory_space<vmem>>, vector<1x4x1x16xf32>,
    %c0_617 = arith.constant 0 : index
    %c0_618 = arith.constant 0 : index
    %c2_619 = arith.constant 2 : index
    %c2_620 = arith.constant 2 : index
    %405 = vector.load %arg3[%c0_617, %c0_618, %c2_619, %c2_620] : memref<1x4x18x18xf32, #tpu.memory_space<vmem>>, vector<1x4x1x16xf32>
    %406 = vector.shape_cast %405 : vector<1x4x1x16xf32> to vector<4x16xf32>
    %c0_621 = arith.constant 0 : index
    %c0_622 = arith.constant 0 : index
    %c5_623 = arith.constant 5 : index
    %c16_624 = arith.constant 16 : index
    %407 = vector.load %arg4[%c0_621, %c0_622, %c5_623, %c16_624] : memref<1x4x9x256xf32, #tpu.memory_space<vmem>>, vector<1x4x1x16xf32>
    %408 = vector.shape_cast %407 : vector<1x4x1x16xf32> to vector<4x16xf32>
    %409 = vector.shape_cast %406 : vector<4x16xf32> to vector<1x4x1x16xf32>
    tpu.vector_store %arg4[%c0_621, %c0_622, %c5_623, %c16_624], %409 {strides = array<i32>} : memref<1x4x9x256xf32, #tpu.memory_space<vmem>>, vector<1x4x1x16xf32>,
    %c0_625 = arith.constant 0 : index
    %c0_626 = arith.constant 0 : index
    %c3_627 = arith.constant 3 : index
    %c2_628 = arith.constant 2 : index
    %410 = vector.load %arg3[%c0_625, %c0_626, %c3_627, %c2_628] : memref<1x4x18x18xf32, #tpu.memory_space<vmem>>, vector<1x4x1x16xf32>
    %411 = vector.shape_cast %410 : vector<1x4x1x16xf32> to vector<4x16xf32>
    %c0_629 = arith.constant 0 : index
    %c0_630 = arith.constant 0 : index
    %c5_631 = arith.constant 5 : index
    %c32_632 = arith.constant 32 : index
    %412 = vector.load %arg4[%c0_629, %c0_630, %c5_631, %c32_632] : memref<1x4x9x256xf32, #tpu.memory_space<vmem>>, vector<1x4x1x16xf32>
    %413 = vector.shape_cast %412 : vector<1x4x1x16xf32> to vector<4x16xf32>
    %414 = vector.shape_cast %411 : vector<4x16xf32> to vector<1x4x1x16xf32>
    tpu.vector_store %arg4[%c0_629, %c0_630, %c5_631, %c32_632], %414 {strides = array<i32>} : memref<1x4x9x256xf32, #tpu.memory_space<vmem>>, vector<1x4x1x16xf32>,
    %c0_633 = arith.constant 0 : index
    %c0_634 = arith.constant 0 : index
    %c4_635 = arith.constant 4 : index
    %c2_636 = arith.constant 2 : index
    %415 = vector.load %arg3[%c0_633, %c0_634, %c4_635, %c2_636] : memref<1x4x18x18xf32, #tpu.memory_space<vmem>>, vector<1x4x1x16xf32>
    %416 = vector.shape_cast %415 : vector<1x4x1x16xf32> to vector<4x16xf32>
    %c0_637 = arith.constant 0 : index
    %c0_638 = arith.constant 0 : index
    %c5_639 = arith.constant 5 : index
    %c48_640 = arith.constant 48 : index
    %417 = vector.load %arg4[%c0_637, %c0_638, %c5_639, %c48_640] : memref<1x4x9x256xf32, #tpu.memory_space<vmem>>, vector<1x4x1x16xf32>
    %418 = vector.shape_cast %417 : vector<1x4x1x16xf32> to vector<4x16xf32>
    %419 = vector.shape_cast %416 : vector<4x16xf32> to vector<1x4x1x16xf32>
    tpu.vector_store %arg4[%c0_637, %c0_638, %c5_639, %c48_640], %419 {strides = array<i32>} : memref<1x4x9x256xf32, #tpu.memory_space<vmem>>, vector<1x4x1x16xf32>,
    %c0_641 = arith.constant 0 : index
    %c0_642 = arith.constant 0 : index
    %c5_643 = arith.constant 5 : index
    %c2_644 = arith.constant 2 : index
    %420 = vector.load %arg3[%c0_641, %c0_642, %c5_643, %c2_644] : memref<1x4x18x18xf32, #tpu.memory_space<vmem>>, vector<1x4x1x16xf32>
    %421 = vector.shape_cast %420 : vector<1x4x1x16xf32> to vector<4x16xf32>
    %c0_645 = arith.constant 0 : index
    %c0_646 = arith.constant 0 : index
    %c5_647 = arith.constant 5 : index
    %c64_648 = arith.constant 64 : index
    %422 = vector.load %arg4[%c0_645, %c0_646, %c5_647, %c64_648] : memref<1x4x9x256xf32, #tpu.memory_space<vmem>>, vector<1x4x1x16xf32>
    %423 = vector.shape_cast %422 : vector<1x4x1x16xf32> to vector<4x16xf32>
    %424 = vector.shape_cast %421 : vector<4x16xf32> to vector<1x4x1x16xf32>
    tpu.vector_store %arg4[%c0_645, %c0_646, %c5_647, %c64_648], %424 {strides = array<i32>} : memref<1x4x9x256xf32, #tpu.memory_space<vmem>>, vector<1x4x1x16xf32>,
    %c0_649 = arith.constant 0 : index
    %c0_650 = arith.constant 0 : index
    %c6_651 = arith.constant 6 : index
    %c2_652 = arith.constant 2 : index
    %425 = vector.load %arg3[%c0_649, %c0_650, %c6_651, %c2_652] : memref<1x4x18x18xf32, #tpu.memory_space<vmem>>, vector<1x4x1x16xf32>
    %426 = vector.shape_cast %425 : vector<1x4x1x16xf32> to vector<4x16xf32>
    %c0_653 = arith.constant 0 : index
    %c0_654 = arith.constant 0 : index
    %c5_655 = arith.constant 5 : index
    %c80_656 = arith.constant 80 : index
    %427 = vector.load %arg4[%c0_653, %c0_654, %c5_655, %c80_656] : memref<1x4x9x256xf32, #tpu.memory_space<vmem>>, vector<1x4x1x16xf32>
    %428 = vector.shape_cast %427 : vector<1x4x1x16xf32> to vector<4x16xf32>
    %429 = vector.shape_cast %426 : vector<4x16xf32> to vector<1x4x1x16xf32>
    tpu.vector_store %arg4[%c0_653, %c0_654, %c5_655, %c80_656], %429 {strides = array<i32>} : memref<1x4x9x256xf32, #tpu.memory_space<vmem>>, vector<1x4x1x16xf32>,
    %c0_657 = arith.constant 0 : index
    %c0_658 = arith.constant 0 : index
    %c7_659 = arith.constant 7 : index
    %c2_660 = arith.constant 2 : index
    %430 = vector.load %arg3[%c0_657, %c0_658, %c7_659, %c2_660] : memref<1x4x18x18xf32, #tpu.memory_space<vmem>>, vector<1x4x1x16xf32>
    %431 = vector.shape_cast %430 : vector<1x4x1x16xf32> to vector<4x16xf32>
    %c0_661 = arith.constant 0 : index
    %c0_662 = arith.constant 0 : index
    %c5_663 = arith.constant 5 : index
    %c96_664 = arith.constant 96 : index
    %432 = vector.load %arg4[%c0_661, %c0_662, %c5_663, %c96_664] : memref<1x4x9x256xf32, #tpu.memory_space<vmem>>, vector<1x4x1x16xf32>
    %433 = vector.shape_cast %432 : vector<1x4x1x16xf32> to vector<4x16xf32>
    %434 = vector.shape_cast %431 : vector<4x16xf32> to vector<1x4x1x16xf32>
    tpu.vector_store %arg4[%c0_661, %c0_662, %c5_663, %c96_664], %434 {strides = array<i32>} : memref<1x4x9x256xf32, #tpu.memory_space<vmem>>, vector<1x4x1x16xf32>,
    %c0_665 = arith.constant 0 : index
    %c0_666 = arith.constant 0 : index
    %c8_667 = arith.constant 8 : index
    %c2_668 = arith.constant 2 : index
    %435 = vector.load %arg3[%c0_665, %c0_666, %c8_667, %c2_668] : memref<1x4x18x18xf32, #tpu.memory_space<vmem>>, vector<1x4x1x16xf32>
    %436 = vector.shape_cast %435 : vector<1x4x1x16xf32> to vector<4x16xf32>
    %c0_669 = arith.constant 0 : index
    %c0_670 = arith.constant 0 : index
    %c5_671 = arith.constant 5 : index
    %c112_672 = arith.constant 112 : index
    %437 = vector.load %arg4[%c0_669, %c0_670, %c5_671, %c112_672] : memref<1x4x9x256xf32, #tpu.memory_space<vmem>>, vector<1x4x1x16xf32>
    %438 = vector.shape_cast %437 : vector<1x4x1x16xf32> to vector<4x16xf32>
    %439 = vector.shape_cast %436 : vector<4x16xf32> to vector<1x4x1x16xf32>
    tpu.vector_store %arg4[%c0_669, %c0_670, %c5_671, %c112_672], %439 {strides = array<i32>} : memref<1x4x9x256xf32, #tpu.memory_space<vmem>>, vector<1x4x1x16xf32>,
    %c0_673 = arith.constant 0 : index
    %c0_674 = arith.constant 0 : index
    %c9_675 = arith.constant 9 : index
    %c2_676 = arith.constant 2 : index
    %440 = vector.load %arg3[%c0_673, %c0_674, %c9_675, %c2_676] : memref<1x4x18x18xf32, #tpu.memory_space<vmem>>, vector<1x4x1x16xf32>
    %441 = vector.shape_cast %440 : vector<1x4x1x16xf32> to vector<4x16xf32>
    %c0_677 = arith.constant 0 : index
    %c0_678 = arith.constant 0 : index
    %c5_679 = arith.constant 5 : index
    %c128_680 = arith.constant 128 : index
    %442 = vector.load %arg4[%c0_677, %c0_678, %c5_679, %c128_680] : memref<1x4x9x256xf32, #tpu.memory_space<vmem>>, vector<1x4x1x16xf32>
    %443 = vector.shape_cast %442 : vector<1x4x1x16xf32> to vector<4x16xf32>
    %444 = vector.shape_cast %441 : vector<4x16xf32> to vector<1x4x1x16xf32>
    tpu.vector_store %arg4[%c0_677, %c0_678, %c5_679, %c128_680], %444 {strides = array<i32>} : memref<1x4x9x256xf32, #tpu.memory_space<vmem>>, vector<1x4x1x16xf32>,
    %c0_681 = arith.constant 0 : index
    %c0_682 = arith.constant 0 : index
    %c10_683 = arith.constant 10 : index
    %c2_684 = arith.constant 2 : index
    %445 = vector.load %arg3[%c0_681, %c0_682, %c10_683, %c2_684] : memref<1x4x18x18xf32, #tpu.memory_space<vmem>>, vector<1x4x1x16xf32>
    %446 = vector.shape_cast %445 : vector<1x4x1x16xf32> to vector<4x16xf32>
    %c0_685 = arith.constant 0 : index
    %c0_686 = arith.constant 0 : index
    %c5_687 = arith.constant 5 : index
    %c144_688 = arith.constant 144 : index
    %447 = vector.load %arg4[%c0_685, %c0_686, %c5_687, %c144_688] : memref<1x4x9x256xf32, #tpu.memory_space<vmem>>, vector<1x4x1x16xf32>
    %448 = vector.shape_cast %447 : vector<1x4x1x16xf32> to vector<4x16xf32>
    %449 = vector.shape_cast %446 : vector<4x16xf32> to vector<1x4x1x16xf32>
    tpu.vector_store %arg4[%c0_685, %c0_686, %c5_687, %c144_688], %449 {strides = array<i32>} : memref<1x4x9x256xf32, #tpu.memory_space<vmem>>, vector<1x4x1x16xf32>,
    %c0_689 = arith.constant 0 : index
    %c0_690 = arith.constant 0 : index
    %c11_691 = arith.constant 11 : index
    %c2_692 = arith.constant 2 : index
    %450 = vector.load %arg3[%c0_689, %c0_690, %c11_691, %c2_692] : memref<1x4x18x18xf32, #tpu.memory_space<vmem>>, vector<1x4x1x16xf32>
    %451 = vector.shape_cast %450 : vector<1x4x1x16xf32> to vector<4x16xf32>
    %c0_693 = arith.constant 0 : index
    %c0_694 = arith.constant 0 : index
    %c5_695 = arith.constant 5 : index
    %c160_696 = arith.constant 160 : index
    %452 = vector.load %arg4[%c0_693, %c0_694, %c5_695, %c160_696] : memref<1x4x9x256xf32, #tpu.memory_space<vmem>>, vector<1x4x1x16xf32>
    %453 = vector.shape_cast %452 : vector<1x4x1x16xf32> to vector<4x16xf32>
    %454 = vector.shape_cast %451 : vector<4x16xf32> to vector<1x4x1x16xf32>
    tpu.vector_store %arg4[%c0_693, %c0_694, %c5_695, %c160_696], %454 {strides = array<i32>} : memref<1x4x9x256xf32, #tpu.memory_space<vmem>>, vector<1x4x1x16xf32>,
    %c0_697 = arith.constant 0 : index
    %c0_698 = arith.constant 0 : index
    %c12_699 = arith.constant 12 : index
    %c2_700 = arith.constant 2 : index
    %455 = vector.load %arg3[%c0_697, %c0_698, %c12_699, %c2_700] : memref<1x4x18x18xf32, #tpu.memory_space<vmem>>, vector<1x4x1x16xf32>
    %456 = vector.shape_cast %455 : vector<1x4x1x16xf32> to vector<4x16xf32>
    %c0_701 = arith.constant 0 : index
    %c0_702 = arith.constant 0 : index
    %c5_703 = arith.constant 5 : index
    %c176_704 = arith.constant 176 : index
    %457 = vector.load %arg4[%c0_701, %c0_702, %c5_703, %c176_704] : memref<1x4x9x256xf32, #tpu.memory_space<vmem>>, vector<1x4x1x16xf32>
    %458 = vector.shape_cast %457 : vector<1x4x1x16xf32> to vector<4x16xf32>
    %459 = vector.shape_cast %456 : vector<4x16xf32> to vector<1x4x1x16xf32>
    tpu.vector_store %arg4[%c0_701, %c0_702, %c5_703, %c176_704], %459 {strides = array<i32>} : memref<1x4x9x256xf32, #tpu.memory_space<vmem>>, vector<1x4x1x16xf32>,
    %c0_705 = arith.constant 0 : index
    %c0_706 = arith.constant 0 : index
    %c13_707 = arith.constant 13 : index
    %c2_708 = arith.constant 2 : index
    %460 = vector.load %arg3[%c0_705, %c0_706, %c13_707, %c2_708] : memref<1x4x18x18xf32, #tpu.memory_space<vmem>>, vector<1x4x1x16xf32>
    %461 = vector.shape_cast %460 : vector<1x4x1x16xf32> to vector<4x16xf32>
    %c0_709 = arith.constant 0 : index
    %c0_710 = arith.constant 0 : index
    %c5_711 = arith.constant 5 : index
    %c192_712 = arith.constant 192 : index
    %462 = vector.load %arg4[%c0_709, %c0_710, %c5_711, %c192_712] : memref<1x4x9x256xf32, #tpu.memory_space<vmem>>, vector<1x4x1x16xf32>
    %463 = vector.shape_cast %462 : vector<1x4x1x16xf32> to vector<4x16xf32>
    %464 = vector.shape_cast %461 : vector<4x16xf32> to vector<1x4x1x16xf32>
    tpu.vector_store %arg4[%c0_709, %c0_710, %c5_711, %c192_712], %464 {strides = array<i32>} : memref<1x4x9x256xf32, #tpu.memory_space<vmem>>, vector<1x4x1x16xf32>,
    %c0_713 = arith.constant 0 : index
    %c0_714 = arith.constant 0 : index
    %c14_715 = arith.constant 14 : index
    %c2_716 = arith.constant 2 : index
    %465 = vector.load %arg3[%c0_713, %c0_714, %c14_715, %c2_716] : memref<1x4x18x18xf32, #tpu.memory_space<vmem>>, vector<1x4x1x16xf32>
    %466 = vector.shape_cast %465 : vector<1x4x1x16xf32> to vector<4x16xf32>
    %c0_717 = arith.constant 0 : index
    %c0_718 = arith.constant 0 : index
    %c5_719 = arith.constant 5 : index
    %c208_720 = arith.constant 208 : index
    %467 = vector.load %arg4[%c0_717, %c0_718, %c5_719, %c208_720] : memref<1x4x9x256xf32, #tpu.memory_space<vmem>>, vector<1x4x1x16xf32>
    %468 = vector.shape_cast %467 : vector<1x4x1x16xf32> to vector<4x16xf32>
    %469 = vector.shape_cast %466 : vector<4x16xf32> to vector<1x4x1x16xf32>
    tpu.vector_store %arg4[%c0_717, %c0_718, %c5_719, %c208_720], %469 {strides = array<i32>} : memref<1x4x9x256xf32, #tpu.memory_space<vmem>>, vector<1x4x1x16xf32>,
    %c0_721 = arith.constant 0 : index
    %c0_722 = arith.constant 0 : index
    %c15_723 = arith.constant 15 : index
    %c2_724 = arith.constant 2 : index
    %470 = vector.load %arg3[%c0_721, %c0_722, %c15_723, %c2_724] : memref<1x4x18x18xf32, #tpu.memory_space<vmem>>, vector<1x4x1x16xf32>
    %471 = vector.shape_cast %470 : vector<1x4x1x16xf32> to vector<4x16xf32>
    %c0_725 = arith.constant 0 : index
    %c0_726 = arith.constant 0 : index
    %c5_727 = arith.constant 5 : index
    %c224_728 = arith.constant 224 : index
    %472 = vector.load %arg4[%c0_725, %c0_726, %c5_727, %c224_728] : memref<1x4x9x256xf32, #tpu.memory_space<vmem>>, vector<1x4x1x16xf32>
    %473 = vector.shape_cast %472 : vector<1x4x1x16xf32> to vector<4x16xf32>
    %474 = vector.shape_cast %471 : vector<4x16xf32> to vector<1x4x1x16xf32>
    tpu.vector_store %arg4[%c0_725, %c0_726, %c5_727, %c224_728], %474 {strides = array<i32>} : memref<1x4x9x256xf32, #tpu.memory_space<vmem>>, vector<1x4x1x16xf32>,
    %c0_729 = arith.constant 0 : index
    %c0_730 = arith.constant 0 : index
    %c16_731 = arith.constant 16 : index
    %c2_732 = arith.constant 2 : index
    %475 = vector.load %arg3[%c0_729, %c0_730, %c16_731, %c2_732] : memref<1x4x18x18xf32, #tpu.memory_space<vmem>>, vector<1x4x1x16xf32>
    %476 = vector.shape_cast %475 : vector<1x4x1x16xf32> to vector<4x16xf32>
    %c0_733 = arith.constant 0 : index
    %c0_734 = arith.constant 0 : index
    %c5_735 = arith.constant 5 : index
    %c240_736 = arith.constant 240 : index
    %477 = vector.load %arg4[%c0_733, %c0_734, %c5_735, %c240_736] : memref<1x4x9x256xf32, #tpu.memory_space<vmem>>, vector<1x4x1x16xf32>
    %478 = vector.shape_cast %477 : vector<1x4x1x16xf32> to vector<4x16xf32>
    %479 = vector.shape_cast %476 : vector<4x16xf32> to vector<1x4x1x16xf32>
    tpu.vector_store %arg4[%c0_733, %c0_734, %c5_735, %c240_736], %479 {strides = array<i32>} : memref<1x4x9x256xf32, #tpu.memory_space<vmem>>, vector<1x4x1x16xf32>,
    %c0_737 = arith.constant 0 : index
    %c0_738 = arith.constant 0 : index
    %c2_739 = arith.constant 2 : index
    %c0_740 = arith.constant 0 : index
    %480 = vector.load %arg3[%c0_737, %c0_738, %c2_739, %c0_740] : memref<1x4x18x18xf32, #tpu.memory_space<vmem>>, vector<1x4x1x16xf32>
    %481 = vector.shape_cast %480 : vector<1x4x1x16xf32> to vector<4x16xf32>
    %c0_741 = arith.constant 0 : index
    %c0_742 = arith.constant 0 : index
    %c6_743 = arith.constant 6 : index
    %c0_744 = arith.constant 0 : index
    %482 = vector.load %arg4[%c0_741, %c0_742, %c6_743, %c0_744] : memref<1x4x9x256xf32, #tpu.memory_space<vmem>>, vector<1x4x1x16xf32>
    %483 = vector.shape_cast %482 : vector<1x4x1x16xf32> to vector<4x16xf32>
    %484 = vector.shape_cast %481 : vector<4x16xf32> to vector<1x4x1x16xf32>
    tpu.vector_store %arg4[%c0_741, %c0_742, %c6_743, %c0_744], %484 {strides = array<i32>} : memref<1x4x9x256xf32, #tpu.memory_space<vmem>>, vector<1x4x1x16xf32>,
    %c0_745 = arith.constant 0 : index
    %c0_746 = arith.constant 0 : index
    %c3_747 = arith.constant 3 : index
    %c0_748 = arith.constant 0 : index
    %485 = vector.load %arg3[%c0_745, %c0_746, %c3_747, %c0_748] : memref<1x4x18x18xf32, #tpu.memory_space<vmem>>, vector<1x4x1x16xf32>
    %486 = vector.shape_cast %485 : vector<1x4x1x16xf32> to vector<4x16xf32>
    %c0_749 = arith.constant 0 : index
    %c0_750 = arith.constant 0 : index
    %c6_751 = arith.constant 6 : index
    %c16_752 = arith.constant 16 : index
    %487 = vector.load %arg4[%c0_749, %c0_750, %c6_751, %c16_752] : memref<1x4x9x256xf32, #tpu.memory_space<vmem>>, vector<1x4x1x16xf32>
    %488 = vector.shape_cast %487 : vector<1x4x1x16xf32> to vector<4x16xf32>
    %489 = vector.shape_cast %486 : vector<4x16xf32> to vector<1x4x1x16xf32>
    tpu.vector_store %arg4[%c0_749, %c0_750, %c6_751, %c16_752], %489 {strides = array<i32>} : memref<1x4x9x256xf32, #tpu.memory_space<vmem>>, vector<1x4x1x16xf32>,
    %c0_753 = arith.constant 0 : index
    %c0_754 = arith.constant 0 : index
    %c4_755 = arith.constant 4 : index
    %c0_756 = arith.constant 0 : index
    %490 = vector.load %arg3[%c0_753, %c0_754, %c4_755, %c0_756] : memref<1x4x18x18xf32, #tpu.memory_space<vmem>>, vector<1x4x1x16xf32>
    %491 = vector.shape_cast %490 : vector<1x4x1x16xf32> to vector<4x16xf32>
    %c0_757 = arith.constant 0 : index
    %c0_758 = arith.constant 0 : index
    %c6_759 = arith.constant 6 : index
    %c32_760 = arith.constant 32 : index
    %492 = vector.load %arg4[%c0_757, %c0_758, %c6_759, %c32_760] : memref<1x4x9x256xf32, #tpu.memory_space<vmem>>, vector<1x4x1x16xf32>
    %493 = vector.shape_cast %492 : vector<1x4x1x16xf32> to vector<4x16xf32>
    %494 = vector.shape_cast %491 : vector<4x16xf32> to vector<1x4x1x16xf32>
    tpu.vector_store %arg4[%c0_757, %c0_758, %c6_759, %c32_760], %494 {strides = array<i32>} : memref<1x4x9x256xf32, #tpu.memory_space<vmem>>, vector<1x4x1x16xf32>,
    %c0_761 = arith.constant 0 : index
    %c0_762 = arith.constant 0 : index
    %c5_763 = arith.constant 5 : index
    %c0_764 = arith.constant 0 : index
    %495 = vector.load %arg3[%c0_761, %c0_762, %c5_763, %c0_764] : memref<1x4x18x18xf32, #tpu.memory_space<vmem>>, vector<1x4x1x16xf32>
    %496 = vector.shape_cast %495 : vector<1x4x1x16xf32> to vector<4x16xf32>
    %c0_765 = arith.constant 0 : index
    %c0_766 = arith.constant 0 : index
    %c6_767 = arith.constant 6 : index
    %c48_768 = arith.constant 48 : index
    %497 = vector.load %arg4[%c0_765, %c0_766, %c6_767, %c48_768] : memref<1x4x9x256xf32, #tpu.memory_space<vmem>>, vector<1x4x1x16xf32>
    %498 = vector.shape_cast %497 : vector<1x4x1x16xf32> to vector<4x16xf32>
    %499 = vector.shape_cast %496 : vector<4x16xf32> to vector<1x4x1x16xf32>
    tpu.vector_store %arg4[%c0_765, %c0_766, %c6_767, %c48_768], %499 {strides = array<i32>} : memref<1x4x9x256xf32, #tpu.memory_space<vmem>>, vector<1x4x1x16xf32>,
    %c0_769 = arith.constant 0 : index
    %c0_770 = arith.constant 0 : index
    %c6_771 = arith.constant 6 : index
    %c0_772 = arith.constant 0 : index
    %500 = vector.load %arg3[%c0_769, %c0_770, %c6_771, %c0_772] : memref<1x4x18x18xf32, #tpu.memory_space<vmem>>, vector<1x4x1x16xf32>
    %501 = vector.shape_cast %500 : vector<1x4x1x16xf32> to vector<4x16xf32>
    %c0_773 = arith.constant 0 : index
    %c0_774 = arith.constant 0 : index
    %c6_775 = arith.constant 6 : index
    %c64_776 = arith.constant 64 : index
    %502 = vector.load %arg4[%c0_773, %c0_774, %c6_775, %c64_776] : memref<1x4x9x256xf32, #tpu.memory_space<vmem>>, vector<1x4x1x16xf32>
    %503 = vector.shape_cast %502 : vector<1x4x1x16xf32> to vector<4x16xf32>
    %504 = vector.shape_cast %501 : vector<4x16xf32> to vector<1x4x1x16xf32>
    tpu.vector_store %arg4[%c0_773, %c0_774, %c6_775, %c64_776], %504 {strides = array<i32>} : memref<1x4x9x256xf32, #tpu.memory_space<vmem>>, vector<1x4x1x16xf32>,
    %c0_777 = arith.constant 0 : index
    %c0_778 = arith.constant 0 : index
    %c7_779 = arith.constant 7 : index
    %c0_780 = arith.constant 0 : index
    %505 = vector.load %arg3[%c0_777, %c0_778, %c7_779, %c0_780] : memref<1x4x18x18xf32, #tpu.memory_space<vmem>>, vector<1x4x1x16xf32>
    %506 = vector.shape_cast %505 : vector<1x4x1x16xf32> to vector<4x16xf32>
    %c0_781 = arith.constant 0 : index
    %c0_782 = arith.constant 0 : index
    %c6_783 = arith.constant 6 : index
    %c80_784 = arith.constant 80 : index
    %507 = vector.load %arg4[%c0_781, %c0_782, %c6_783, %c80_784] : memref<1x4x9x256xf32, #tpu.memory_space<vmem>>, vector<1x4x1x16xf32>
    %508 = vector.shape_cast %507 : vector<1x4x1x16xf32> to vector<4x16xf32>
    %509 = vector.shape_cast %506 : vector<4x16xf32> to vector<1x4x1x16xf32>
    tpu.vector_store %arg4[%c0_781, %c0_782, %c6_783, %c80_784], %509 {strides = array<i32>} : memref<1x4x9x256xf32, #tpu.memory_space<vmem>>, vector<1x4x1x16xf32>,
    %c0_785 = arith.constant 0 : index
    %c0_786 = arith.constant 0 : index
    %c8_787 = arith.constant 8 : index
    %c0_788 = arith.constant 0 : index
    %510 = vector.load %arg3[%c0_785, %c0_786, %c8_787, %c0_788] : memref<1x4x18x18xf32, #tpu.memory_space<vmem>>, vector<1x4x1x16xf32>
    %511 = vector.shape_cast %510 : vector<1x4x1x16xf32> to vector<4x16xf32>
    %c0_789 = arith.constant 0 : index
    %c0_790 = arith.constant 0 : index
    %c6_791 = arith.constant 6 : index
    %c96_792 = arith.constant 96 : index
    %512 = vector.load %arg4[%c0_789, %c0_790, %c6_791, %c96_792] : memref<1x4x9x256xf32, #tpu.memory_space<vmem>>, vector<1x4x1x16xf32>
    %513 = vector.shape_cast %512 : vector<1x4x1x16xf32> to vector<4x16xf32>
    %514 = vector.shape_cast %511 : vector<4x16xf32> to vector<1x4x1x16xf32>
    tpu.vector_store %arg4[%c0_789, %c0_790, %c6_791, %c96_792], %514 {strides = array<i32>} : memref<1x4x9x256xf32, #tpu.memory_space<vmem>>, vector<1x4x1x16xf32>,
    %c0_793 = arith.constant 0 : index
    %c0_794 = arith.constant 0 : index
    %c9_795 = arith.constant 9 : index
    %c0_796 = arith.constant 0 : index
    %515 = vector.load %arg3[%c0_793, %c0_794, %c9_795, %c0_796] : memref<1x4x18x18xf32, #tpu.memory_space<vmem>>, vector<1x4x1x16xf32>
    %516 = vector.shape_cast %515 : vector<1x4x1x16xf32> to vector<4x16xf32>
    %c0_797 = arith.constant 0 : index
    %c0_798 = arith.constant 0 : index
    %c6_799 = arith.constant 6 : index
    %c112_800 = arith.constant 112 : index
    %517 = vector.load %arg4[%c0_797, %c0_798, %c6_799, %c112_800] : memref<1x4x9x256xf32, #tpu.memory_space<vmem>>, vector<1x4x1x16xf32>
    %518 = vector.shape_cast %517 : vector<1x4x1x16xf32> to vector<4x16xf32>
    %519 = vector.shape_cast %516 : vector<4x16xf32> to vector<1x4x1x16xf32>
    tpu.vector_store %arg4[%c0_797, %c0_798, %c6_799, %c112_800], %519 {strides = array<i32>} : memref<1x4x9x256xf32, #tpu.memory_space<vmem>>, vector<1x4x1x16xf32>,
    %c0_801 = arith.constant 0 : index
    %c0_802 = arith.constant 0 : index
    %c10_803 = arith.constant 10 : index
    %c0_804 = arith.constant 0 : index
    %520 = vector.load %arg3[%c0_801, %c0_802, %c10_803, %c0_804] : memref<1x4x18x18xf32, #tpu.memory_space<vmem>>, vector<1x4x1x16xf32>
    %521 = vector.shape_cast %520 : vector<1x4x1x16xf32> to vector<4x16xf32>
    %c0_805 = arith.constant 0 : index
    %c0_806 = arith.constant 0 : index
    %c6_807 = arith.constant 6 : index
    %c128_808 = arith.constant 128 : index
    %522 = vector.load %arg4[%c0_805, %c0_806, %c6_807, %c128_808] : memref<1x4x9x256xf32, #tpu.memory_space<vmem>>, vector<1x4x1x16xf32>
    %523 = vector.shape_cast %522 : vector<1x4x1x16xf32> to vector<4x16xf32>
    %524 = vector.shape_cast %521 : vector<4x16xf32> to vector<1x4x1x16xf32>
    tpu.vector_store %arg4[%c0_805, %c0_806, %c6_807, %c128_808], %524 {strides = array<i32>} : memref<1x4x9x256xf32, #tpu.memory_space<vmem>>, vector<1x4x1x16xf32>,
    %c0_809 = arith.constant 0 : index
    %c0_810 = arith.constant 0 : index
    %c11_811 = arith.constant 11 : index
    %c0_812 = arith.constant 0 : index
    %525 = vector.load %arg3[%c0_809, %c0_810, %c11_811, %c0_812] : memref<1x4x18x18xf32, #tpu.memory_space<vmem>>, vector<1x4x1x16xf32>
    %526 = vector.shape_cast %525 : vector<1x4x1x16xf32> to vector<4x16xf32>
    %c0_813 = arith.constant 0 : index
    %c0_814 = arith.constant 0 : index
    %c6_815 = arith.constant 6 : index
    %c144_816 = arith.constant 144 : index
    %527 = vector.load %arg4[%c0_813, %c0_814, %c6_815, %c144_816] : memref<1x4x9x256xf32, #tpu.memory_space<vmem>>, vector<1x4x1x16xf32>
    %528 = vector.shape_cast %527 : vector<1x4x1x16xf32> to vector<4x16xf32>
    %529 = vector.shape_cast %526 : vector<4x16xf32> to vector<1x4x1x16xf32>
    tpu.vector_store %arg4[%c0_813, %c0_814, %c6_815, %c144_816], %529 {strides = array<i32>} : memref<1x4x9x256xf32, #tpu.memory_space<vmem>>, vector<1x4x1x16xf32>,
    %c0_817 = arith.constant 0 : index
    %c0_818 = arith.constant 0 : index
    %c12_819 = arith.constant 12 : index
    %c0_820 = arith.constant 0 : index
    %530 = vector.load %arg3[%c0_817, %c0_818, %c12_819, %c0_820] : memref<1x4x18x18xf32, #tpu.memory_space<vmem>>, vector<1x4x1x16xf32>
    %531 = vector.shape_cast %530 : vector<1x4x1x16xf32> to vector<4x16xf32>
    %c0_821 = arith.constant 0 : index
    %c0_822 = arith.constant 0 : index
    %c6_823 = arith.constant 6 : index
    %c160_824 = arith.constant 160 : index
    %532 = vector.load %arg4[%c0_821, %c0_822, %c6_823, %c160_824] : memref<1x4x9x256xf32, #tpu.memory_space<vmem>>, vector<1x4x1x16xf32>
    %533 = vector.shape_cast %532 : vector<1x4x1x16xf32> to vector<4x16xf32>
    %534 = vector.shape_cast %531 : vector<4x16xf32> to vector<1x4x1x16xf32>
    tpu.vector_store %arg4[%c0_821, %c0_822, %c6_823, %c160_824], %534 {strides = array<i32>} : memref<1x4x9x256xf32, #tpu.memory_space<vmem>>, vector<1x4x1x16xf32>,
    %c0_825 = arith.constant 0 : index
    %c0_826 = arith.constant 0 : index
    %c13_827 = arith.constant 13 : index
    %c0_828 = arith.constant 0 : index
    %535 = vector.load %arg3[%c0_825, %c0_826, %c13_827, %c0_828] : memref<1x4x18x18xf32, #tpu.memory_space<vmem>>, vector<1x4x1x16xf32>
    %536 = vector.shape_cast %535 : vector<1x4x1x16xf32> to vector<4x16xf32>
    %c0_829 = arith.constant 0 : index
    %c0_830 = arith.constant 0 : index
    %c6_831 = arith.constant 6 : index
    %c176_832 = arith.constant 176 : index
    %537 = vector.load %arg4[%c0_829, %c0_830, %c6_831, %c176_832] : memref<1x4x9x256xf32, #tpu.memory_space<vmem>>, vector<1x4x1x16xf32>
    %538 = vector.shape_cast %537 : vector<1x4x1x16xf32> to vector<4x16xf32>
    %539 = vector.shape_cast %536 : vector<4x16xf32> to vector<1x4x1x16xf32>
    tpu.vector_store %arg4[%c0_829, %c0_830, %c6_831, %c176_832], %539 {strides = array<i32>} : memref<1x4x9x256xf32, #tpu.memory_space<vmem>>, vector<1x4x1x16xf32>,
    %c0_833 = arith.constant 0 : index
    %c0_834 = arith.constant 0 : index
    %c14_835 = arith.constant 14 : index
    %c0_836 = arith.constant 0 : index
    %540 = vector.load %arg3[%c0_833, %c0_834, %c14_835, %c0_836] : memref<1x4x18x18xf32, #tpu.memory_space<vmem>>, vector<1x4x1x16xf32>
    %541 = vector.shape_cast %540 : vector<1x4x1x16xf32> to vector<4x16xf32>
    %c0_837 = arith.constant 0 : index
    %c0_838 = arith.constant 0 : index
    %c6_839 = arith.constant 6 : index
    %c192_840 = arith.constant 192 : index
    %542 = vector.load %arg4[%c0_837, %c0_838, %c6_839, %c192_840] : memref<1x4x9x256xf32, #tpu.memory_space<vmem>>, vector<1x4x1x16xf32>
    %543 = vector.shape_cast %542 : vector<1x4x1x16xf32> to vector<4x16xf32>
    %544 = vector.shape_cast %541 : vector<4x16xf32> to vector<1x4x1x16xf32>
    tpu.vector_store %arg4[%c0_837, %c0_838, %c6_839, %c192_840], %544 {strides = array<i32>} : memref<1x4x9x256xf32, #tpu.memory_space<vmem>>, vector<1x4x1x16xf32>,
    %c0_841 = arith.constant 0 : index
    %c0_842 = arith.constant 0 : index
    %c15_843 = arith.constant 15 : index
    %c0_844 = arith.constant 0 : index
    %545 = vector.load %arg3[%c0_841, %c0_842, %c15_843, %c0_844] : memref<1x4x18x18xf32, #tpu.memory_space<vmem>>, vector<1x4x1x16xf32>
    %546 = vector.shape_cast %545 : vector<1x4x1x16xf32> to vector<4x16xf32>
    %c0_845 = arith.constant 0 : index
    %c0_846 = arith.constant 0 : index
    %c6_847 = arith.constant 6 : index
    %c208_848 = arith.constant 208 : index
    %547 = vector.load %arg4[%c0_845, %c0_846, %c6_847, %c208_848] : memref<1x4x9x256xf32, #tpu.memory_space<vmem>>, vector<1x4x1x16xf32>
    %548 = vector.shape_cast %547 : vector<1x4x1x16xf32> to vector<4x16xf32>
    %549 = vector.shape_cast %546 : vector<4x16xf32> to vector<1x4x1x16xf32>
    tpu.vector_store %arg4[%c0_845, %c0_846, %c6_847, %c208_848], %549 {strides = array<i32>} : memref<1x4x9x256xf32, #tpu.memory_space<vmem>>, vector<1x4x1x16xf32>,
    %c0_849 = arith.constant 0 : index
    %c0_850 = arith.constant 0 : index
    %c16_851 = arith.constant 16 : index
    %c0_852 = arith.constant 0 : index
    %550 = vector.load %arg3[%c0_849, %c0_850, %c16_851, %c0_852] : memref<1x4x18x18xf32, #tpu.memory_space<vmem>>, vector<1x4x1x16xf32>
    %551 = vector.shape_cast %550 : vector<1x4x1x16xf32> to vector<4x16xf32>
    %c0_853 = arith.constant 0 : index
    %c0_854 = arith.constant 0 : index
    %c6_855 = arith.constant 6 : index
    %c224_856 = arith.constant 224 : index
    %552 = vector.load %arg4[%c0_853, %c0_854, %c6_855, %c224_856] : memref<1x4x9x256xf32, #tpu.memory_space<vmem>>, vector<1x4x1x16xf32>
    %553 = vector.shape_cast %552 : vector<1x4x1x16xf32> to vector<4x16xf32>
    %554 = vector.shape_cast %551 : vector<4x16xf32> to vector<1x4x1x16xf32>
    tpu.vector_store %arg4[%c0_853, %c0_854, %c6_855, %c224_856], %554 {strides = array<i32>} : memref<1x4x9x256xf32, #tpu.memory_space<vmem>>, vector<1x4x1x16xf32>,
    %c0_857 = arith.constant 0 : index
    %c0_858 = arith.constant 0 : index
    %c17 = arith.constant 17 : index
    %c0_859 = arith.constant 0 : index
    %555 = vector.load %arg3[%c0_857, %c0_858, %c17, %c0_859] : memref<1x4x18x18xf32, #tpu.memory_space<vmem>>, vector<1x4x1x16xf32>
    %556 = vector.shape_cast %555 : vector<1x4x1x16xf32> to vector<4x16xf32>
    %c0_860 = arith.constant 0 : index
    %c0_861 = arith.constant 0 : index
    %c6_862 = arith.constant 6 : index
    %c240_863 = arith.constant 240 : index
    %557 = vector.load %arg4[%c0_860, %c0_861, %c6_862, %c240_863] : memref<1x4x9x256xf32, #tpu.memory_space<vmem>>, vector<1x4x1x16xf32>
    %558 = vector.shape_cast %557 : vector<1x4x1x16xf32> to vector<4x16xf32>
    %559 = vector.shape_cast %556 : vector<4x16xf32> to vector<1x4x1x16xf32>
    tpu.vector_store %arg4[%c0_860, %c0_861, %c6_862, %c240_863], %559 {strides = array<i32>} : memref<1x4x9x256xf32, #tpu.memory_space<vmem>>, vector<1x4x1x16xf32>,
    %c0_864 = arith.constant 0 : index
    %c0_865 = arith.constant 0 : index
    %c2_866 = arith.constant 2 : index
    %c1_867 = arith.constant 1 : index
    %560 = vector.load %arg3[%c0_864, %c0_865, %c2_866, %c1_867] : memref<1x4x18x18xf32, #tpu.memory_space<vmem>>, vector<1x4x1x16xf32>
    %561 = vector.shape_cast %560 : vector<1x4x1x16xf32> to vector<4x16xf32>
    %c0_868 = arith.constant 0 : index
    %c0_869 = arith.constant 0 : index
    %c7_870 = arith.constant 7 : index
    %c0_871 = arith.constant 0 : index
    %562 = vector.load %arg4[%c0_868, %c0_869, %c7_870, %c0_871] : memref<1x4x9x256xf32, #tpu.memory_space<vmem>>, vector<1x4x1x16xf32>
    %563 = vector.shape_cast %562 : vector<1x4x1x16xf32> to vector<4x16xf32>
    %564 = vector.shape_cast %561 : vector<4x16xf32> to vector<1x4x1x16xf32>
    tpu.vector_store %arg4[%c0_868, %c0_869, %c7_870, %c0_871], %564 {strides = array<i32>} : memref<1x4x9x256xf32, #tpu.memory_space<vmem>>, vector<1x4x1x16xf32>,
    %c0_872 = arith.constant 0 : index
    %c0_873 = arith.constant 0 : index
    %c3_874 = arith.constant 3 : index
    %c1_875 = arith.constant 1 : index
    %565 = vector.load %arg3[%c0_872, %c0_873, %c3_874, %c1_875] : memref<1x4x18x18xf32, #tpu.memory_space<vmem>>, vector<1x4x1x16xf32>
    %566 = vector.shape_cast %565 : vector<1x4x1x16xf32> to vector<4x16xf32>
    %c0_876 = arith.constant 0 : index
    %c0_877 = arith.constant 0 : index
    %c7_878 = arith.constant 7 : index
    %c16_879 = arith.constant 16 : index
    %567 = vector.load %arg4[%c0_876, %c0_877, %c7_878, %c16_879] : memref<1x4x9x256xf32, #tpu.memory_space<vmem>>, vector<1x4x1x16xf32>
    %568 = vector.shape_cast %567 : vector<1x4x1x16xf32> to vector<4x16xf32>
    %569 = vector.shape_cast %566 : vector<4x16xf32> to vector<1x4x1x16xf32>
    tpu.vector_store %arg4[%c0_876, %c0_877, %c7_878, %c16_879], %569 {strides = array<i32>} : memref<1x4x9x256xf32, #tpu.memory_space<vmem>>, vector<1x4x1x16xf32>,
    %c0_880 = arith.constant 0 : index
    %c0_881 = arith.constant 0 : index
    %c4_882 = arith.constant 4 : index
    %c1_883 = arith.constant 1 : index
    %570 = vector.load %arg3[%c0_880, %c0_881, %c4_882, %c1_883] : memref<1x4x18x18xf32, #tpu.memory_space<vmem>>, vector<1x4x1x16xf32>
    %571 = vector.shape_cast %570 : vector<1x4x1x16xf32> to vector<4x16xf32>
    %c0_884 = arith.constant 0 : index
    %c0_885 = arith.constant 0 : index
    %c7_886 = arith.constant 7 : index
    %c32_887 = arith.constant 32 : index
    %572 = vector.load %arg4[%c0_884, %c0_885, %c7_886, %c32_887] : memref<1x4x9x256xf32, #tpu.memory_space<vmem>>, vector<1x4x1x16xf32>
    %573 = vector.shape_cast %572 : vector<1x4x1x16xf32> to vector<4x16xf32>
    %574 = vector.shape_cast %571 : vector<4x16xf32> to vector<1x4x1x16xf32>
    tpu.vector_store %arg4[%c0_884, %c0_885, %c7_886, %c32_887], %574 {strides = array<i32>} : memref<1x4x9x256xf32, #tpu.memory_space<vmem>>, vector<1x4x1x16xf32>,
    %c0_888 = arith.constant 0 : index
    %c0_889 = arith.constant 0 : index
    %c5_890 = arith.constant 5 : index
    %c1_891 = arith.constant 1 : index
    %575 = vector.load %arg3[%c0_888, %c0_889, %c5_890, %c1_891] : memref<1x4x18x18xf32, #tpu.memory_space<vmem>>, vector<1x4x1x16xf32>
    %576 = vector.shape_cast %575 : vector<1x4x1x16xf32> to vector<4x16xf32>
    %c0_892 = arith.constant 0 : index
    %c0_893 = arith.constant 0 : index
    %c7_894 = arith.constant 7 : index
    %c48_895 = arith.constant 48 : index
    %577 = vector.load %arg4[%c0_892, %c0_893, %c7_894, %c48_895] : memref<1x4x9x256xf32, #tpu.memory_space<vmem>>, vector<1x4x1x16xf32>
    %578 = vector.shape_cast %577 : vector<1x4x1x16xf32> to vector<4x16xf32>
    %579 = vector.shape_cast %576 : vector<4x16xf32> to vector<1x4x1x16xf32>
    tpu.vector_store %arg4[%c0_892, %c0_893, %c7_894, %c48_895], %579 {strides = array<i32>} : memref<1x4x9x256xf32, #tpu.memory_space<vmem>>, vector<1x4x1x16xf32>,
    %c0_896 = arith.constant 0 : index
    %c0_897 = arith.constant 0 : index
    %c6_898 = arith.constant 6 : index
    %c1_899 = arith.constant 1 : index
    %580 = vector.load %arg3[%c0_896, %c0_897, %c6_898, %c1_899] : memref<1x4x18x18xf32, #tpu.memory_space<vmem>>, vector<1x4x1x16xf32>
    %581 = vector.shape_cast %580 : vector<1x4x1x16xf32> to vector<4x16xf32>
    %c0_900 = arith.constant 0 : index
    %c0_901 = arith.constant 0 : index
    %c7_902 = arith.constant 7 : index
    %c64_903 = arith.constant 64 : index
    %582 = vector.load %arg4[%c0_900, %c0_901, %c7_902, %c64_903] : memref<1x4x9x256xf32, #tpu.memory_space<vmem>>, vector<1x4x1x16xf32>
    %583 = vector.shape_cast %582 : vector<1x4x1x16xf32> to vector<4x16xf32>
    %584 = vector.shape_cast %581 : vector<4x16xf32> to vector<1x4x1x16xf32>
    tpu.vector_store %arg4[%c0_900, %c0_901, %c7_902, %c64_903], %584 {strides = array<i32>} : memref<1x4x9x256xf32, #tpu.memory_space<vmem>>, vector<1x4x1x16xf32>,
    %c0_904 = arith.constant 0 : index
    %c0_905 = arith.constant 0 : index
    %c7_906 = arith.constant 7 : index
    %c1_907 = arith.constant 1 : index
    %585 = vector.load %arg3[%c0_904, %c0_905, %c7_906, %c1_907] : memref<1x4x18x18xf32, #tpu.memory_space<vmem>>, vector<1x4x1x16xf32>
    %586 = vector.shape_cast %585 : vector<1x4x1x16xf32> to vector<4x16xf32>
    %c0_908 = arith.constant 0 : index
    %c0_909 = arith.constant 0 : index
    %c7_910 = arith.constant 7 : index
    %c80_911 = arith.constant 80 : index
    %587 = vector.load %arg4[%c0_908, %c0_909, %c7_910, %c80_911] : memref<1x4x9x256xf32, #tpu.memory_space<vmem>>, vector<1x4x1x16xf32>
    %588 = vector.shape_cast %587 : vector<1x4x1x16xf32> to vector<4x16xf32>
    %589 = vector.shape_cast %586 : vector<4x16xf32> to vector<1x4x1x16xf32>
    tpu.vector_store %arg4[%c0_908, %c0_909, %c7_910, %c80_911], %589 {strides = array<i32>} : memref<1x4x9x256xf32, #tpu.memory_space<vmem>>, vector<1x4x1x16xf32>,
    %c0_912 = arith.constant 0 : index
    %c0_913 = arith.constant 0 : index
    %c8_914 = arith.constant 8 : index
    %c1_915 = arith.constant 1 : index
    %590 = vector.load %arg3[%c0_912, %c0_913, %c8_914, %c1_915] : memref<1x4x18x18xf32, #tpu.memory_space<vmem>>, vector<1x4x1x16xf32>
    %591 = vector.shape_cast %590 : vector<1x4x1x16xf32> to vector<4x16xf32>
    %c0_916 = arith.constant 0 : index
    %c0_917 = arith.constant 0 : index
    %c7_918 = arith.constant 7 : index
    %c96_919 = arith.constant 96 : index
    %592 = vector.load %arg4[%c0_916, %c0_917, %c7_918, %c96_919] : memref<1x4x9x256xf32, #tpu.memory_space<vmem>>, vector<1x4x1x16xf32>
    %593 = vector.shape_cast %592 : vector<1x4x1x16xf32> to vector<4x16xf32>
    %594 = vector.shape_cast %591 : vector<4x16xf32> to vector<1x4x1x16xf32>
    tpu.vector_store %arg4[%c0_916, %c0_917, %c7_918, %c96_919], %594 {strides = array<i32>} : memref<1x4x9x256xf32, #tpu.memory_space<vmem>>, vector<1x4x1x16xf32>,
    %c0_920 = arith.constant 0 : index
    %c0_921 = arith.constant 0 : index
    %c9_922 = arith.constant 9 : index
    %c1_923 = arith.constant 1 : index
    %595 = vector.load %arg3[%c0_920, %c0_921, %c9_922, %c1_923] : memref<1x4x18x18xf32, #tpu.memory_space<vmem>>, vector<1x4x1x16xf32>
    %596 = vector.shape_cast %595 : vector<1x4x1x16xf32> to vector<4x16xf32>
    %c0_924 = arith.constant 0 : index
    %c0_925 = arith.constant 0 : index
    %c7_926 = arith.constant 7 : index
    %c112_927 = arith.constant 112 : index
    %597 = vector.load %arg4[%c0_924, %c0_925, %c7_926, %c112_927] : memref<1x4x9x256xf32, #tpu.memory_space<vmem>>, vector<1x4x1x16xf32>
    %598 = vector.shape_cast %597 : vector<1x4x1x16xf32> to vector<4x16xf32>
    %599 = vector.shape_cast %596 : vector<4x16xf32> to vector<1x4x1x16xf32>
    tpu.vector_store %arg4[%c0_924, %c0_925, %c7_926, %c112_927], %599 {strides = array<i32>} : memref<1x4x9x256xf32, #tpu.memory_space<vmem>>, vector<1x4x1x16xf32>,
    %c0_928 = arith.constant 0 : index
    %c0_929 = arith.constant 0 : index
    %c10_930 = arith.constant 10 : index
    %c1_931 = arith.constant 1 : index
    %600 = vector.load %arg3[%c0_928, %c0_929, %c10_930, %c1_931] : memref<1x4x18x18xf32, #tpu.memory_space<vmem>>, vector<1x4x1x16xf32>
    %601 = vector.shape_cast %600 : vector<1x4x1x16xf32> to vector<4x16xf32>
    %c0_932 = arith.constant 0 : index
    %c0_933 = arith.constant 0 : index
    %c7_934 = arith.constant 7 : index
    %c128_935 = arith.constant 128 : index
    %602 = vector.load %arg4[%c0_932, %c0_933, %c7_934, %c128_935] : memref<1x4x9x256xf32, #tpu.memory_space<vmem>>, vector<1x4x1x16xf32>
    %603 = vector.shape_cast %602 : vector<1x4x1x16xf32> to vector<4x16xf32>
    %604 = vector.shape_cast %601 : vector<4x16xf32> to vector<1x4x1x16xf32>
    tpu.vector_store %arg4[%c0_932, %c0_933, %c7_934, %c128_935], %604 {strides = array<i32>} : memref<1x4x9x256xf32, #tpu.memory_space<vmem>>, vector<1x4x1x16xf32>,
    %c0_936 = arith.constant 0 : index
    %c0_937 = arith.constant 0 : index
    %c11_938 = arith.constant 11 : index
    %c1_939 = arith.constant 1 : index
    %605 = vector.load %arg3[%c0_936, %c0_937, %c11_938, %c1_939] : memref<1x4x18x18xf32, #tpu.memory_space<vmem>>, vector<1x4x1x16xf32>
    %606 = vector.shape_cast %605 : vector<1x4x1x16xf32> to vector<4x16xf32>
    %c0_940 = arith.constant 0 : index
    %c0_941 = arith.constant 0 : index
    %c7_942 = arith.constant 7 : index
    %c144_943 = arith.constant 144 : index
    %607 = vector.load %arg4[%c0_940, %c0_941, %c7_942, %c144_943] : memref<1x4x9x256xf32, #tpu.memory_space<vmem>>, vector<1x4x1x16xf32>
    %608 = vector.shape_cast %607 : vector<1x4x1x16xf32> to vector<4x16xf32>
    %609 = vector.shape_cast %606 : vector<4x16xf32> to vector<1x4x1x16xf32>
    tpu.vector_store %arg4[%c0_940, %c0_941, %c7_942, %c144_943], %609 {strides = array<i32>} : memref<1x4x9x256xf32, #tpu.memory_space<vmem>>, vector<1x4x1x16xf32>,
    %c0_944 = arith.constant 0 : index
    %c0_945 = arith.constant 0 : index
    %c12_946 = arith.constant 12 : index
    %c1_947 = arith.constant 1 : index
    %610 = vector.load %arg3[%c0_944, %c0_945, %c12_946, %c1_947] : memref<1x4x18x18xf32, #tpu.memory_space<vmem>>, vector<1x4x1x16xf32>
    %611 = vector.shape_cast %610 : vector<1x4x1x16xf32> to vector<4x16xf32>
    %c0_948 = arith.constant 0 : index
    %c0_949 = arith.constant 0 : index
    %c7_950 = arith.constant 7 : index
    %c160_951 = arith.constant 160 : index
    %612 = vector.load %arg4[%c0_948, %c0_949, %c7_950, %c160_951] : memref<1x4x9x256xf32, #tpu.memory_space<vmem>>, vector<1x4x1x16xf32>
    %613 = vector.shape_cast %612 : vector<1x4x1x16xf32> to vector<4x16xf32>
    %614 = vector.shape_cast %611 : vector<4x16xf32> to vector<1x4x1x16xf32>
    tpu.vector_store %arg4[%c0_948, %c0_949, %c7_950, %c160_951], %614 {strides = array<i32>} : memref<1x4x9x256xf32, #tpu.memory_space<vmem>>, vector<1x4x1x16xf32>,
    %c0_952 = arith.constant 0 : index
    %c0_953 = arith.constant 0 : index
    %c13_954 = arith.constant 13 : index
    %c1_955 = arith.constant 1 : index
    %615 = vector.load %arg3[%c0_952, %c0_953, %c13_954, %c1_955] : memref<1x4x18x18xf32, #tpu.memory_space<vmem>>, vector<1x4x1x16xf32>
    %616 = vector.shape_cast %615 : vector<1x4x1x16xf32> to vector<4x16xf32>
    %c0_956 = arith.constant 0 : index
    %c0_957 = arith.constant 0 : index
    %c7_958 = arith.constant 7 : index
    %c176_959 = arith.constant 176 : index
    %617 = vector.load %arg4[%c0_956, %c0_957, %c7_958, %c176_959] : memref<1x4x9x256xf32, #tpu.memory_space<vmem>>, vector<1x4x1x16xf32>
    %618 = vector.shape_cast %617 : vector<1x4x1x16xf32> to vector<4x16xf32>
    %619 = vector.shape_cast %616 : vector<4x16xf32> to vector<1x4x1x16xf32>
    tpu.vector_store %arg4[%c0_956, %c0_957, %c7_958, %c176_959], %619 {strides = array<i32>} : memref<1x4x9x256xf32, #tpu.memory_space<vmem>>, vector<1x4x1x16xf32>,
    %c0_960 = arith.constant 0 : index
    %c0_961 = arith.constant 0 : index
    %c14_962 = arith.constant 14 : index
    %c1_963 = arith.constant 1 : index
    %620 = vector.load %arg3[%c0_960, %c0_961, %c14_962, %c1_963] : memref<1x4x18x18xf32, #tpu.memory_space<vmem>>, vector<1x4x1x16xf32>
    %621 = vector.shape_cast %620 : vector<1x4x1x16xf32> to vector<4x16xf32>
    %c0_964 = arith.constant 0 : index
    %c0_965 = arith.constant 0 : index
    %c7_966 = arith.constant 7 : index
    %c192_967 = arith.constant 192 : index
    %622 = vector.load %arg4[%c0_964, %c0_965, %c7_966, %c192_967] : memref<1x4x9x256xf32, #tpu.memory_space<vmem>>, vector<1x4x1x16xf32>
    %623 = vector.shape_cast %622 : vector<1x4x1x16xf32> to vector<4x16xf32>
    %624 = vector.shape_cast %621 : vector<4x16xf32> to vector<1x4x1x16xf32>
    tpu.vector_store %arg4[%c0_964, %c0_965, %c7_966, %c192_967], %624 {strides = array<i32>} : memref<1x4x9x256xf32, #tpu.memory_space<vmem>>, vector<1x4x1x16xf32>,
    %c0_968 = arith.constant 0 : index
    %c0_969 = arith.constant 0 : index
    %c15_970 = arith.constant 15 : index
    %c1_971 = arith.constant 1 : index
    %625 = vector.load %arg3[%c0_968, %c0_969, %c15_970, %c1_971] : memref<1x4x18x18xf32, #tpu.memory_space<vmem>>, vector<1x4x1x16xf32>
    %626 = vector.shape_cast %625 : vector<1x4x1x16xf32> to vector<4x16xf32>
    %c0_972 = arith.constant 0 : index
    %c0_973 = arith.constant 0 : index
    %c7_974 = arith.constant 7 : index
    %c208_975 = arith.constant 208 : index
    %627 = vector.load %arg4[%c0_972, %c0_973, %c7_974, %c208_975] : memref<1x4x9x256xf32, #tpu.memory_space<vmem>>, vector<1x4x1x16xf32>
    %628 = vector.shape_cast %627 : vector<1x4x1x16xf32> to vector<4x16xf32>
    %629 = vector.shape_cast %626 : vector<4x16xf32> to vector<1x4x1x16xf32>
    tpu.vector_store %arg4[%c0_972, %c0_973, %c7_974, %c208_975], %629 {strides = array<i32>} : memref<1x4x9x256xf32, #tpu.memory_space<vmem>>, vector<1x4x1x16xf32>,
    %c0_976 = arith.constant 0 : index
    %c0_977 = arith.constant 0 : index
    %c16_978 = arith.constant 16 : index
    %c1_979 = arith.constant 1 : index
    %630 = vector.load %arg3[%c0_976, %c0_977, %c16_978, %c1_979] : memref<1x4x18x18xf32, #tpu.memory_space<vmem>>, vector<1x4x1x16xf32>
    %631 = vector.shape_cast %630 : vector<1x4x1x16xf32> to vector<4x16xf32>
    %c0_980 = arith.constant 0 : index
    %c0_981 = arith.constant 0 : index
    %c7_982 = arith.constant 7 : index
    %c224_983 = arith.constant 224 : index
    %632 = vector.load %arg4[%c0_980, %c0_981, %c7_982, %c224_983] : memref<1x4x9x256xf32, #tpu.memory_space<vmem>>, vector<1x4x1x16xf32>
    %633 = vector.shape_cast %632 : vector<1x4x1x16xf32> to vector<4x16xf32>
    %634 = vector.shape_cast %631 : vector<4x16xf32> to vector<1x4x1x16xf32>
    tpu.vector_store %arg4[%c0_980, %c0_981, %c7_982, %c224_983], %634 {strides = array<i32>} : memref<1x4x9x256xf32, #tpu.memory_space<vmem>>, vector<1x4x1x16xf32>,
    %c0_984 = arith.constant 0 : index
    %c0_985 = arith.constant 0 : index
    %c17_986 = arith.constant 17 : index
    %c1_987 = arith.constant 1 : index
    %635 = vector.load %arg3[%c0_984, %c0_985, %c17_986, %c1_987] : memref<1x4x18x18xf32, #tpu.memory_space<vmem>>, vector<1x4x1x16xf32>
    %636 = vector.shape_cast %635 : vector<1x4x1x16xf32> to vector<4x16xf32>
    %c0_988 = arith.constant 0 : index
    %c0_989 = arith.constant 0 : index
    %c7_990 = arith.constant 7 : index
    %c240_991 = arith.constant 240 : index
    %637 = vector.load %arg4[%c0_988, %c0_989, %c7_990, %c240_991] : memref<1x4x9x256xf32, #tpu.memory_space<vmem>>, vector<1x4x1x16xf32>
    %638 = vector.shape_cast %637 : vector<1x4x1x16xf32> to vector<4x16xf32>
    %639 = vector.shape_cast %636 : vector<4x16xf32> to vector<1x4x1x16xf32>
    tpu.vector_store %arg4[%c0_988, %c0_989, %c7_990, %c240_991], %639 {strides = array<i32>} : memref<1x4x9x256xf32, #tpu.memory_space<vmem>>, vector<1x4x1x16xf32>,
    %c0_992 = arith.constant 0 : index
    %c0_993 = arith.constant 0 : index
    %c2_994 = arith.constant 2 : index
    %c2_995 = arith.constant 2 : index
    %640 = vector.load %arg3[%c0_992, %c0_993, %c2_994, %c2_995] : memref<1x4x18x18xf32, #tpu.memory_space<vmem>>, vector<1x4x1x16xf32>
    %641 = vector.shape_cast %640 : vector<1x4x1x16xf32> to vector<4x16xf32>
    %c0_996 = arith.constant 0 : index
    %c0_997 = arith.constant 0 : index
    %c8_998 = arith.constant 8 : index
    %c0_999 = arith.constant 0 : index
    %642 = vector.load %arg4[%c0_996, %c0_997, %c8_998, %c0_999] : memref<1x4x9x256xf32, #tpu.memory_space<vmem>>, vector<1x4x1x16xf32>
    %643 = vector.shape_cast %642 : vector<1x4x1x16xf32> to vector<4x16xf32>
    %644 = vector.shape_cast %641 : vector<4x16xf32> to vector<1x4x1x16xf32>
    tpu.vector_store %arg4[%c0_996, %c0_997, %c8_998, %c0_999], %644 {strides = array<i32>} : memref<1x4x9x256xf32, #tpu.memory_space<vmem>>, vector<1x4x1x16xf32>,
    %c0_1000 = arith.constant 0 : index
    %c0_1001 = arith.constant 0 : index
    %c3_1002 = arith.constant 3 : index
    %c2_1003 = arith.constant 2 : index
    %645 = vector.load %arg3[%c0_1000, %c0_1001, %c3_1002, %c2_1003] : memref<1x4x18x18xf32, #tpu.memory_space<vmem>>, vector<1x4x1x16xf32>
    %646 = vector.shape_cast %645 : vector<1x4x1x16xf32> to vector<4x16xf32>
    %c0_1004 = arith.constant 0 : index
    %c0_1005 = arith.constant 0 : index
    %c8_1006 = arith.constant 8 : index
    %c16_1007 = arith.constant 16 : index
    %647 = vector.load %arg4[%c0_1004, %c0_1005, %c8_1006, %c16_1007] : memref<1x4x9x256xf32, #tpu.memory_space<vmem>>, vector<1x4x1x16xf32>
    %648 = vector.shape_cast %647 : vector<1x4x1x16xf32> to vector<4x16xf32>
    %649 = vector.shape_cast %646 : vector<4x16xf32> to vector<1x4x1x16xf32>
    tpu.vector_store %arg4[%c0_1004, %c0_1005, %c8_1006, %c16_1007], %649 {strides = array<i32>} : memref<1x4x9x256xf32, #tpu.memory_space<vmem>>, vector<1x4x1x16xf32>,
    %c0_1008 = arith.constant 0 : index
    %c0_1009 = arith.constant 0 : index
    %c4_1010 = arith.constant 4 : index
    %c2_1011 = arith.constant 2 : index
    %650 = vector.load %arg3[%c0_1008, %c0_1009, %c4_1010, %c2_1011] : memref<1x4x18x18xf32, #tpu.memory_space<vmem>>, vector<1x4x1x16xf32>
    %651 = vector.shape_cast %650 : vector<1x4x1x16xf32> to vector<4x16xf32>
    %c0_1012 = arith.constant 0 : index
    %c0_1013 = arith.constant 0 : index
    %c8_1014 = arith.constant 8 : index
    %c32_1015 = arith.constant 32 : index
    %652 = vector.load %arg4[%c0_1012, %c0_1013, %c8_1014, %c32_1015] : memref<1x4x9x256xf32, #tpu.memory_space<vmem>>, vector<1x4x1x16xf32>
    %653 = vector.shape_cast %652 : vector<1x4x1x16xf32> to vector<4x16xf32>
    %654 = vector.shape_cast %651 : vector<4x16xf32> to vector<1x4x1x16xf32>
    tpu.vector_store %arg4[%c0_1012, %c0_1013, %c8_1014, %c32_1015], %654 {strides = array<i32>} : memref<1x4x9x256xf32, #tpu.memory_space<vmem>>, vector<1x4x1x16xf32>,
    %c0_1016 = arith.constant 0 : index
    %c0_1017 = arith.constant 0 : index
    %c5_1018 = arith.constant 5 : index
    %c2_1019 = arith.constant 2 : index
    %655 = vector.load %arg3[%c0_1016, %c0_1017, %c5_1018, %c2_1019] : memref<1x4x18x18xf32, #tpu.memory_space<vmem>>, vector<1x4x1x16xf32>
    %656 = vector.shape_cast %655 : vector<1x4x1x16xf32> to vector<4x16xf32>
    %c0_1020 = arith.constant 0 : index
    %c0_1021 = arith.constant 0 : index
    %c8_1022 = arith.constant 8 : index
    %c48_1023 = arith.constant 48 : index
    %657 = vector.load %arg4[%c0_1020, %c0_1021, %c8_1022, %c48_1023] : memref<1x4x9x256xf32, #tpu.memory_space<vmem>>, vector<1x4x1x16xf32>
    %658 = vector.shape_cast %657 : vector<1x4x1x16xf32> to vector<4x16xf32>
    %659 = vector.shape_cast %656 : vector<4x16xf32> to vector<1x4x1x16xf32>
    tpu.vector_store %arg4[%c0_1020, %c0_1021, %c8_1022, %c48_1023], %659 {strides = array<i32>} : memref<1x4x9x256xf32, #tpu.memory_space<vmem>>, vector<1x4x1x16xf32>,
    %c0_1024 = arith.constant 0 : index
    %c0_1025 = arith.constant 0 : index
    %c6_1026 = arith.constant 6 : index
    %c2_1027 = arith.constant 2 : index
    %660 = vector.load %arg3[%c0_1024, %c0_1025, %c6_1026, %c2_1027] : memref<1x4x18x18xf32, #tpu.memory_space<vmem>>, vector<1x4x1x16xf32>
    %661 = vector.shape_cast %660 : vector<1x4x1x16xf32> to vector<4x16xf32>
    %c0_1028 = arith.constant 0 : index
    %c0_1029 = arith.constant 0 : index
    %c8_1030 = arith.constant 8 : index
    %c64_1031 = arith.constant 64 : index
    %662 = vector.load %arg4[%c0_1028, %c0_1029, %c8_1030, %c64_1031] : memref<1x4x9x256xf32, #tpu.memory_space<vmem>>, vector<1x4x1x16xf32>
    %663 = vector.shape_cast %662 : vector<1x4x1x16xf32> to vector<4x16xf32>
    %664 = vector.shape_cast %661 : vector<4x16xf32> to vector<1x4x1x16xf32>
    tpu.vector_store %arg4[%c0_1028, %c0_1029, %c8_1030, %c64_1031], %664 {strides = array<i32>} : memref<1x4x9x256xf32, #tpu.memory_space<vmem>>, vector<1x4x1x16xf32>,
    %c0_1032 = arith.constant 0 : index
    %c0_1033 = arith.constant 0 : index
    %c7_1034 = arith.constant 7 : index
    %c2_1035 = arith.constant 2 : index
    %665 = vector.load %arg3[%c0_1032, %c0_1033, %c7_1034, %c2_1035] : memref<1x4x18x18xf32, #tpu.memory_space<vmem>>, vector<1x4x1x16xf32>
    %666 = vector.shape_cast %665 : vector<1x4x1x16xf32> to vector<4x16xf32>
    %c0_1036 = arith.constant 0 : index
    %c0_1037 = arith.constant 0 : index
    %c8_1038 = arith.constant 8 : index
    %c80_1039 = arith.constant 80 : index
    %667 = vector.load %arg4[%c0_1036, %c0_1037, %c8_1038, %c80_1039] : memref<1x4x9x256xf32, #tpu.memory_space<vmem>>, vector<1x4x1x16xf32>
    %668 = vector.shape_cast %667 : vector<1x4x1x16xf32> to vector<4x16xf32>
    %669 = vector.shape_cast %666 : vector<4x16xf32> to vector<1x4x1x16xf32>
    tpu.vector_store %arg4[%c0_1036, %c0_1037, %c8_1038, %c80_1039], %669 {strides = array<i32>} : memref<1x4x9x256xf32, #tpu.memory_space<vmem>>, vector<1x4x1x16xf32>,
    %c0_1040 = arith.constant 0 : index
    %c0_1041 = arith.constant 0 : index
    %c8_1042 = arith.constant 8 : index
    %c2_1043 = arith.constant 2 : index
    %670 = vector.load %arg3[%c0_1040, %c0_1041, %c8_1042, %c2_1043] : memref<1x4x18x18xf32, #tpu.memory_space<vmem>>, vector<1x4x1x16xf32>
    %671 = vector.shape_cast %670 : vector<1x4x1x16xf32> to vector<4x16xf32>
    %c0_1044 = arith.constant 0 : index
    %c0_1045 = arith.constant 0 : index
    %c8_1046 = arith.constant 8 : index
    %c96_1047 = arith.constant 96 : index
    %672 = vector.load %arg4[%c0_1044, %c0_1045, %c8_1046, %c96_1047] : memref<1x4x9x256xf32, #tpu.memory_space<vmem>>, vector<1x4x1x16xf32>
    %673 = vector.shape_cast %672 : vector<1x4x1x16xf32> to vector<4x16xf32>
    %674 = vector.shape_cast %671 : vector<4x16xf32> to vector<1x4x1x16xf32>
    tpu.vector_store %arg4[%c0_1044, %c0_1045, %c8_1046, %c96_1047], %674 {strides = array<i32>} : memref<1x4x9x256xf32, #tpu.memory_space<vmem>>, vector<1x4x1x16xf32>,
    %c0_1048 = arith.constant 0 : index
    %c0_1049 = arith.constant 0 : index
    %c9_1050 = arith.constant 9 : index
    %c2_1051 = arith.constant 2 : index
    %675 = vector.load %arg3[%c0_1048, %c0_1049, %c9_1050, %c2_1051] : memref<1x4x18x18xf32, #tpu.memory_space<vmem>>, vector<1x4x1x16xf32>
    %676 = vector.shape_cast %675 : vector<1x4x1x16xf32> to vector<4x16xf32>
    %c0_1052 = arith.constant 0 : index
    %c0_1053 = arith.constant 0 : index
    %c8_1054 = arith.constant 8 : index
    %c112_1055 = arith.constant 112 : index
    %677 = vector.load %arg4[%c0_1052, %c0_1053, %c8_1054, %c112_1055] : memref<1x4x9x256xf32, #tpu.memory_space<vmem>>, vector<1x4x1x16xf32>
    %678 = vector.shape_cast %677 : vector<1x4x1x16xf32> to vector<4x16xf32>
    %679 = vector.shape_cast %676 : vector<4x16xf32> to vector<1x4x1x16xf32>
    tpu.vector_store %arg4[%c0_1052, %c0_1053, %c8_1054, %c112_1055], %679 {strides = array<i32>} : memref<1x4x9x256xf32, #tpu.memory_space<vmem>>, vector<1x4x1x16xf32>,
    %c0_1056 = arith.constant 0 : index
    %c0_1057 = arith.constant 0 : index
    %c10_1058 = arith.constant 10 : index
    %c2_1059 = arith.constant 2 : index
    %680 = vector.load %arg3[%c0_1056, %c0_1057, %c10_1058, %c2_1059] : memref<1x4x18x18xf32, #tpu.memory_space<vmem>>, vector<1x4x1x16xf32>
    %681 = vector.shape_cast %680 : vector<1x4x1x16xf32> to vector<4x16xf32>
    %c0_1060 = arith.constant 0 : index
    %c0_1061 = arith.constant 0 : index
    %c8_1062 = arith.constant 8 : index
    %c128_1063 = arith.constant 128 : index
    %682 = vector.load %arg4[%c0_1060, %c0_1061, %c8_1062, %c128_1063] : memref<1x4x9x256xf32, #tpu.memory_space<vmem>>, vector<1x4x1x16xf32>
    %683 = vector.shape_cast %682 : vector<1x4x1x16xf32> to vector<4x16xf32>
    %684 = vector.shape_cast %681 : vector<4x16xf32> to vector<1x4x1x16xf32>
    tpu.vector_store %arg4[%c0_1060, %c0_1061, %c8_1062, %c128_1063], %684 {strides = array<i32>} : memref<1x4x9x256xf32, #tpu.memory_space<vmem>>, vector<1x4x1x16xf32>,
    %c0_1064 = arith.constant 0 : index
    %c0_1065 = arith.constant 0 : index
    %c11_1066 = arith.constant 11 : index
    %c2_1067 = arith.constant 2 : index
    %685 = vector.load %arg3[%c0_1064, %c0_1065, %c11_1066, %c2_1067] : memref<1x4x18x18xf32, #tpu.memory_space<vmem>>, vector<1x4x1x16xf32>
    %686 = vector.shape_cast %685 : vector<1x4x1x16xf32> to vector<4x16xf32>
    %c0_1068 = arith.constant 0 : index
    %c0_1069 = arith.constant 0 : index
    %c8_1070 = arith.constant 8 : index
    %c144_1071 = arith.constant 144 : index
    %687 = vector.load %arg4[%c0_1068, %c0_1069, %c8_1070, %c144_1071] : memref<1x4x9x256xf32, #tpu.memory_space<vmem>>, vector<1x4x1x16xf32>
    %688 = vector.shape_cast %687 : vector<1x4x1x16xf32> to vector<4x16xf32>
    %689 = vector.shape_cast %686 : vector<4x16xf32> to vector<1x4x1x16xf32>
    tpu.vector_store %arg4[%c0_1068, %c0_1069, %c8_1070, %c144_1071], %689 {strides = array<i32>} : memref<1x4x9x256xf32, #tpu.memory_space<vmem>>, vector<1x4x1x16xf32>,
    %c0_1072 = arith.constant 0 : index
    %c0_1073 = arith.constant 0 : index
    %c12_1074 = arith.constant 12 : index
    %c2_1075 = arith.constant 2 : index
    %690 = vector.load %arg3[%c0_1072, %c0_1073, %c12_1074, %c2_1075] : memref<1x4x18x18xf32, #tpu.memory_space<vmem>>, vector<1x4x1x16xf32>
    %691 = vector.shape_cast %690 : vector<1x4x1x16xf32> to vector<4x16xf32>
    %c0_1076 = arith.constant 0 : index
    %c0_1077 = arith.constant 0 : index
    %c8_1078 = arith.constant 8 : index
    %c160_1079 = arith.constant 160 : index
    %692 = vector.load %arg4[%c0_1076, %c0_1077, %c8_1078, %c160_1079] : memref<1x4x9x256xf32, #tpu.memory_space<vmem>>, vector<1x4x1x16xf32>
    %693 = vector.shape_cast %692 : vector<1x4x1x16xf32> to vector<4x16xf32>
    %694 = vector.shape_cast %691 : vector<4x16xf32> to vector<1x4x1x16xf32>
    tpu.vector_store %arg4[%c0_1076, %c0_1077, %c8_1078, %c160_1079], %694 {strides = array<i32>} : memref<1x4x9x256xf32, #tpu.memory_space<vmem>>, vector<1x4x1x16xf32>,
    %c0_1080 = arith.constant 0 : index
    %c0_1081 = arith.constant 0 : index
    %c13_1082 = arith.constant 13 : index
    %c2_1083 = arith.constant 2 : index
    %695 = vector.load %arg3[%c0_1080, %c0_1081, %c13_1082, %c2_1083] : memref<1x4x18x18xf32, #tpu.memory_space<vmem>>, vector<1x4x1x16xf32>
    %696 = vector.shape_cast %695 : vector<1x4x1x16xf32> to vector<4x16xf32>
    %c0_1084 = arith.constant 0 : index
    %c0_1085 = arith.constant 0 : index
    %c8_1086 = arith.constant 8 : index
    %c176_1087 = arith.constant 176 : index
    %697 = vector.load %arg4[%c0_1084, %c0_1085, %c8_1086, %c176_1087] : memref<1x4x9x256xf32, #tpu.memory_space<vmem>>, vector<1x4x1x16xf32>
    %698 = vector.shape_cast %697 : vector<1x4x1x16xf32> to vector<4x16xf32>
    %699 = vector.shape_cast %696 : vector<4x16xf32> to vector<1x4x1x16xf32>
    tpu.vector_store %arg4[%c0_1084, %c0_1085, %c8_1086, %c176_1087], %699 {strides = array<i32>} : memref<1x4x9x256xf32, #tpu.memory_space<vmem>>, vector<1x4x1x16xf32>,
    %c0_1088 = arith.constant 0 : index
    %c0_1089 = arith.constant 0 : index
    %c14_1090 = arith.constant 14 : index
    %c2_1091 = arith.constant 2 : index
    %700 = vector.load %arg3[%c0_1088, %c0_1089, %c14_1090, %c2_1091] : memref<1x4x18x18xf32, #tpu.memory_space<vmem>>, vector<1x4x1x16xf32>
    %701 = vector.shape_cast %700 : vector<1x4x1x16xf32> to vector<4x16xf32>
    %c0_1092 = arith.constant 0 : index
    %c0_1093 = arith.constant 0 : index
    %c8_1094 = arith.constant 8 : index
    %c192_1095 = arith.constant 192 : index
    %702 = vector.load %arg4[%c0_1092, %c0_1093, %c8_1094, %c192_1095] : memref<1x4x9x256xf32, #tpu.memory_space<vmem>>, vector<1x4x1x16xf32>
    %703 = vector.shape_cast %702 : vector<1x4x1x16xf32> to vector<4x16xf32>
    %704 = vector.shape_cast %701 : vector<4x16xf32> to vector<1x4x1x16xf32>
    tpu.vector_store %arg4[%c0_1092, %c0_1093, %c8_1094, %c192_1095], %704 {strides = array<i32>} : memref<1x4x9x256xf32, #tpu.memory_space<vmem>>, vector<1x4x1x16xf32>,
    %c0_1096 = arith.constant 0 : index
    %c0_1097 = arith.constant 0 : index
    %c15_1098 = arith.constant 15 : index
    %c2_1099 = arith.constant 2 : index
    %705 = vector.load %arg3[%c0_1096, %c0_1097, %c15_1098, %c2_1099] : memref<1x4x18x18xf32, #tpu.memory_space<vmem>>, vector<1x4x1x16xf32>
    %706 = vector.shape_cast %705 : vector<1x4x1x16xf32> to vector<4x16xf32>
    %c0_1100 = arith.constant 0 : index
    %c0_1101 = arith.constant 0 : index
    %c8_1102 = arith.constant 8 : index
    %c208_1103 = arith.constant 208 : index
    %707 = vector.load %arg4[%c0_1100, %c0_1101, %c8_1102, %c208_1103] : memref<1x4x9x256xf32, #tpu.memory_space<vmem>>, vector<1x4x1x16xf32>
    %708 = vector.shape_cast %707 : vector<1x4x1x16xf32> to vector<4x16xf32>
    %709 = vector.shape_cast %706 : vector<4x16xf32> to vector<1x4x1x16xf32>
    tpu.vector_store %arg4[%c0_1100, %c0_1101, %c8_1102, %c208_1103], %709 {strides = array<i32>} : memref<1x4x9x256xf32, #tpu.memory_space<vmem>>, vector<1x4x1x16xf32>,
    %c0_1104 = arith.constant 0 : index
    %c0_1105 = arith.constant 0 : index
    %c16_1106 = arith.constant 16 : index
    %c2_1107 = arith.constant 2 : index
    %710 = vector.load %arg3[%c0_1104, %c0_1105, %c16_1106, %c2_1107] : memref<1x4x18x18xf32, #tpu.memory_space<vmem>>, vector<1x4x1x16xf32>
    %711 = vector.shape_cast %710 : vector<1x4x1x16xf32> to vector<4x16xf32>
    %c0_1108 = arith.constant 0 : index
    %c0_1109 = arith.constant 0 : index
    %c8_1110 = arith.constant 8 : index
    %c224_1111 = arith.constant 224 : index
    %712 = vector.load %arg4[%c0_1108, %c0_1109, %c8_1110, %c224_1111] : memref<1x4x9x256xf32, #tpu.memory_space<vmem>>, vector<1x4x1x16xf32>
    %713 = vector.shape_cast %712 : vector<1x4x1x16xf32> to vector<4x16xf32>
    %714 = vector.shape_cast %711 : vector<4x16xf32> to vector<1x4x1x16xf32>
    tpu.vector_store %arg4[%c0_1108, %c0_1109, %c8_1110, %c224_1111], %714 {strides = array<i32>} : memref<1x4x9x256xf32, #tpu.memory_space<vmem>>, vector<1x4x1x16xf32>,
    %c0_1112 = arith.constant 0 : index
    %c0_1113 = arith.constant 0 : index
    %c17_1114 = arith.constant 17 : index
    %c2_1115 = arith.constant 2 : index
    %715 = vector.load %arg3[%c0_1112, %c0_1113, %c17_1114, %c2_1115] : memref<1x4x18x18xf32, #tpu.memory_space<vmem>>, vector<1x4x1x16xf32>
    %716 = vector.shape_cast %715 : vector<1x4x1x16xf32> to vector<4x16xf32>
    %c0_1116 = arith.constant 0 : index
    %c0_1117 = arith.constant 0 : index
    %c8_1118 = arith.constant 8 : index
    %c240_1119 = arith.constant 240 : index
    %717 = vector.load %arg4[%c0_1116, %c0_1117, %c8_1118, %c240_1119] : memref<1x4x9x256xf32, #tpu.memory_space<vmem>>, vector<1x4x1x16xf32>
    %718 = vector.shape_cast %717 : vector<1x4x1x16xf32> to vector<4x16xf32>
    %719 = vector.shape_cast %716 : vector<4x16xf32> to vector<1x4x1x16xf32>
    tpu.vector_store %arg4[%c0_1116, %c0_1117, %c8_1118, %c240_1119], %719 {strides = array<i32>} : memref<1x4x9x256xf32, #tpu.memory_space<vmem>>, vector<1x4x1x16xf32>,
    return
  }
  func.func @transform_0(%arg0: i32, %arg1: i32, %arg2: i32) -> (i32, i32, i32, i32) {
    %c0_i32 = arith.constant 0 : i32
    %c0_i32_0 = arith.constant 0 : i32
    %c0_i32_1 = arith.constant 0 : i32
    return %arg0, %arg1, %c0_i32, %c0_i32_0 : i32, i32, i32, i32
  }
  func.func @transform_1(%arg0: i32, %arg1: i32, %arg2: i32) -> (i32, i32, i32, i32) {
    %c0_i32 = arith.constant 0 : i32
    %c0_i32_0 = arith.constant 0 : i32
    return %arg0, %arg1, %c0_i32, %arg2 : i32, i32, i32, i32
  }
}

</mosaic_0001>

<llo_original>
// kernel: tpu_custom_call.1
$region0: #{tpu_custom_call.1}
  #allocation0 [shape = 'u32[]', space=smem, size = 0x4, offset = 0x4, fixed_abs, tag = 'smem constant byte address 0x4 - core index']
  #allocation1 [shape = 'u32[144,128]{1,0:T(1,128)}', space=vmem, size = 0x12000, scoped, tag = 'internal scratch']
  %s0 = inlined_call_operand.vmem [shape: f32[2,4,18,18], index: 0, kind: input, shape index: {}]
  %s1 = inlined_call_operand.vmem [shape: f32[2,4,9,256], index: 1, kind: output, shape index: {}]
  %s2 = sld [smem:[#allocation0]]
  $region37: #{tpu_custom_call.1} parent=0
    _
  %s4 = ssub.s32 1, %s2
  %s5 = scalar_select 0, %s4, %s2
  loop: start=0, step=1, limit=4
  $region2: #{tpu_custom_call.1} parent=0 // loop_pre_header
    _
  $region3: #{tpu_custom_call.1} parent=0 // loop_header
    %s7 = sphi 0, %s11
    %p8 = scmp.ge.s32.totalorder %s7, 4
    %s14 = sphi 0, %s33
    %s15 = sphi 0, %s29
    %s16 = sphi 0, %s25
    %s17 = sphi 0, %s14
    %s18 = sphi 0, %s15
    %s19 = sphi 0, %s16
    %s20 = sphi 0, %s17
    %s21 = sphi 0, %s18
    %s22 = sphi 0, %s19
    %s38 = sphi 0, %s40
    %s41 = sphi 0, %s38
    %s42 = sphi 0, %s41
    %s58 = sphi 0, %s42
    %s68 = sphi 0, %s70
    %s71 = sphi 0, %s68
    %s72 = sphi 0, %s71
    %s88 = sphi 0, %s72
  $region4: #{tpu_custom_call.1} parent=0 // loop_header_branch
    %10 = sbr.rel (%p8) target = $region8
  $region5: #{tpu_custom_call.1} parent=0 // loop_body
    %s12 = ssub.s32 %s7, 1
    %s13 = ssub.s32 %s7, 2
    %s23 = sadd.s32 1, %s16
    %p24 = scmp.ge.s32.totalorder %s23, 1
    %s25 = scalar_select %p24, 0, %s23
    %s26 = sadd.s32 1, %s15
    %s27 = scalar_select %p24, %s26, %s15
    %p28 = scmp.ge.s32.totalorder %s27, 1
    %s29 = scalar_select %p28, 0, %s27
    %s30 = sadd.s32 1, %s14
    %s31 = scalar_select %p28, %s30, %s14
    %p32 = scmp.ge.s32.totalorder %s31, 2
    %s33 = scalar_select %p32, 0, %s31
    %s34 = ssub.s32 %s14, %s33
    %s35 = ssub.s32 %s15, %s29
    %s36 = sor.u32 %s34, %s35
    %p37 = scmp.eq.s32.totalorder %s36, 0
    %s39 = sadd.s32 %s38, 1
    %s40 = scalar_select %p37, %s38, %s39
    %p43 = pneg %p37
    %p44 = scmp.eq.s32.totalorder %s7, 1
    %p45 = por %p43, %p44
    %p46 = scmp.ne.s32.totalorder %s38, %s41
    %p47 = scmp.eq.s32.totalorder %s7, 0
    %p48 = por %p46, %p47
    %p49 = scmp.ne.s32.totalorder %s38, %s41
    %p50 = scmp.eq.s32.totalorder %s12, 1
    %p51 = por %p49, %p50
    %p52 = scmp.ne.s32.totalorder %s41, %s42
    %p53 = scmp.eq.s32.totalorder %s12, 0
    %p54 = por %p52, %p53
    %p55 = scmp.ne.s32.totalorder %s41, %s42
    %p56 = scmp.eq.s32.totalorder %s13, 1
    %p57 = por %p55, %p56
    %p59 = scmp.ne.s32.totalorder %s42, %s58
    %p60 = scmp.eq.s32.totalorder %s13, 0
    %p61 = por %p59, %p60
    %s62 = ssub.s32 %s14, %s33
    %s63 = ssub.s32 %s15, %s29
    %s64 = sor.u32 %s62, %s63
    %s65 = ssub.s32 %s16, %s25
    %s66 = sor.u32 %s64, %s65
    %p67 = scmp.eq.s32.totalorder %s66, 0
    %s69 = sadd.s32 %s68, 1
    %s70 = scalar_select %p67, %s68, %s69
    %p73 = pneg %p67
    %p74 = scmp.eq.s32.totalorder %s7, 1
    %p75 = por %p73, %p74
    %p76 = scmp.ne.s32.totalorder %s68, %s71
    %p77 = scmp.eq.s32.totalorder %s7, 0
    %p78 = por %p76, %p77
    %p79 = scmp.ne.s32.totalorder %s68, %s71
    %p80 = scmp.eq.s32.totalorder %s12, 1
    %p81 = por %p79, %p80
    %p82 = scmp.ne.s32.totalorder %s71, %s72
    %p83 = scmp.eq.s32.totalorder %s12, 0
    %p84 = por %p82, %p83
    %p85 = scmp.ne.s32.totalorder %s71, %s72
    %p86 = scmp.eq.s32.totalorder %s13, 1
    %p87 = por %p85, %p86
    %p89 = scmp.ne.s32.totalorder %s72, %s88
    %p90 = scmp.eq.s32.totalorder %s13, 0
    %p91 = por %p89, %p90
    %p92 = scmp.le.s32.totalorder 1, %s7
    %p93 = scmp.lt.s32.totalorder %s7, 3
    %p94 = pnand %p92, %p93
    %p95 = pneg %p94
    // Predicated region
    $region9: #{tpu_custom_call.1} parent=5 // pred_check
      _
    $region10: #{tpu_custom_call.1} parent=5 // pred_check_branch
      %97 = sbr.rel (%p94) target = $region12
    $region11: #{tpu_custom_call.1} parent=5 // pred_region
      %s98 = ssub.s32 %s7, 1
    $region12: #{tpu_custom_call.1} parent=5 // pred_fallthru
      _
    %p99 = scmp.lt.s32.totalorder %s7, 2
    // Predicated region
    $region13: #{tpu_custom_call.1} parent=5 // pred_check
      %p100 = pneg %p99
    $region14: #{tpu_custom_call.1} parent=5 // pred_check_branch
      %102 = sbr.rel (%p100) target = $region16
    $region15: #{tpu_custom_call.1} parent=5 // pred_region
      // Predicated region
      $region17: #{tpu_custom_call.1} parent=15 // pred_check
        %p103 = pneg %p48
      $region18: #{tpu_custom_call.1} parent=15 // pred_check_branch
        %105 = sbr.rel (%p103) target = $region20
      $region19: #{tpu_custom_call.1} parent=15 // pred_region
        %s106 = smul.u32 4, %s15
        %p107 = scmp.lt.s32.totalorder %s14, 1
        %s108 = scalar_select %p107, %s14, 1
        %p109 = scmp.lt.s32.totalorder %s106, 3
        %s110 = scalar_select %p109, %s106, 3
        %s111 = smul.addr %s110, 3
        %s112 = smul.addr %s108, 12
        %s113 = sadd.s32 %s111, %s112
        %s114 = smul.addr %s113, 8
        %s115 = scalar_lea.vmem %s0, %s114
        %s116 = smul.u32 4, %s15
      $region20: #{tpu_custom_call.1} parent=15 // pred_fallthru
        _
    $region16: #{tpu_custom_call.1} parent=5 // pred_fallthru
      _
    %p117 = scmp.le.s32.totalorder 1, %s7
    %p118 = scmp.lt.s32.totalorder %s7, 3
    %p119 = pnand %p117, %p118
    %p120 = pneg %p119
    // Predicated region
    $region21: #{tpu_custom_call.1} parent=5 // pred_check
      _
    $region22: #{tpu_custom_call.1} parent=5 // pred_check_branch
      %122 = sbr.rel (%p119) target = $region24
    $region23: #{tpu_custom_call.1} parent=5 // pred_region
      %s123 = ssub.s32 %s7, 1
      %s124 = smul.u32 4, %s18
      %p125 = scmp.lt.s32.totalorder %s17, 1
      %s126 = scalar_select %p125, %s17, 1
      %p127 = scmp.lt.s32.totalorder %s124, 3
      %s128 = scalar_select %p127, %s124, 3
      %s129 = smul.addr %s128, 3
      %s130 = smul.addr %s126, 12
      %s131 = sadd.s32 %s129, %s130
      %s132 = smul.addr %s131, 8
      %s133 = scalar_lea.vmem %s0, %s132
      %p134 = pneg %p54
      %p135 = pneg %p51
      %p136 = pneg %p84
      %p137 = pneg %p81
      %s138 = smul.u32 4, %s18
      %s139 = smul.u32 2, %s19
      %p140 = scmp.lt.s32.totalorder %s17, 1
      %s141 = scalar_select %p140, %s17, 1
      %p142 = scmp.lt.s32.totalorder %s138, 3
      %s143 = scalar_select %p142, %s138, 3
      %p144 = scmp.lt.s32.totalorder %s139, 1
      %s145 = scalar_select %p144, %s139, 1
      %s146 = smul.addr %s143, 4
      %s147 = sadd.s32 %s145, %s146
      %s148 = smul.addr %s141, 16
      %s149 = sadd.s32 %s147, %s148
      %s150 = smul.addr %s149, 8
      %s151 = scalar_lea.vmem %s1, %s150
      %s152 = smul.u32 4, %s18
      %p153 = scmp.lt.s32.totalorder %s17, 1
      %s154 = scalar_select %p153, %s17, 1
      %p155 = scmp.lt.s32.totalorder %s152, 3
      %s156 = scalar_select %p155, %s152, 3
      %s157 = smul.addr %s156, 3
      %s158 = smul.addr %s154, 12
      %s159 = sadd.s32 %s157, %s158
      %s160 = smul.addr %s159, 8
      %s161 = scalar_lea.vmem %s0, %s160
      %s162 = smul.u32 4, %s18
      %s163 = smul.u32 4, %s18
      %s164 = smul.u32 2, %s19
      %p165 = scmp.lt.s32.totalorder %s17, 1
      %s166 = scalar_select %p165, %s17, 1
      %p167 = scmp.lt.s32.totalorder %s163, 3
      %s168 = scalar_select %p167, %s163, 3
      %p169 = scmp.lt.s32.totalorder %s164, 1
      %s170 = scalar_select %p169, %s164, 1
      %s171 = smul.addr %s168, 4
      %s172 = sadd.s32 %s170, %s171
      %s173 = smul.addr %s166, 16
      %s174 = sadd.s32 %s172, %s173
      %s175 = smul.addr %s174, 8
      %s176 = scalar_lea.vmem %s1, %s175
      %s177 = smul.u32 4, %s18
      %s178 = smul.u32 2, %s19
      %v179 = vld [vmem:[%s161] sm:$0x1]
      %v180 = vld [vmem:[%s161 + $0x18] sm:$0x1]
      %v181 = vld [vmem:[%s161 + $0x30] sm:$0x1]
      %v182 = vld [vmem:[%s161 + $0x48] sm:$0x1]
      %vm183 = vcmask 122880
      %184 = vst.msk [vmem:[%s176] sm:$0x1] %vm183, %v179
      %185 = vst.msk [vmem:[%s176 + $0x20] sm:$0x1] %vm183, %v180
      %186 = vst.msk [vmem:[%s176 + $0x40] sm:$0x1] %vm183, %v181
      %187 = vst.msk [vmem:[%s176 + $0x60] sm:$0x1] %vm183, %v182
      %v188 = vld [vmem:[%s161 + $0x1] sm:$0x1]
      %v189 = vld [vmem:[%s161 + $0x19] sm:$0x1]
      %v190 = vld [vmem:[%s161 + $0x31] sm:$0x1]
      %v191 = vld [vmem:[%s161 + $0x49] sm:$0x1]
      %196 = vrot.lane.b32.xlu0 %v188, 16
      %v197 = vpop.permute.xlu0 %196
      %198 = vrot.lane.b32.xlu0 %v189, 16
      %v199 = vpop.permute.xlu0 %198
      %200 = vrot.lane.b32.xlu0 %v190, 16
      %v201 = vpop.permute.xlu0 %200
      %202 = vrot.lane.b32.xlu0 %v191, 16
      %v203 = vpop.permute.xlu0 %202
      %vm208 = vcmask 254080
      %209 = vst.msk [vmem:[%s176] sm:$0x1] %vm208, %v197
      %210 = vst.msk [vmem:[%s176 + $0x20] sm:$0x1] %vm208, %v199
      %211 = vst.msk [vmem:[%s176 + $0x40] sm:$0x1] %vm208, %v201
      %212 = vst.msk [vmem:[%s176 + $0x60] sm:$0x1] %vm208, %v203
      %v213 = vld [vmem:[%s161 + $0x2] sm:$0x1]
      %v214 = vld [vmem:[%s161 + $0x1a] sm:$0x1]
      %v215 = vld [vmem:[%s161 + $0x32] sm:$0x1]
      %v216 = vld [vmem:[%s161 + $0x4a] sm:$0x1]
      %221 = vrot.lane.b32.xlu0 %v213, 32
      %v222 = vpop.permute.xlu0 %221
      %223 = vrot.lane.b32.xlu0 %v214, 32
      %v224 = vpop.permute.xlu0 %223
      %225 = vrot.lane.b32.xlu0 %v215, 32
      %v226 = vpop.permute.xlu0 %225
      %227 = vrot.lane.b32.xlu0 %v216, 32
      %v228 = vpop.permute.xlu0 %227
      %vm233 = vcmask 385280
      %234 = vst.msk [vmem:[%s176] sm:$0x1] %vm233, %v222
      %235 = vst.msk [vmem:[%s176 + $0x20] sm:$0x1] %vm233, %v224
      %236 = vst.msk [vmem:[%s176 + $0x40] sm:$0x1] %vm233, %v226
      %237 = vst.msk [vmem:[%s176 + $0x60] sm:$0x1] %vm233, %v228
      %v238 = vld [vmem:[%s161 + $0x3] sm:$0x1]
      %v239 = vld [vmem:[%s161 + $0x1b] sm:$0x1]
      %v240 = vld [vmem:[%s161 + $0x33] sm:$0x1]
      %v241 = vld [vmem:[%s161 + $0x4b] sm:$0x1]
      %246 = vrot.lane.b32.xlu0 %v238, 48
      %v247 = vpop.permute.xlu0 %246
      %248 = vrot.lane.b32.xlu0 %v239, 48
      %v249 = vpop.permute.xlu0 %248
      %250 = vrot.lane.b32.xlu0 %v240, 48
      %v251 = vpop.permute.xlu0 %250
      %252 = vrot.lane.b32.xlu0 %v241, 48
      %v253 = vpop.permute.xlu0 %252
      %vm258 = vcmask 516480
      %259 = vst.msk [vmem:[%s176] sm:$0x1] %vm258, %v247
      %260 = vst.msk [vmem:[%s176 + $0x20] sm:$0x1] %vm258, %v249
      %261 = vst.msk [vmem:[%s176 + $0x40] sm:$0x1] %vm258, %v251
      %262 = vst.msk [vmem:[%s176 + $0x60] sm:$0x1] %vm258, %v253
      %v263 = vld [vmem:[%s161 + $0x4] sm:$0x1]
      %v264 = vld [vmem:[%s161 + $0x1c] sm:$0x1]
      %v265 = vld [vmem:[%s161 + $0x34] sm:$0x1]
      %v266 = vld [vmem:[%s161 + $0x4c] sm:$0x1]
      %271 = vrot.lane.b32.xlu0 %v263, 64
      %v272 = vpop.permute.xlu0 %271
      %273 = vrot.lane.b32.xlu0 %v264, 64
      %v274 = vpop.permute.xlu0 %273
      %275 = vrot.lane.b32.xlu0 %v265, 64
      %v276 = vpop.permute.xlu0 %275
      %277 = vrot.lane.b32.xlu0 %v266, 64
      %v278 = vpop.permute.xlu0 %277
      %vm283 = vcmask 647680
      %284 = vst.msk [vmem:[%s176] sm:$0x1] %vm283, %v272
      %285 = vst.msk [vmem:[%s176 + $0x20] sm:$0x1] %vm283, %v274
      %286 = vst.msk [vmem:[%s176 + $0x40] sm:$0x1] %vm283, %v276
      %287 = vst.msk [vmem:[%s176 + $0x60] sm:$0x1] %vm283, %v278
      %v288 = vld [vmem:[%s161 + $0x5] sm:$0x1]
      %v289 = vld [vmem:[%s161 + $0x1d] sm:$0x1]
      %v290 = vld [vmem:[%s161 + $0x35] sm:$0x1]
      %v291 = vld [vmem:[%s161 + $0x4d] sm:$0x1]
      %296 = vrot.lane.b32.xlu0 %v288, 80
      %v297 = vpop.permute.xlu0 %296
      %298 = vrot.lane.b32.xlu0 %v289, 80
      %v299 = vpop.permute.xlu0 %298
      %300 = vrot.lane.b32.xlu0 %v290, 80
      %v301 = vpop.permute.xlu0 %300
      %302 = vrot.lane.b32.xlu0 %v291, 80
      %v303 = vpop.permute.xlu0 %302
      %vm308 = vcmask 778880
      %309 = vst.msk [vmem:[%s176] sm:$0x1] %vm308, %v297
      %310 = vst.msk [vmem:[%s176 + $0x20] sm:$0x1] %vm308, %v299
      %311 = vst.msk [vmem:[%s176 + $0x40] sm:$0x1] %vm308, %v301
      %312 = vst.msk [vmem:[%s176 + $0x60] sm:$0x1] %vm308, %v303
      %v313 = vld [vmem:[%s161 + $0x6] sm:$0x1]
      %v314 = vld [vmem:[%s161 + $0x1e] sm:$0x1]
      %v315 = vld [vmem:[%s161 + $0x36] sm:$0x1]
      %v316 = vld [vmem:[%s161 + $0x4e] sm:$0x1]
      %321 = vrot.lane.b32.xlu0 %v313, 96
      %v322 = vpop.permute.xlu0 %321
      %323 = vrot.lane.b32.xlu0 %v314, 96
      %v324 = vpop.permute.xlu0 %323
      %325 = vrot.lane.b32.xlu0 %v315, 96
      %v326 = vpop.permute.xlu0 %325
      %327 = vrot.lane.b32.xlu0 %v316, 96
      %v328 = vpop.permute.xlu0 %327
      %vm333 = vcmask 910080
      %334 = vst.msk [vmem:[%s176] sm:$0x1] %vm333, %v322
      %335 = vst.msk [vmem:[%s176 + $0x20] sm:$0x1] %vm333, %v324
      %336 = vst.msk [vmem:[%s176 + $0x40] sm:$0x1] %vm333, %v326
      %337 = vst.msk [vmem:[%s176 + $0x60] sm:$0x1] %vm333, %v328
      %v338 = vld [vmem:[%s161 + $0x7] sm:$0x1]
      %v339 = vld [vmem:[%s161 + $0x1f] sm:$0x1]
      %v340 = vld [vmem:[%s161 + $0x37] sm:$0x1]
      %v341 = vld [vmem:[%s161 + $0x4f] sm:$0x1]
      %346 = vrot.lane.b32.xlu0 %v338, 112
      %v347 = vpop.permute.xlu0 %346
      %348 = vrot.lane.b32.xlu0 %v339, 112
      %v349 = vpop.permute.xlu0 %348
      %350 = vrot.lane.b32.xlu0 %v340, 112
      %v351 = vpop.permute.xlu0 %350
      %352 = vrot.lane.b32.xlu0 %v341, 112
      %v353 = vpop.permute.xlu0 %352
      %vm358 = vcmask 1041280
      %359 = vst.msk [vmem:[%s176] sm:$0x1] %vm358, %v347
      %360 = vst.msk [vmem:[%s176 + $0x20] sm:$0x1] %vm358, %v349
      %361 = vst.msk [vmem:[%s176 + $0x40] sm:$0x1] %vm358, %v351
      %362 = vst.msk [vmem:[%s176 + $0x60] sm:$0x1] %vm358, %v353
      %v363 = vld [vmem:[%s161 + $0x8] sm:$0x1]
      %v364 = vld [vmem:[%s161 + $0x20] sm:$0x1]
      %v365 = vld [vmem:[%s161 + $0x38] sm:$0x1]
      %v366 = vld [vmem:[%s161 + $0x50] sm:$0x1]
      %367 = vst.msk [vmem:[%s176 + $0x8] sm:$0x1] %vm183, %v363
      %368 = vst.msk [vmem:[%s176 + $0x28] sm:$0x1] %vm183, %v364
      %369 = vst.msk [vmem:[%s176 + $0x48] sm:$0x1] %vm183, %v365
      %370 = vst.msk [vmem:[%s176 + $0x68] sm:$0x1] %vm183, %v366
      %v371 = vld [vmem:[%s161 + $0x9] sm:$0x1]
      %v372 = vld [vmem:[%s161 + $0x21] sm:$0x1]
      %v373 = vld [vmem:[%s161 + $0x39] sm:$0x1]
      %v374 = vld [vmem:[%s161 + $0x51] sm:$0x1]
      %379 = vrot.lane.b32.xlu0 %v371, 16
      %v380 = vpop.permute.xlu0 %379
      %381 = vrot.lane.b32.xlu0 %v372, 16
      %v382 = vpop.permute.xlu0 %381
      %383 = vrot.lane.b32.xlu0 %v373, 16
      %v384 = vpop.permute.xlu0 %383
      %385 = vrot.lane.b32.xlu0 %v374, 16
      %v386 = vpop.permute.xlu0 %385
      %391 = vst.msk [vmem:[%s176 + $0x8] sm:$0x1] %vm208, %v380
      %392 = vst.msk [vmem:[%s176 + $0x28] sm:$0x1] %vm208, %v382
      %393 = vst.msk [vmem:[%s176 + $0x48] sm:$0x1] %vm208, %v384
      %394 = vst.msk [vmem:[%s176 + $0x68] sm:$0x1] %vm208, %v386
      %v395 = vld [vmem:[%s161 + $0xa] sm:$0x1]
      %v396 = vld [vmem:[%s161 + $0x22] sm:$0x1]
      %v397 = vld [vmem:[%s161 + $0x3a] sm:$0x1]
      %v398 = vld [vmem:[%s161 + $0x52] sm:$0x1]
      %403 = vrot.lane.b32.xlu0 %v395, 32
      %v404 = vpop.permute.xlu0 %403
      %405 = vrot.lane.b32.xlu0 %v396, 32
      %v406 = vpop.permute.xlu0 %405
      %407 = vrot.lane.b32.xlu0 %v397, 32
      %v408 = vpop.permute.xlu0 %407
      %409 = vrot.lane.b32.xlu0 %v398, 32
      %v410 = vpop.permute.xlu0 %409
      %415 = vst.msk [vmem:[%s176 + $0x8] sm:$0x1] %vm233, %v404
      %416 = vst.msk [vmem:[%s176 + $0x28] sm:$0x1] %vm233, %v406
      %417 = vst.msk [vmem:[%s176 + $0x48] sm:$0x1] %vm233, %v408
      %418 = vst.msk [vmem:[%s176 + $0x68] sm:$0x1] %vm233, %v410
      %v419 = vld [vmem:[%s161 + $0xb] sm:$0x1]
      %v420 = vld [vmem:[%s161 + $0x23] sm:$0x1]
      %v421 = vld [vmem:[%s161 + $0x3b] sm:$0x1]
      %v422 = vld [vmem:[%s161 + $0x53] sm:$0x1]
      %427 = vrot.lane.b32.xlu0 %v419, 48
      %v428 = vpop.permute.xlu0 %427
      %429 = vrot.lane.b32.xlu0 %v420, 48
      %v430 = vpop.permute.xlu0 %429
      %431 = vrot.lane.b32.xlu0 %v421, 48
      %v432 = vpop.permute.xlu0 %431
      %433 = vrot.lane.b32.xlu0 %v422, 48
      %v434 = vpop.permute.xlu0 %433
      %439 = vst.msk [vmem:[%s176 + $0x8] sm:$0x1] %vm258, %v428
      %440 = vst.msk [vmem:[%s176 + $0x28] sm:$0x1] %vm258, %v430
      %441 = vst.msk [vmem:[%s176 + $0x48] sm:$0x1] %vm258, %v432
      %442 = vst.msk [vmem:[%s176 + $0x68] sm:$0x1] %vm258, %v434
      %v443 = vld [vmem:[%s161 + $0xc] sm:$0x1]
      %v444 = vld [vmem:[%s161 + $0x24] sm:$0x1]
      %v445 = vld [vmem:[%s161 + $0x3c] sm:$0x1]
      %v446 = vld [vmem:[%s161 + $0x54] sm:$0x1]
      %451 = vrot.lane.b32.xlu0 %v443, 64
      %v452 = vpop.permute.xlu0 %451
      %453 = vrot.lane.b32.xlu0 %v444, 64
      %v454 = vpop.permute.xlu0 %453
      %455 = vrot.lane.b32.xlu0 %v445, 64
      %v456 = vpop.permute.xlu0 %455
      %457 = vrot.lane.b32.xlu0 %v446, 64
      %v458 = vpop.permute.xlu0 %457
      %463 = vst.msk [vmem:[%s176 + $0x8] sm:$0x1] %vm283, %v452
      %464 = vst.msk [vmem:[%s176 + $0x28] sm:$0x1] %vm283, %v454
      %465 = vst.msk [vmem:[%s176 + $0x48] sm:$0x1] %vm283, %v456
      %466 = vst.msk [vmem:[%s176 + $0x68] sm:$0x1] %vm283, %v458
      %v467 = vld [vmem:[%s161 + $0xd] sm:$0x1]
      %v468 = vld [vmem:[%s161 + $0x25] sm:$0x1]
      %v469 = vld [vmem:[%s161 + $0x3d] sm:$0x1]
      %v470 = vld [vmem:[%s161 + $0x55] sm:$0x1]
      %475 = vrot.lane.b32.xlu0 %v467, 80
      %v476 = vpop.permute.xlu0 %475
      %477 = vrot.lane.b32.xlu0 %v468, 80
      %v478 = vpop.permute.xlu0 %477
      %479 = vrot.lane.b32.xlu0 %v469, 80
      %v480 = vpop.permute.xlu0 %479
      %481 = vrot.lane.b32.xlu0 %v470, 80
      %v482 = vpop.permute.xlu0 %481
      %487 = vst.msk [vmem:[%s176 + $0x8] sm:$0x1] %vm308, %v476
      %488 = vst.msk [vmem:[%s176 + $0x28] sm:$0x1] %vm308, %v478
      %489 = vst.msk [vmem:[%s176 + $0x48] sm:$0x1] %vm308, %v480
      %490 = vst.msk [vmem:[%s176 + $0x68] sm:$0x1] %vm308, %v482
      %v491 = vld [vmem:[%s161 + $0xe] sm:$0x1]
      %v492 = vld [vmem:[%s161 + $0x26] sm:$0x1]
      %v493 = vld [vmem:[%s161 + $0x3e] sm:$0x1]
      %v494 = vld [vmem:[%s161 + $0x56] sm:$0x1]
      %499 = vrot.lane.b32.xlu0 %v491, 96
      %v500 = vpop.permute.xlu0 %499
      %501 = vrot.lane.b32.xlu0 %v492, 96
      %v502 = vpop.permute.xlu0 %501
      %503 = vrot.lane.b32.xlu0 %v493, 96
      %v504 = vpop.permute.xlu0 %503
      %505 = vrot.lane.b32.xlu0 %v494, 96
      %v506 = vpop.permute.xlu0 %505
      %511 = vst.msk [vmem:[%s176 + $0x8] sm:$0x1] %vm333, %v500
      %512 = vst.msk [vmem:[%s176 + $0x28] sm:$0x1] %vm333, %v502
      %513 = vst.msk [vmem:[%s176 + $0x48] sm:$0x1] %vm333, %v504
      %514 = vst.msk [vmem:[%s176 + $0x68] sm:$0x1] %vm333, %v506
      %v515 = vld [vmem:[%s161 + $0xf] sm:$0x1]
      %v516 = vld [vmem:[%s161 + $0x27] sm:$0x1]
      %v517 = vld [vmem:[%s161 + $0x3f] sm:$0x1]
      %v518 = vld [vmem:[%s161 + $0x57] sm:$0x1]
      %523 = vrot.lane.b32.xlu0 %v515, 112
      %v524 = vpop.permute.xlu0 %523
      %525 = vrot.lane.b32.xlu0 %v516, 112
      %v526 = vpop.permute.xlu0 %525
      %527 = vrot.lane.b32.xlu0 %v517, 112
      %v528 = vpop.permute.xlu0 %527
      %529 = vrot.lane.b32.xlu0 %v518, 112
      %v530 = vpop.permute.xlu0 %529
      %535 = vst.msk [vmem:[%s176 + $0x8] sm:$0x1] %vm358, %v524
      %536 = vst.msk [vmem:[%s176 + $0x28] sm:$0x1] %vm358, %v526
      %537 = vst.msk [vmem:[%s176 + $0x48] sm:$0x1] %vm358, %v528
      %538 = vst.msk [vmem:[%s176 + $0x68] sm:$0x1] %vm358, %v530
      %v539 = vld [vmem:[%s161] sm:$0x1]
      %v540 = vld [vmem:[%s161 + $0x18] sm:$0x1]
      %v541 = vld [vmem:[%s161 + $0x30] sm:$0x1]
      %v542 = vld [vmem:[%s161 + $0x48] sm:$0x1]
      %547 = vrot.lane.b32.xlu0 %v539, 127
      %v548 = vpop.permute.xlu0 %547
      %549 = vrot.lane.b32.xlu0 %v540, 127
      %v550 = vpop.permute.xlu0 %549
      %551 = vrot.lane.b32.xlu0 %v541, 127
      %v552 = vpop.permute.xlu0 %551
      %553 = vrot.lane.b32.xlu0 %v542, 127
      %v554 = vpop.permute.xlu0 %553
      %559 = vst.msk [vmem:[%s176 + $0x1] sm:$0x1] %vm183, %v548
      %560 = vst.msk [vmem:[%s176 + $0x21] sm:$0x1] %vm183, %v550
      %561 = vst.msk [vmem:[%s176 + $0x41] sm:$0x1] %vm183, %v552
      %562 = vst.msk [vmem:[%s176 + $0x61] sm:$0x1] %vm183, %v554
      %v563 = vld [vmem:[%s161 + $0x1] sm:$0x1]
      %v564 = vld [vmem:[%s161 + $0x19] sm:$0x1]
      %v565 = vld [vmem:[%s161 + $0x31] sm:$0x1]
      %v566 = vld [vmem:[%s161 + $0x49] sm:$0x1]
      %571 = vrot.lane.b32.xlu0 %v563, 15
      %v572 = vpop.permute.xlu0 %571
      %573 = vrot.lane.b32.xlu0 %v564, 15
      %v574 = vpop.permute.xlu0 %573
      %575 = vrot.lane.b32.xlu0 %v565, 15
      %v576 = vpop.permute.xlu0 %575
      %577 = vrot.lane.b32.xlu0 %v566, 15
      %v578 = vpop.permute.xlu0 %577
      %583 = vst.msk [vmem:[%s176 + $0x1] sm:$0x1] %vm208, %v572
      %584 = vst.msk [vmem:[%s176 + $0x21] sm:$0x1] %vm208, %v574
      %585 = vst.msk [vmem:[%s176 + $0x41] sm:$0x1] %vm208, %v576
      %586 = vst.msk [vmem:[%s176 + $0x61] sm:$0x1] %vm208, %v578
      %v587 = vld [vmem:[%s161 + $0x2] sm:$0x1]
      %v588 = vld [vmem:[%s161 + $0x1a] sm:$0x1]
      %v589 = vld [vmem:[%s161 + $0x32] sm:$0x1]
      %v590 = vld [vmem:[%s161 + $0x4a] sm:$0x1]
      %595 = vrot.lane.b32.xlu0 %v587, 31
      %v596 = vpop.permute.xlu0 %595
      %597 = vrot.lane.b32.xlu0 %v588, 31
      %v598 = vpop.permute.xlu0 %597
      %599 = vrot.lane.b32.xlu0 %v589, 31
      %v600 = vpop.permute.xlu0 %599
      %601 = vrot.lane.b32.xlu0 %v590, 31
      %v602 = vpop.permute.xlu0 %601
      %607 = vst.msk [vmem:[%s176 + $0x1] sm:$0x1] %vm233, %v596
      %608 = vst.msk [vmem:[%s176 + $0x21] sm:$0x1] %vm233, %v598
      %609 = vst.msk [vmem:[%s176 + $0x41] sm:$0x1] %vm233, %v600
      %610 = vst.msk [vmem:[%s176 + $0x61] sm:$0x1] %vm233, %v602
      %v611 = vld [vmem:[%s161 + $0x3] sm:$0x1]
      %v612 = vld [vmem:[%s161 + $0x1b] sm:$0x1]
      %v613 = vld [vmem:[%s161 + $0x33] sm:$0x1]
      %v614 = vld [vmem:[%s161 + $0x4b] sm:$0x1]
      %619 = vrot.lane.b32.xlu0 %v611, 47
      %v620 = vpop.permute.xlu0 %619
      %621 = vrot.lane.b32.xlu0 %v612, 47
      %v622 = vpop.permute.xlu0 %621
      %623 = vrot.lane.b32.xlu0 %v613, 47
      %v624 = vpop.permute.xlu0 %623
      %625 = vrot.lane.b32.xlu0 %v614, 47
      %v626 = vpop.permute.xlu0 %625
      %631 = vst.msk [vmem:[%s176 + $0x1] sm:$0x1] %vm258, %v620
      %632 = vst.msk [vmem:[%s176 + $0x21] sm:$0x1] %vm258, %v622
      %633 = vst.msk [vmem:[%s176 + $0x41] sm:$0x1] %vm258, %v624
      %634 = vst.msk [vmem:[%s176 + $0x61] sm:$0x1] %vm258, %v626
      %v635 = vld [vmem:[%s161 + $0x4] sm:$0x1]
      %v636 = vld [vmem:[%s161 + $0x1c] sm:$0x1]
      %v637 = vld [vmem:[%s161 + $0x34] sm:$0x1]
      %v638 = vld [vmem:[%s161 + $0x4c] sm:$0x1]
      %643 = vrot.lane.b32.xlu0 %v635, 63
      %v644 = vpop.permute.xlu0 %643
      %645 = vrot.lane.b32.xlu0 %v636, 63
      %v646 = vpop.permute.xlu0 %645
      %647 = vrot.lane.b32.xlu0 %v637, 63
      %v648 = vpop.permute.xlu0 %647
      %649 = vrot.lane.b32.xlu0 %v638, 63
      %v650 = vpop.permute.xlu0 %649
      %655 = vst.msk [vmem:[%s176 + $0x1] sm:$0x1] %vm283, %v644
      %656 = vst.msk [vmem:[%s176 + $0x21] sm:$0x1] %vm283, %v646
      %657 = vst.msk [vmem:[%s176 + $0x41] sm:$0x1] %vm283, %v648
      %658 = vst.msk [vmem:[%s176 + $0x61] sm:$0x1] %vm283, %v650
      %v659 = vld [vmem:[%s161 + $0x5] sm:$0x1]
      %v660 = vld [vmem:[%s161 + $0x1d] sm:$0x1]
      %v661 = vld [vmem:[%s161 + $0x35] sm:$0x1]
      %v662 = vld [vmem:[%s161 + $0x4d] sm:$0x1]
      %667 = vrot.lane.b32.xlu0 %v659, 79
      %v668 = vpop.permute.xlu0 %667
      %669 = vrot.lane.b32.xlu0 %v660, 79
      %v670 = vpop.permute.xlu0 %669
      %671 = vrot.lane.b32.xlu0 %v661, 79
      %v672 = vpop.permute.xlu0 %671
      %673 = vrot.lane.b32.xlu0 %v662, 79
      %v674 = vpop.permute.xlu0 %673
      %679 = vst.msk [vmem:[%s176 + $0x1] sm:$0x1] %vm308, %v668
      %680 = vst.msk [vmem:[%s176 + $0x21] sm:$0x1] %vm308, %v670
      %681 = vst.msk [vmem:[%s176 + $0x41] sm:$0x1] %vm308, %v672
      %682 = vst.msk [vmem:[%s176 + $0x61] sm:$0x1] %vm308, %v674
      %v683 = vld [vmem:[%s161 + $0x6] sm:$0x1]
      %v684 = vld [vmem:[%s161 + $0x1e] sm:$0x1]
      %v685 = vld [vmem:[%s161 + $0x36] sm:$0x1]
      %v686 = vld [vmem:[%s161 + $0x4e] sm:$0x1]
      %691 = vrot.lane.b32.xlu0 %v683, 95
      %v692 = vpop.permute.xlu0 %691
      %693 = vrot.lane.b32.xlu0 %v684, 95
      %v694 = vpop.permute.xlu0 %693
      %695 = vrot.lane.b32.xlu0 %v685, 95
      %v696 = vpop.permute.xlu0 %695
      %697 = vrot.lane.b32.xlu0 %v686, 95
      %v698 = vpop.permute.xlu0 %697
      %703 = vst.msk [vmem:[%s176 + $0x1] sm:$0x1] %vm333, %v692
      %704 = vst.msk [vmem:[%s176 + $0x21] sm:$0x1] %vm333, %v694
      %705 = vst.msk [vmem:[%s176 + $0x41] sm:$0x1] %vm333, %v696
      %706 = vst.msk [vmem:[%s176 + $0x61] sm:$0x1] %vm333, %v698
      %v707 = vld [vmem:[%s161 + $0x7] sm:$0x1]
      %v708 = vld [vmem:[%s161 + $0x1f] sm:$0x1]
      %v709 = vld [vmem:[%s161 + $0x37] sm:$0x1]
      %v710 = vld [vmem:[%s161 + $0x4f] sm:$0x1]
      %715 = vrot.lane.b32.xlu0 %v707, 111
      %v716 = vpop.permute.xlu0 %715
      %717 = vrot.lane.b32.xlu0 %v708, 111
      %v718 = vpop.permute.xlu0 %717
      %719 = vrot.lane.b32.xlu0 %v709, 111
      %v720 = vpop.permute.xlu0 %719
      %721 = vrot.lane.b32.xlu0 %v710, 111
      %v722 = vpop.permute.xlu0 %721
      %727 = vst.msk [vmem:[%s176 + $0x1] sm:$0x1] %vm358, %v716
      %728 = vst.msk [vmem:[%s176 + $0x21] sm:$0x1] %vm358, %v718
      %729 = vst.msk [vmem:[%s176 + $0x41] sm:$0x1] %vm358, %v720
      %730 = vst.msk [vmem:[%s176 + $0x61] sm:$0x1] %vm358, %v722
      %v731 = vld [vmem:[%s161 + $0x8] sm:$0x1]
      %v732 = vld [vmem:[%s161 + $0x20] sm:$0x1]
      %v733 = vld [vmem:[%s161 + $0x38] sm:$0x1]
      %v734 = vld [vmem:[%s161 + $0x50] sm:$0x1]
      %739 = vrot.lane.b32.xlu0 %v731, 127
      %v740 = vpop.permute.xlu0 %739
      %741 = vrot.lane.b32.xlu0 %v732, 127
      %v742 = vpop.permute.xlu0 %741
      %743 = vrot.lane.b32.xlu0 %v733, 127
      %v744 = vpop.permute.xlu0 %743
      %745 = vrot.lane.b32.xlu0 %v734, 127
      %v746 = vpop.permute.xlu0 %745
      %751 = vst.msk [vmem:[%s176 + $0x9] sm:$0x1] %vm183, %v740
      %752 = vst.msk [vmem:[%s176 + $0x29] sm:$0x1] %vm183, %v742
      %753 = vst.msk [vmem:[%s176 + $0x49] sm:$0x1] %vm183, %v744
      %754 = vst.msk [vmem:[%s176 + $0x69] sm:$0x1] %vm183, %v746
      %v755 = vld [vmem:[%s161 + $0x9] sm:$0x1]
      %v756 = vld [vmem:[%s161 + $0x21] sm:$0x1]
      %v757 = vld [vmem:[%s161 + $0x39] sm:$0x1]
      %v758 = vld [vmem:[%s161 + $0x51] sm:$0x1]
      %763 = vrot.lane.b32.xlu0 %v755, 15
      %v764 = vpop.permute.xlu0 %763
      %765 = vrot.lane.b32.xlu0 %v756, 15
      %v766 = vpop.permute.xlu0 %765
      %767 = vrot.lane.b32.xlu0 %v757, 15
      %v768 = vpop.permute.xlu0 %767
      %769 = vrot.lane.b32.xlu0 %v758, 15
      %v770 = vpop.permute.xlu0 %769
      %775 = vst.msk [vmem:[%s176 + $0x9] sm:$0x1] %vm208, %v764
      %776 = vst.msk [vmem:[%s176 + $0x29] sm:$0x1] %vm208, %v766
      %777 = vst.msk [vmem:[%s176 + $0x49] sm:$0x1] %vm208, %v768
      %778 = vst.msk [vmem:[%s176 + $0x69] sm:$0x1] %vm208, %v770
      %v779 = vld [vmem:[%s161 + $0xa] sm:$0x1]
      %v780 = vld [vmem:[%s161 + $0x22] sm:$0x1]
      %v781 = vld [vmem:[%s161 + $0x3a] sm:$0x1]
      %v782 = vld [vmem:[%s161 + $0x52] sm:$0x1]
      %787 = vrot.lane.b32.xlu0 %v779, 31
      %v788 = vpop.permute.xlu0 %787
      %789 = vrot.lane.b32.xlu0 %v780, 31
      %v790 = vpop.permute.xlu0 %789
      %791 = vrot.lane.b32.xlu0 %v781, 31
      %v792 = vpop.permute.xlu0 %791
      %793 = vrot.lane.b32.xlu0 %v782, 31
      %v794 = vpop.permute.xlu0 %793
      %799 = vst.msk [vmem:[%s176 + $0x9] sm:$0x1] %vm233, %v788
      %800 = vst.msk [vmem:[%s176 + $0x29] sm:$0x1] %vm233, %v790
      %801 = vst.msk [vmem:[%s176 + $0x49] sm:$0x1] %vm233, %v792
      %802 = vst.msk [vmem:[%s176 + $0x69] sm:$0x1] %vm233, %v794
      %v803 = vld [vmem:[%s161 + $0xb] sm:$0x1]
      %v804 = vld [vmem:[%s161 + $0x23] sm:$0x1]
      %v805 = vld [vmem:[%s161 + $0x3b] sm:$0x1]
      %v806 = vld [vmem:[%s161 + $0x53] sm:$0x1]
      %811 = vrot.lane.b32.xlu0 %v803, 47
      %v812 = vpop.permute.xlu0 %811
      %813 = vrot.lane.b32.xlu0 %v804, 47
      %v814 = vpop.permute.xlu0 %813
      %815 = vrot.lane.b32.xlu0 %v805, 47
      %v816 = vpop.permute.xlu0 %815
      %817 = vrot.lane.b32.xlu0 %v806, 47
      %v818 = vpop.permute.xlu0 %817
      %823 = vst.msk [vmem:[%s176 + $0x9] sm:$0x1] %vm258, %v812
      %824 = vst.msk [vmem:[%s176 + $0x29] sm:$0x1] %vm258, %v814
      %825 = vst.msk [vmem:[%s176 + $0x49] sm:$0x1] %vm258, %v816
      %826 = vst.msk [vmem:[%s176 + $0x69] sm:$0x1] %vm258, %v818
      %v827 = vld [vmem:[%s161 + $0xc] sm:$0x1]
      %v828 = vld [vmem:[%s161 + $0x24] sm:$0x1]
      %v829 = vld [vmem:[%s161 + $0x3c] sm:$0x1]
      %v830 = vld [vmem:[%s161 + $0x54] sm:$0x1]
      %835 = vrot.lane.b32.xlu0 %v827, 63
      %v836 = vpop.permute.xlu0 %835
      %837 = vrot.lane.b32.xlu0 %v828, 63
      %v838 = vpop.permute.xlu0 %837
      %839 = vrot.lane.b32.xlu0 %v829, 63
      %v840 = vpop.permute.xlu0 %839
      %841 = vrot.lane.b32.xlu0 %v830, 63
      %v842 = vpop.permute.xlu0 %841
      %847 = vst.msk [vmem:[%s176 + $0x9] sm:$0x1] %vm283, %v836
      %848 = vst.msk [vmem:[%s176 + $0x29] sm:$0x1] %vm283, %v838
      %849 = vst.msk [vmem:[%s176 + $0x49] sm:$0x1] %vm283, %v840
      %850 = vst.msk [vmem:[%s176 + $0x69] sm:$0x1] %vm283, %v842
      %v851 = vld [vmem:[%s161 + $0xd] sm:$0x1]
      %v852 = vld [vmem:[%s161 + $0x25] sm:$0x1]
      %v853 = vld [vmem:[%s161 + $0x3d] sm:$0x1]
      %v854 = vld [vmem:[%s161 + $0x55] sm:$0x1]
      %859 = vrot.lane.b32.xlu0 %v851, 79
      %v860 = vpop.permute.xlu0 %859
      %861 = vrot.lane.b32.xlu0 %v852, 79
      %v862 = vpop.permute.xlu0 %861
      %863 = vrot.lane.b32.xlu0 %v853, 79
      %v864 = vpop.permute.xlu0 %863
      %865 = vrot.lane.b32.xlu0 %v854, 79
      %v866 = vpop.permute.xlu0 %865
      %871 = vst.msk [vmem:[%s176 + $0x9] sm:$0x1] %vm308, %v860
      %872 = vst.msk [vmem:[%s176 + $0x29] sm:$0x1] %vm308, %v862
      %873 = vst.msk [vmem:[%s176 + $0x49] sm:$0x1] %vm308, %v864
      %874 = vst.msk [vmem:[%s176 + $0x69] sm:$0x1] %vm308, %v866
      %v875 = vld [vmem:[%s161 + $0xe] sm:$0x1]
      %v876 = vld [vmem:[%s161 + $0x26] sm:$0x1]
      %v877 = vld [vmem:[%s161 + $0x3e] sm:$0x1]
      %v878 = vld [vmem:[%s161 + $0x56] sm:$0x1]
      %883 = vrot.lane.b32.xlu0 %v875, 95
      %v884 = vpop.permute.xlu0 %883
      %885 = vrot.lane.b32.xlu0 %v876, 95
      %v886 = vpop.permute.xlu0 %885
      %887 = vrot.lane.b32.xlu0 %v877, 95
      %v888 = vpop.permute.xlu0 %887
      %889 = vrot.lane.b32.xlu0 %v878, 95
      %v890 = vpop.permute.xlu0 %889
      %895 = vst.msk [vmem:[%s176 + $0x9] sm:$0x1] %vm333, %v884
      %896 = vst.msk [vmem:[%s176 + $0x29] sm:$0x1] %vm333, %v886
      %897 = vst.msk [vmem:[%s176 + $0x49] sm:$0x1] %vm333, %v888
      %898 = vst.msk [vmem:[%s176 + $0x69] sm:$0x1] %vm333, %v890
      %v899 = vld [vmem:[%s161 + $0xf] sm:$0x1]
      %v900 = vld [vmem:[%s161 + $0x27] sm:$0x1]
      %v901 = vld [vmem:[%s161 + $0x3f] sm:$0x1]
      %v902 = vld [vmem:[%s161 + $0x57] sm:$0x1]
      %907 = vrot.lane.b32.xlu0 %v899, 111
      %v908 = vpop.permute.xlu0 %907
      %909 = vrot.lane.b32.xlu0 %v900, 111
      %v910 = vpop.permute.xlu0 %909
      %911 = vrot.lane.b32.xlu0 %v901, 111
      %v912 = vpop.permute.xlu0 %911
      %913 = vrot.lane.b32.xlu0 %v902, 111
      %v914 = vpop.permute.xlu0 %913
      %919 = vst.msk [vmem:[%s176 + $0x9] sm:$0x1] %vm358, %v908
      %920 = vst.msk [vmem:[%s176 + $0x29] sm:$0x1] %vm358, %v910
      %921 = vst.msk [vmem:[%s176 + $0x49] sm:$0x1] %vm358, %v912
      %922 = vst.msk [vmem:[%s176 + $0x69] sm:$0x1] %vm358, %v914
      %v923 = vld [vmem:[%s161] sm:$0x1]
      %v924 = vld [vmem:[%s161 + $0x18] sm:$0x1]
      %v925 = vld [vmem:[%s161 + $0x30] sm:$0x1]
      %v926 = vld [vmem:[%s161 + $0x48] sm:$0x1]
      %931 = vrot.lane.b32.xlu0 %v923, 126
      %v932 = vpop.permute.xlu0 %931
      %933 = vrot.lane.b32.xlu0 %v924, 126
      %v934 = vpop.permute.xlu0 %933
      %935 = vrot.lane.b32.xlu0 %v925, 126
      %v936 = vpop.permute.xlu0 %935
      %937 = vrot.lane.b32.xlu0 %v926, 126
      %v938 = vpop.permute.xlu0 %937
      %943 = vst.msk [vmem:[%s176 + $0x2] sm:$0x1] %vm183, %v932
      %944 = vst.msk [vmem:[%s176 + $0x22] sm:$0x1] %vm183, %v934
      %945 = vst.msk [vmem:[%s176 + $0x42] sm:$0x1] %vm183, %v936
      %946 = vst.msk [vmem:[%s176 + $0x62] sm:$0x1] %vm183, %v938
      %v947 = vld [vmem:[%s161 + $0x1] sm:$0x1]
      %v948 = vld [vmem:[%s161 + $0x19] sm:$0x1]
      %v949 = vld [vmem:[%s161 + $0x31] sm:$0x1]
      %v950 = vld [vmem:[%s161 + $0x49] sm:$0x1]
      %955 = vrot.lane.b32.xlu0 %v947, 14
      %v956 = vpop.permute.xlu0 %955
      %957 = vrot.lane.b32.xlu0 %v948, 14
      %v958 = vpop.permute.xlu0 %957
      %959 = vrot.lane.b32.xlu0 %v949, 14
      %v960 = vpop.permute.xlu0 %959
      %961 = vrot.lane.b32.xlu0 %v950, 14
      %v962 = vpop.permute.xlu0 %961
      %967 = vst.msk [vmem:[%s176 + $0x2] sm:$0x1] %vm208, %v956
      %968 = vst.msk [vmem:[%s176 + $0x22] sm:$0x1] %vm208, %v958
      %969 = vst.msk [vmem:[%s176 + $0x42] sm:$0x1] %vm208, %v960
      %970 = vst.msk [vmem:[%s176 + $0x62] sm:$0x1] %vm208, %v962
      %v971 = vld [vmem:[%s161 + $0x2] sm:$0x1]
      %v972 = vld [vmem:[%s161 + $0x1a] sm:$0x1]
      %v973 = vld [vmem:[%s161 + $0x32] sm:$0x1]
      %v974 = vld [vmem:[%s161 + $0x4a] sm:$0x1]
      %979 = vrot.lane.b32.xlu0 %v971, 30
      %v980 = vpop.permute.xlu0 %979
      %981 = vrot.lane.b32.xlu0 %v972, 30
      %v982 = vpop.permute.xlu0 %981
      %983 = vrot.lane.b32.xlu0 %v973, 30
      %v984 = vpop.permute.xlu0 %983
      %985 = vrot.lane.b32.xlu0 %v974, 30
      %v986 = vpop.permute.xlu0 %985
      %991 = vst.msk [vmem:[%s176 + $0x2] sm:$0x1] %vm233, %v980
      %992 = vst.msk [vmem:[%s176 + $0x22] sm:$0x1] %vm233, %v982
      %993 = vst.msk [vmem:[%s176 + $0x42] sm:$0x1] %vm233, %v984
      %994 = vst.msk [vmem:[%s176 + $0x62] sm:$0x1] %vm233, %v986
      %v995 = vld [vmem:[%s161 + $0x3] sm:$0x1]
      %v996 = vld [vmem:[%s161 + $0x1b] sm:$0x1]
      %v997 = vld [vmem:[%s161 + $0x33] sm:$0x1]
      %v998 = vld [vmem:[%s161 + $0x4b] sm:$0x1]
      %1003 = vrot.lane.b32.xlu0 %v995, 46
      %v1004 = vpop.permute.xlu0 %1003
      %1005 = vrot.lane.b32.xlu0 %v996, 46
      %v1006 = vpop.permute.xlu0 %1005
      %1007 = vrot.lane.b32.xlu0 %v997, 46
      %v1008 = vpop.permute.xlu0 %1007
      %1009 = vrot.lane.b32.xlu0 %v998, 46
      %v1010 = vpop.permute.xlu0 %1009
      %1015 = vst.msk [vmem:[%s176 + $0x2] sm:$0x1] %vm258, %v1004
      %1016 = vst.msk [vmem:[%s176 + $0x22] sm:$0x1] %vm258, %v1006
      %1017 = vst.msk [vmem:[%s176 + $0x42] sm:$0x1] %vm258, %v1008
      %1018 = vst.msk [vmem:[%s176 + $0x62] sm:$0x1] %vm258, %v1010
      %v1019 = vld [vmem:[%s161 + $0x4] sm:$0x1]
      %v1020 = vld [vmem:[%s161 + $0x1c] sm:$0x1]
      %v1021 = vld [vmem:[%s161 + $0x34] sm:$0x1]
      %v1022 = vld [vmem:[%s161 + $0x4c] sm:$0x1]
      %1027 = vrot.lane.b32.xlu0 %v1019, 62
      %v1028 = vpop.permute.xlu0 %1027
      %1029 = vrot.lane.b32.xlu0 %v1020, 62
      %v1030 = vpop.permute.xlu0 %1029
      %1031 = vrot.lane.b32.xlu0 %v1021, 62
      %v1032 = vpop.permute.xlu0 %1031
      %1033 = vrot.lane.b32.xlu0 %v1022, 62
      %v1034 = vpop.permute.xlu0 %1033
      %1039 = vst.msk [vmem:[%s176 + $0x2] sm:$0x1] %vm283, %v1028
      %1040 = vst.msk [vmem:[%s176 + $0x22] sm:$0x1] %vm283, %v1030
      %1041 = vst.msk [vmem:[%s176 + $0x42] sm:$0x1] %vm283, %v1032
      %1042 = vst.msk [vmem:[%s176 + $0x62] sm:$0x1] %vm283, %v1034
      %v1043 = vld [vmem:[%s161 + $0x5] sm:$0x1]
      %v1044 = vld [vmem:[%s161 + $0x1d] sm:$0x1]
      %v1045 = vld [vmem:[%s161 + $0x35] sm:$0x1]
      %v1046 = vld [vmem:[%s161 + $0x4d] sm:$0x1]
      %1051 = vrot.lane.b32.xlu0 %v1043, 78
      %v1052 = vpop.permute.xlu0 %1051
      %1053 = vrot.lane.b32.xlu0 %v1044, 78
      %v1054 = vpop.permute.xlu0 %1053
      %1055 = vrot.lane.b32.xlu0 %v1045, 78
      %v1056 = vpop.permute.xlu0 %1055
      %1057 = vrot.lane.b32.xlu0 %v1046, 78
      %v1058 = vpop.permute.xlu0 %1057
      %1063 = vst.msk [vmem:[%s176 + $0x2] sm:$0x1] %vm308, %v1052
      %1064 = vst.msk [vmem:[%s176 + $0x22] sm:$0x1] %vm308, %v1054
      %1065 = vst.msk [vmem:[%s176 + $0x42] sm:$0x1] %vm308, %v1056
      %1066 = vst.msk [vmem:[%s176 + $0x62] sm:$0x1] %vm308, %v1058
      %v1067 = vld [vmem:[%s161 + $0x6] sm:$0x1]
      %v1068 = vld [vmem:[%s161 + $0x1e] sm:$0x1]
      %v1069 = vld [vmem:[%s161 + $0x36] sm:$0x1]
      %v1070 = vld [vmem:[%s161 + $0x4e] sm:$0x1]
      %1075 = vrot.lane.b32.xlu0 %v1067, 94
      %v1076 = vpop.permute.xlu0 %1075
      %1077 = vrot.lane.b32.xlu0 %v1068, 94
      %v1078 = vpop.permute.xlu0 %1077
      %1079 = vrot.lane.b32.xlu0 %v1069, 94
      %v1080 = vpop.permute.xlu0 %1079
      %1081 = vrot.lane.b32.xlu0 %v1070, 94
      %v1082 = vpop.permute.xlu0 %1081
      %1087 = vst.msk [vmem:[%s176 + $0x2] sm:$0x1] %vm333, %v1076
      %1088 = vst.msk [vmem:[%s176 + $0x22] sm:$0x1] %vm333, %v1078
      %1089 = vst.msk [vmem:[%s176 + $0x42] sm:$0x1] %vm333, %v1080
      %1090 = vst.msk [vmem:[%s176 + $0x62] sm:$0x1] %vm333, %v1082
      %v1091 = vld [vmem:[%s161 + $0x7] sm:$0x1]
      %v1092 = vld [vmem:[%s161 + $0x1f] sm:$0x1]
      %v1093 = vld [vmem:[%s161 + $0x37] sm:$0x1]
      %v1094 = vld [vmem:[%s161 + $0x4f] sm:$0x1]
      %1099 = vrot.lane.b32.xlu0 %v1091, 110
      %v1100 = vpop.permute.xlu0 %1099
      %1101 = vrot.lane.b32.xlu0 %v1092, 110
      %v1102 = vpop.permute.xlu0 %1101
      %1103 = vrot.lane.b32.xlu0 %v1093, 110
      %v1104 = vpop.permute.xlu0 %1103
      %1105 = vrot.lane.b32.xlu0 %v1094, 110
      %v1106 = vpop.permute.xlu0 %1105
      %1111 = vst.msk [vmem:[%s176 + $0x2] sm:$0x1] %vm358, %v1100
      %1112 = vst.msk [vmem:[%s176 + $0x22] sm:$0x1] %vm358, %v1102
      %1113 = vst.msk [vmem:[%s176 + $0x42] sm:$0x1] %vm358, %v1104
      %1114 = vst.msk [vmem:[%s176 + $0x62] sm:$0x1] %vm358, %v1106
      %v1115 = vld [vmem:[%s161 + $0x8] sm:$0x1]
      %v1116 = vld [vmem:[%s161 + $0x20] sm:$0x1]
      %v1117 = vld [vmem:[%s161 + $0x38] sm:$0x1]
      %v1118 = vld [vmem:[%s161 + $0x50] sm:$0x1]
      %1123 = vrot.lane.b32.xlu0 %v1115, 126
      %v1124 = vpop.permute.xlu0 %1123
      %1125 = vrot.lane.b32.xlu0 %v1116, 126
      %v1126 = vpop.permute.xlu0 %1125
      %1127 = vrot.lane.b32.xlu0 %v1117, 126
      %v1128 = vpop.permute.xlu0 %1127
      %1129 = vrot.lane.b32.xlu0 %v1118, 126
      %v1130 = vpop.permute.xlu0 %1129
      %1135 = vst.msk [vmem:[%s176 + $0xa] sm:$0x1] %vm183, %v1124
      %1136 = vst.msk [vmem:[%s176 + $0x2a] sm:$0x1] %vm183, %v1126
      %1137 = vst.msk [vmem:[%s176 + $0x4a] sm:$0x1] %vm183, %v1128
      %1138 = vst.msk [vmem:[%s176 + $0x6a] sm:$0x1] %vm183, %v1130
      %v1139 = vld [vmem:[%s161 + $0x9] sm:$0x1]
      %v1140 = vld [vmem:[%s161 + $0x21] sm:$0x1]
      %v1141 = vld [vmem:[%s161 + $0x39] sm:$0x1]
      %v1142 = vld [vmem:[%s161 + $0x51] sm:$0x1]
      %1147 = vrot.lane.b32.xlu0 %v1139, 14
      %v1148 = vpop.permute.xlu0 %1147
      %1149 = vrot.lane.b32.xlu0 %v1140, 14
      %v1150 = vpop.permute.xlu0 %1149
      %1151 = vrot.lane.b32.xlu0 %v1141, 14
      %v1152 = vpop.permute.xlu0 %1151
      %1153 = vrot.lane.b32.xlu0 %v1142, 14
      %v1154 = vpop.permute.xlu0 %1153
      %1159 = vst.msk [vmem:[%s176 + $0xa] sm:$0x1] %vm208, %v1148
      %1160 = vst.msk [vmem:[%s176 + $0x2a] sm:$0x1] %vm208, %v1150
      %1161 = vst.msk [vmem:[%s176 + $0x4a] sm:$0x1] %vm208, %v1152
      %1162 = vst.msk [vmem:[%s176 + $0x6a] sm:$0x1] %vm208, %v1154
      %v1163 = vld [vmem:[%s161 + $0xa] sm:$0x1]
      %v1164 = vld [vmem:[%s161 + $0x22] sm:$0x1]
      %v1165 = vld [vmem:[%s161 + $0x3a] sm:$0x1]
      %v1166 = vld [vmem:[%s161 + $0x52] sm:$0x1]
      %1171 = vrot.lane.b32.xlu0 %v1163, 30
      %v1172 = vpop.permute.xlu0 %1171
      %1173 = vrot.lane.b32.xlu0 %v1164, 30
      %v1174 = vpop.permute.xlu0 %1173
      %1175 = vrot.lane.b32.xlu0 %v1165, 30
      %v1176 = vpop.permute.xlu0 %1175
      %1177 = vrot.lane.b32.xlu0 %v1166, 30
      %v1178 = vpop.permute.xlu0 %1177
      %1183 = vst.msk [vmem:[%s176 + $0xa] sm:$0x1] %vm233, %v1172
      %1184 = vst.msk [vmem:[%s176 + $0x2a] sm:$0x1] %vm233, %v1174
      %1185 = vst.msk [vmem:[%s176 + $0x4a] sm:$0x1] %vm233, %v1176
      %1186 = vst.msk [vmem:[%s176 + $0x6a] sm:$0x1] %vm233, %v1178
      %v1187 = vld [vmem:[%s161 + $0xb] sm:$0x1]
      %v1188 = vld [vmem:[%s161 + $0x23] sm:$0x1]
      %v1189 = vld [vmem:[%s161 + $0x3b] sm:$0x1]
      %v1190 = vld [vmem:[%s161 + $0x53] sm:$0x1]
      %1195 = vrot.lane.b32.xlu0 %v1187, 46
      %v1196 = vpop.permute.xlu0 %1195
      %1197 = vrot.lane.b32.xlu0 %v1188, 46
      %v1198 = vpop.permute.xlu0 %1197
      %1199 = vrot.lane.b32.xlu0 %v1189, 46
      %v1200 = vpop.permute.xlu0 %1199
      %1201 = vrot.lane.b32.xlu0 %v1190, 46
      %v1202 = vpop.permute.xlu0 %1201
      %1207 = vst.msk [vmem:[%s176 + $0xa] sm:$0x1] %vm258, %v1196
      %1208 = vst.msk [vmem:[%s176 + $0x2a] sm:$0x1] %vm258, %v1198
      %1209 = vst.msk [vmem:[%s176 + $0x4a] sm:$0x1] %vm258, %v1200
      %1210 = vst.msk [vmem:[%s176 + $0x6a] sm:$0x1] %vm258, %v1202
      %v1211 = vld [vmem:[%s161 + $0xc] sm:$0x1]
      %v1212 = vld [vmem:[%s161 + $0x24] sm:$0x1]
      %v1213 = vld [vmem:[%s161 + $0x3c] sm:$0x1]
      %v1214 = vld [vmem:[%s161 + $0x54] sm:$0x1]
      %1219 = vrot.lane.b32.xlu0 %v1211, 62
      %v1220 = vpop.permute.xlu0 %1219
      %1221 = vrot.lane.b32.xlu0 %v1212, 62
      %v1222 = vpop.permute.xlu0 %1221
      %1223 = vrot.lane.b32.xlu0 %v1213, 62
      %v1224 = vpop.permute.xlu0 %1223
      %1225 = vrot.lane.b32.xlu0 %v1214, 62
      %v1226 = vpop.permute.xlu0 %1225
      %1231 = vst.msk [vmem:[%s176 + $0xa] sm:$0x1] %vm283, %v1220
      %1232 = vst.msk [vmem:[%s176 + $0x2a] sm:$0x1] %vm283, %v1222
      %1233 = vst.msk [vmem:[%s176 + $0x4a] sm:$0x1] %vm283, %v1224
      %1234 = vst.msk [vmem:[%s176 + $0x6a] sm:$0x1] %vm283, %v1226
      %v1235 = vld [vmem:[%s161 + $0xd] sm:$0x1]
      %v1236 = vld [vmem:[%s161 + $0x25] sm:$0x1]
      %v1237 = vld [vmem:[%s161 + $0x3d] sm:$0x1]
      %v1238 = vld [vmem:[%s161 + $0x55] sm:$0x1]
      %1243 = vrot.lane.b32.xlu0 %v1235, 78
      %v1244 = vpop.permute.xlu0 %1243
      %1245 = vrot.lane.b32.xlu0 %v1236, 78
      %v1246 = vpop.permute.xlu0 %1245
      %1247 = vrot.lane.b32.xlu0 %v1237, 78
      %v1248 = vpop.permute.xlu0 %1247
      %1249 = vrot.lane.b32.xlu0 %v1238, 78
      %v1250 = vpop.permute.xlu0 %1249
      %1255 = vst.msk [vmem:[%s176 + $0xa] sm:$0x1] %vm308, %v1244
      %1256 = vst.msk [vmem:[%s176 + $0x2a] sm:$0x1] %vm308, %v1246
      %1257 = vst.msk [vmem:[%s176 + $0x4a] sm:$0x1] %vm308, %v1248
      %1258 = vst.msk [vmem:[%s176 + $0x6a] sm:$0x1] %vm308, %v1250
      %v1259 = vld [vmem:[%s161 + $0xe] sm:$0x1]
      %v1260 = vld [vmem:[%s161 + $0x26] sm:$0x1]
      %v1261 = vld [vmem:[%s161 + $0x3e] sm:$0x1]
      %v1262 = vld [vmem:[%s161 + $0x56] sm:$0x1]
      %1267 = vrot.lane.b32.xlu0 %v1259, 94
      %v1268 = vpop.permute.xlu0 %1267
      %1269 = vrot.lane.b32.xlu0 %v1260, 94
      %v1270 = vpop.permute.xlu0 %1269
      %1271 = vrot.lane.b32.xlu0 %v1261, 94
      %v1272 = vpop.permute.xlu0 %1271
      %1273 = vrot.lane.b32.xlu0 %v1262, 94
      %v1274 = vpop.permute.xlu0 %1273
      %1279 = vst.msk [vmem:[%s176 + $0xa] sm:$0x1] %vm333, %v1268
      %1280 = vst.msk [vmem:[%s176 + $0x2a] sm:$0x1] %vm333, %v1270
      %1281 = vst.msk [vmem:[%s176 + $0x4a] sm:$0x1] %vm333, %v1272
      %1282 = vst.msk [vmem:[%s176 + $0x6a] sm:$0x1] %vm333, %v1274
      %v1283 = vld [vmem:[%s161 + $0xf] sm:$0x1]
      %v1284 = vld [vmem:[%s161 + $0x27] sm:$0x1]
      %v1285 = vld [vmem:[%s161 + $0x3f] sm:$0x1]
      %v1286 = vld [vmem:[%s161 + $0x57] sm:$0x1]
      %1291 = vrot.lane.b32.xlu0 %v1283, 110
      %v1292 = vpop.permute.xlu0 %1291
      %1293 = vrot.lane.b32.xlu0 %v1284, 110
      %v1294 = vpop.permute.xlu0 %1293
      %1295 = vrot.lane.b32.xlu0 %v1285, 110
      %v1296 = vpop.permute.xlu0 %1295
      %1297 = vrot.lane.b32.xlu0 %v1286, 110
      %v1298 = vpop.permute.xlu0 %1297
      %1303 = vst.msk [vmem:[%s176 + $0xa] sm:$0x1] %vm358, %v1292
      %1304 = vst.msk [vmem:[%s176 + $0x2a] sm:$0x1] %vm358, %v1294
      %1305 = vst.msk [vmem:[%s176 + $0x4a] sm:$0x1] %vm358, %v1296
      %1306 = vst.msk [vmem:[%s176 + $0x6a] sm:$0x1] %vm358, %v1298
      %v1307 = vld [vmem:[%s161 + $0x1] sm:$0x1]
      %v1308 = vld [vmem:[%s161 + $0x19] sm:$0x1]
      %v1309 = vld [vmem:[%s161 + $0x31] sm:$0x1]
      %v1310 = vld [vmem:[%s161 + $0x49] sm:$0x1]
      %1311 = vst.msk [vmem:[%s176 + $0x3] sm:$0x1] %vm183, %v1307
      %1312 = vst.msk [vmem:[%s176 + $0x23] sm:$0x1] %vm183, %v1308
      %1313 = vst.msk [vmem:[%s176 + $0x43] sm:$0x1] %vm183, %v1309
      %1314 = vst.msk [vmem:[%s176 + $0x63] sm:$0x1] %vm183, %v1310
      %v1315 = vld [vmem:[%s161 + $0x2] sm:$0x1]
      %v1316 = vld [vmem:[%s161 + $0x1a] sm:$0x1]
      %v1317 = vld [vmem:[%s161 + $0x32] sm:$0x1]
      %v1318 = vld [vmem:[%s161 + $0x4a] sm:$0x1]
      %1323 = vrot.lane.b32.xlu0 %v1315, 16
      %v1324 = vpop.permute.xlu0 %1323
      %1325 = vrot.lane.b32.xlu0 %v1316, 16
      %v1326 = vpop.permute.xlu0 %1325
      %1327 = vrot.lane.b32.xlu0 %v1317, 16
      %v1328 = vpop.permute.xlu0 %1327
      %1329 = vrot.lane.b32.xlu0 %v1318, 16
      %v1330 = vpop.permute.xlu0 %1329
      %1335 = vst.msk [vmem:[%s176 + $0x3] sm:$0x1] %vm208, %v1324
      %1336 = vst.msk [vmem:[%s176 + $0x23] sm:$0x1] %vm208, %v1326
      %1337 = vst.msk [vmem:[%s176 + $0x43] sm:$0x1] %vm208, %v1328
      %1338 = vst.msk [vmem:[%s176 + $0x63] sm:$0x1] %vm208, %v1330
      %v1339 = vld [vmem:[%s161 + $0x3] sm:$0x1]
      %v1340 = vld [vmem:[%s161 + $0x1b] sm:$0x1]
      %v1341 = vld [vmem:[%s161 + $0x33] sm:$0x1]
      %v1342 = vld [vmem:[%s161 + $0x4b] sm:$0x1]
      %1347 = vrot.lane.b32.xlu0 %v1339, 32
      %v1348 = vpop.permute.xlu0 %1347
      %1349 = vrot.lane.b32.xlu0 %v1340, 32
      %v1350 = vpop.permute.xlu0 %1349
      %1351 = vrot.lane.b32.xlu0 %v1341, 32
      %v1352 = vpop.permute.xlu0 %1351
      %1353 = vrot.lane.b32.xlu0 %v1342, 32
      %v1354 = vpop.permute.xlu0 %1353
      %1359 = vst.msk [vmem:[%s176 + $0x3] sm:$0x1] %vm233, %v1348
      %1360 = vst.msk [vmem:[%s176 + $0x23] sm:$0x1] %vm233, %v1350
      %1361 = vst.msk [vmem:[%s176 + $0x43] sm:$0x1] %vm233, %v1352
      %1362 = vst.msk [vmem:[%s176 + $0x63] sm:$0x1] %vm233, %v1354
      %v1363 = vld [vmem:[%s161 + $0x4] sm:$0x1]
      %v1364 = vld [vmem:[%s161 + $0x1c] sm:$0x1]
      %v1365 = vld [vmem:[%s161 + $0x34] sm:$0x1]
      %v1366 = vld [vmem:[%s161 + $0x4c] sm:$0x1]
      %1371 = vrot.lane.b32.xlu0 %v1363, 48
      %v1372 = vpop.permute.xlu0 %1371
      %1373 = vrot.lane.b32.xlu0 %v1364, 48
      %v1374 = vpop.permute.xlu0 %1373
      %1375 = vrot.lane.b32.xlu0 %v1365, 48
      %v1376 = vpop.permute.xlu0 %1375
      %1377 = vrot.lane.b32.xlu0 %v1366, 48
      %v1378 = vpop.permute.xlu0 %1377
      %1383 = vst.msk [vmem:[%s176 + $0x3] sm:$0x1] %vm258, %v1372
      %1384 = vst.msk [vmem:[%s176 + $0x23] sm:$0x1] %vm258, %v1374
      %1385 = vst.msk [vmem:[%s176 + $0x43] sm:$0x1] %vm258, %v1376
      %1386 = vst.msk [vmem:[%s176 + $0x63] sm:$0x1] %vm258, %v1378
      %v1387 = vld [vmem:[%s161 + $0x5] sm:$0x1]
      %v1388 = vld [vmem:[%s161 + $0x1d] sm:$0x1]
      %v1389 = vld [vmem:[%s161 + $0x35] sm:$0x1]
      %v1390 = vld [vmem:[%s161 + $0x4d] sm:$0x1]
      %1395 = vrot.lane.b32.xlu0 %v1387, 64
      %v1396 = vpop.permute.xlu0 %1395
      %1397 = vrot.lane.b32.xlu0 %v1388, 64
      %v1398 = vpop.permute.xlu0 %1397
      %1399 = vrot.lane.b32.xlu0 %v1389, 64
      %v1400 = vpop.permute.xlu0 %1399
      %1401 = vrot.lane.b32.xlu0 %v1390, 64
      %v1402 = vpop.permute.xlu0 %1401
      %1407 = vst.msk [vmem:[%s176 + $0x3] sm:$0x1] %vm283, %v1396
      %1408 = vst.msk [vmem:[%s176 + $0x23] sm:$0x1] %vm283, %v1398
      %1409 = vst.msk [vmem:[%s176 + $0x43] sm:$0x1] %vm283, %v1400
      %1410 = vst.msk [vmem:[%s176 + $0x63] sm:$0x1] %vm283, %v1402
      %v1411 = vld [vmem:[%s161 + $0x6] sm:$0x1]
      %v1412 = vld [vmem:[%s161 + $0x1e] sm:$0x1]
      %v1413 = vld [vmem:[%s161 + $0x36] sm:$0x1]
      %v1414 = vld [vmem:[%s161 + $0x4e] sm:$0x1]
      %1419 = vrot.lane.b32.xlu0 %v1411, 80
      %v1420 = vpop.permute.xlu0 %1419
      %1421 = vrot.lane.b32.xlu0 %v1412, 80
      %v1422 = vpop.permute.xlu0 %1421
      %1423 = vrot.lane.b32.xlu0 %v1413, 80
      %v1424 = vpop.permute.xlu0 %1423
      %1425 = vrot.lane.b32.xlu0 %v1414, 80
      %v1426 = vpop.permute.xlu0 %1425
      %1431 = vst.msk [vmem:[%s176 + $0x3] sm:$0x1] %vm308, %v1420
      %1432 = vst.msk [vmem:[%s176 + $0x23] sm:$0x1] %vm308, %v1422
      %1433 = vst.msk [vmem:[%s176 + $0x43] sm:$0x1] %vm308, %v1424
      %1434 = vst.msk [vmem:[%s176 + $0x63] sm:$0x1] %vm308, %v1426
      %v1435 = vld [vmem:[%s161 + $0x7] sm:$0x1]
      %v1436 = vld [vmem:[%s161 + $0x1f] sm:$0x1]
      %v1437 = vld [vmem:[%s161 + $0x37] sm:$0x1]
      %v1438 = vld [vmem:[%s161 + $0x4f] sm:$0x1]
      %1443 = vrot.lane.b32.xlu0 %v1435, 96
      %v1444 = vpop.permute.xlu0 %1443
      %1445 = vrot.lane.b32.xlu0 %v1436, 96
      %v1446 = vpop.permute.xlu0 %1445
      %1447 = vrot.lane.b32.xlu0 %v1437, 96
      %v1448 = vpop.permute.xlu0 %1447
      %1449 = vrot.lane.b32.xlu0 %v1438, 96
      %v1450 = vpop.permute.xlu0 %1449
      %1455 = vst.msk [vmem:[%s176 + $0x3] sm:$0x1] %vm333, %v1444
      %1456 = vst.msk [vmem:[%s176 + $0x23] sm:$0x1] %vm333, %v1446
      %1457 = vst.msk [vmem:[%s176 + $0x43] sm:$0x1] %vm333, %v1448
      %1458 = vst.msk [vmem:[%s176 + $0x63] sm:$0x1] %vm333, %v1450
      %v1459 = vld [vmem:[%s161 + $0x8] sm:$0x1]
      %v1460 = vld [vmem:[%s161 + $0x20] sm:$0x1]
      %v1461 = vld [vmem:[%s161 + $0x38] sm:$0x1]
      %v1462 = vld [vmem:[%s161 + $0x50] sm:$0x1]
      %1467 = vrot.lane.b32.xlu0 %v1459, 112
      %v1468 = vpop.permute.xlu0 %1467
      %1469 = vrot.lane.b32.xlu0 %v1460, 112
      %v1470 = vpop.permute.xlu0 %1469
      %1471 = vrot.lane.b32.xlu0 %v1461, 112
      %v1472 = vpop.permute.xlu0 %1471
      %1473 = vrot.lane.b32.xlu0 %v1462, 112
      %v1474 = vpop.permute.xlu0 %1473
      %1479 = vst.msk [vmem:[%s176 + $0x3] sm:$0x1] %vm358, %v1468
      %1480 = vst.msk [vmem:[%s176 + $0x23] sm:$0x1] %vm358, %v1470
      %1481 = vst.msk [vmem:[%s176 + $0x43] sm:$0x1] %vm358, %v1472
      %1482 = vst.msk [vmem:[%s176 + $0x63] sm:$0x1] %vm358, %v1474
      %v1483 = vld [vmem:[%s161 + $0x9] sm:$0x1]
      %v1484 = vld [vmem:[%s161 + $0x21] sm:$0x1]
      %v1485 = vld [vmem:[%s161 + $0x39] sm:$0x1]
      %v1486 = vld [vmem:[%s161 + $0x51] sm:$0x1]
      %1487 = vst.msk [vmem:[%s176 + $0xb] sm:$0x1] %vm183, %v1483
      %1488 = vst.msk [vmem:[%s176 + $0x2b] sm:$0x1] %vm183, %v1484
      %1489 = vst.msk [vmem:[%s176 + $0x4b] sm:$0x1] %vm183, %v1485
      %1490 = vst.msk [vmem:[%s176 + $0x6b] sm:$0x1] %vm183, %v1486
      %v1491 = vld [vmem:[%s161 + $0xa] sm:$0x1]
      %v1492 = vld [vmem:[%s161 + $0x22] sm:$0x1]
      %v1493 = vld [vmem:[%s161 + $0x3a] sm:$0x1]
      %v1494 = vld [vmem:[%s161 + $0x52] sm:$0x1]
      %1499 = vrot.lane.b32.xlu0 %v1491, 16
      %v1500 = vpop.permute.xlu0 %1499
      %1501 = vrot.lane.b32.xlu0 %v1492, 16
      %v1502 = vpop.permute.xlu0 %1501
      %1503 = vrot.lane.b32.xlu0 %v1493, 16
      %v1504 = vpop.permute.xlu0 %1503
      %1505 = vrot.lane.b32.xlu0 %v1494, 16
      %v1506 = vpop.permute.xlu0 %1505
      %1511 = vst.msk [vmem:[%s176 + $0xb] sm:$0x1] %vm208, %v1500
      %1512 = vst.msk [vmem:[%s176 + $0x2b] sm:$0x1] %vm208, %v1502
      %1513 = vst.msk [vmem:[%s176 + $0x4b] sm:$0x1] %vm208, %v1504
      %1514 = vst.msk [vmem:[%s176 + $0x6b] sm:$0x1] %vm208, %v1506
      %v1515 = vld [vmem:[%s161 + $0xb] sm:$0x1]
      %v1516 = vld [vmem:[%s161 + $0x23] sm:$0x1]
      %v1517 = vld [vmem:[%s161 + $0x3b] sm:$0x1]
      %v1518 = vld [vmem:[%s161 + $0x53] sm:$0x1]
      %1523 = vrot.lane.b32.xlu0 %v1515, 32
      %v1524 = vpop.permute.xlu0 %1523
      %1525 = vrot.lane.b32.xlu0 %v1516, 32
      %v1526 = vpop.permute.xlu0 %1525
      %1527 = vrot.lane.b32.xlu0 %v1517, 32
      %v1528 = vpop.permute.xlu0 %1527
      %1529 = vrot.lane.b32.xlu0 %v1518, 32
      %v1530 = vpop.permute.xlu0 %1529
      %1535 = vst.msk [vmem:[%s176 + $0xb] sm:$0x1] %vm233, %v1524
      %1536 = vst.msk [vmem:[%s176 + $0x2b] sm:$0x1] %vm233, %v1526
      %1537 = vst.msk [vmem:[%s176 + $0x4b] sm:$0x1] %vm233, %v1528
      %1538 = vst.msk [vmem:[%s176 + $0x6b] sm:$0x1] %vm233, %v1530
      %v1539 = vld [vmem:[%s161 + $0xc] sm:$0x1]
      %v1540 = vld [vmem:[%s161 + $0x24] sm:$0x1]
      %v1541 = vld [vmem:[%s161 + $0x3c] sm:$0x1]
      %v1542 = vld [vmem:[%s161 + $0x54] sm:$0x1]
      %1547 = vrot.lane.b32.xlu0 %v1539, 48
      %v1548 = vpop.permute.xlu0 %1547
      %1549 = vrot.lane.b32.xlu0 %v1540, 48
      %v1550 = vpop.permute.xlu0 %1549
      %1551 = vrot.lane.b32.xlu0 %v1541, 48
      %v1552 = vpop.permute.xlu0 %1551
      %1553 = vrot.lane.b32.xlu0 %v1542, 48
      %v1554 = vpop.permute.xlu0 %1553
      %1559 = vst.msk [vmem:[%s176 + $0xb] sm:$0x1] %vm258, %v1548
      %1560 = vst.msk [vmem:[%s176 + $0x2b] sm:$0x1] %vm258, %v1550
      %1561 = vst.msk [vmem:[%s176 + $0x4b] sm:$0x1] %vm258, %v1552
      %1562 = vst.msk [vmem:[%s176 + $0x6b] sm:$0x1] %vm258, %v1554
      %v1563 = vld [vmem:[%s161 + $0xd] sm:$0x1]
      %v1564 = vld [vmem:[%s161 + $0x25] sm:$0x1]
      %v1565 = vld [vmem:[%s161 + $0x3d] sm:$0x1]
      %v1566 = vld [vmem:[%s161 + $0x55] sm:$0x1]
      %1571 = vrot.lane.b32.xlu0 %v1563, 64
      %v1572 = vpop.permute.xlu0 %1571
      %1573 = vrot.lane.b32.xlu0 %v1564, 64
      %v1574 = vpop.permute.xlu0 %1573
      %1575 = vrot.lane.b32.xlu0 %v1565, 64
      %v1576 = vpop.permute.xlu0 %1575
      %1577 = vrot.lane.b32.xlu0 %v1566, 64
      %v1578 = vpop.permute.xlu0 %1577
      %1583 = vst.msk [vmem:[%s176 + $0xb] sm:$0x1] %vm283, %v1572
      %1584 = vst.msk [vmem:[%s176 + $0x2b] sm:$0x1] %vm283, %v1574
      %1585 = vst.msk [vmem:[%s176 + $0x4b] sm:$0x1] %vm283, %v1576
      %1586 = vst.msk [vmem:[%s176 + $0x6b] sm:$0x1] %vm283, %v1578
      %v1587 = vld [vmem:[%s161 + $0xe] sm:$0x1]
      %v1588 = vld [vmem:[%s161 + $0x26] sm:$0x1]
      %v1589 = vld [vmem:[%s161 + $0x3e] sm:$0x1]
      %v1590 = vld [vmem:[%s161 + $0x56] sm:$0x1]
      %1595 = vrot.lane.b32.xlu0 %v1587, 80
      %v1596 = vpop.permute.xlu0 %1595
      %1597 = vrot.lane.b32.xlu0 %v1588, 80
      %v1598 = vpop.permute.xlu0 %1597
      %1599 = vrot.lane.b32.xlu0 %v1589, 80
      %v1600 = vpop.permute.xlu0 %1599
      %1601 = vrot.lane.b32.xlu0 %v1590, 80
      %v1602 = vpop.permute.xlu0 %1601
      %1607 = vst.msk [vmem:[%s176 + $0xb] sm:$0x1] %vm308, %v1596
      %1608 = vst.msk [vmem:[%s176 + $0x2b] sm:$0x1] %vm308, %v1598
      %1609 = vst.msk [vmem:[%s176 + $0x4b] sm:$0x1] %vm308, %v1600
      %1610 = vst.msk [vmem:[%s176 + $0x6b] sm:$0x1] %vm308, %v1602
      %v1611 = vld [vmem:[%s161 + $0xf] sm:$0x1]
      %v1612 = vld [vmem:[%s161 + $0x27] sm:$0x1]
      %v1613 = vld [vmem:[%s161 + $0x3f] sm:$0x1]
      %v1614 = vld [vmem:[%s161 + $0x57] sm:$0x1]
      %1619 = vrot.lane.b32.xlu0 %v1611, 96
      %v1620 = vpop.permute.xlu0 %1619
      %1621 = vrot.lane.b32.xlu0 %v1612, 96
      %v1622 = vpop.permute.xlu0 %1621
      %1623 = vrot.lane.b32.xlu0 %v1613, 96
      %v1624 = vpop.permute.xlu0 %1623
      %1625 = vrot.lane.b32.xlu0 %v1614, 96
      %v1626 = vpop.permute.xlu0 %1625
      %1631 = vst.msk [vmem:[%s176 + $0xb] sm:$0x1] %vm333, %v1620
      %1632 = vst.msk [vmem:[%s176 + $0x2b] sm:$0x1] %vm333, %v1622
      %1633 = vst.msk [vmem:[%s176 + $0x4b] sm:$0x1] %vm333, %v1624
      %1634 = vst.msk [vmem:[%s176 + $0x6b] sm:$0x1] %vm333, %v1626
      %v1635 = vld [vmem:[%s161 + $0x10] sm:$0x1]
      %v1636 = vld [vmem:[%s161 + $0x28] sm:$0x1]
      %v1637 = vld [vmem:[%s161 + $0x40] sm:$0x1]
      %v1638 = vld [vmem:[%s161 + $0x58] sm:$0x1]
      %1643 = vrot.lane.b32.xlu0 %v1635, 112
      %v1644 = vpop.permute.xlu0 %1643
      %1645 = vrot.lane.b32.xlu0 %v1636, 112
      %v1646 = vpop.permute.xlu0 %1645
      %1647 = vrot.lane.b32.xlu0 %v1637, 112
      %v1648 = vpop.permute.xlu0 %1647
      %1649 = vrot.lane.b32.xlu0 %v1638, 112
      %v1650 = vpop.permute.xlu0 %1649
      %1655 = vst.msk [vmem:[%s176 + $0xb] sm:$0x1] %vm358, %v1644
      %1656 = vst.msk [vmem:[%s176 + $0x2b] sm:$0x1] %vm358, %v1646
      %1657 = vst.msk [vmem:[%s176 + $0x4b] sm:$0x1] %vm358, %v1648
      %1658 = vst.msk [vmem:[%s176 + $0x6b] sm:$0x1] %vm358, %v1650
      %v1659 = vld [vmem:[%s161 + $0x1] sm:$0x1]
      %v1660 = vld [vmem:[%s161 + $0x19] sm:$0x1]
      %v1661 = vld [vmem:[%s161 + $0x31] sm:$0x1]
      %v1662 = vld [vmem:[%s161 + $0x49] sm:$0x1]
      %1667 = vrot.lane.b32.xlu0 %v1659, 127
      %v1668 = vpop.permute.xlu0 %1667
      %1669 = vrot.lane.b32.xlu0 %v1660, 127
      %v1670 = vpop.permute.xlu0 %1669
      %1671 = vrot.lane.b32.xlu0 %v1661, 127
      %v1672 = vpop.permute.xlu0 %1671
      %1673 = vrot.lane.b32.xlu0 %v1662, 127
      %v1674 = vpop.permute.xlu0 %1673
      %1679 = vst.msk [vmem:[%s176 + $0x4] sm:$0x1] %vm183, %v1668
      %1680 = vst.msk [vmem:[%s176 + $0x24] sm:$0x1] %vm183, %v1670
      %1681 = vst.msk [vmem:[%s176 + $0x44] sm:$0x1] %vm183, %v1672
      %1682 = vst.msk [vmem:[%s176 + $0x64] sm:$0x1] %vm183, %v1674
      %v1683 = vld [vmem:[%s161 + $0x2] sm:$0x1]
      %v1684 = vld [vmem:[%s161 + $0x1a] sm:$0x1]
      %v1685 = vld [vmem:[%s161 + $0x32] sm:$0x1]
      %v1686 = vld [vmem:[%s161 + $0x4a] sm:$0x1]
      %1691 = vrot.lane.b32.xlu0 %v1683, 15
      %v1692 = vpop.permute.xlu0 %1691
      %1693 = vrot.lane.b32.xlu0 %v1684, 15
      %v1694 = vpop.permute.xlu0 %1693
      %1695 = vrot.lane.b32.xlu0 %v1685, 15
      %v1696 = vpop.permute.xlu0 %1695
      %1697 = vrot.lane.b32.xlu0 %v1686, 15
      %v1698 = vpop.permute.xlu0 %1697
      %1703 = vst.msk [vmem:[%s176 + $0x4] sm:$0x1] %vm208, %v1692
      %1704 = vst.msk [vmem:[%s176 + $0x24] sm:$0x1] %vm208, %v1694
      %1705 = vst.msk [vmem:[%s176 + $0x44] sm:$0x1] %vm208, %v1696
      %1706 = vst.msk [vmem:[%s176 + $0x64] sm:$0x1] %vm208, %v1698
      %v1707 = vld [vmem:[%s161 + $0x3] sm:$0x1]
      %v1708 = vld [vmem:[%s161 + $0x1b] sm:$0x1]
      %v1709 = vld [vmem:[%s161 + $0x33] sm:$0x1]
      %v1710 = vld [vmem:[%s161 + $0x4b] sm:$0x1]
      %1715 = vrot.lane.b32.xlu0 %v1707, 31
      %v1716 = vpop.permute.xlu0 %1715
      %1717 = vrot.lane.b32.xlu0 %v1708, 31
      %v1718 = vpop.permute.xlu0 %1717
      %1719 = vrot.lane.b32.xlu0 %v1709, 31
      %v1720 = vpop.permute.xlu0 %1719
      %1721 = vrot.lane.b32.xlu0 %v1710, 31
      %v1722 = vpop.permute.xlu0 %1721
      %1727 = vst.msk [vmem:[%s176 + $0x4] sm:$0x1] %vm233, %v1716
      %1728 = vst.msk [vmem:[%s176 + $0x24] sm:$0x1] %vm233, %v1718
      %1729 = vst.msk [vmem:[%s176 + $0x44] sm:$0x1] %vm233, %v1720
      %1730 = vst.msk [vmem:[%s176 + $0x64] sm:$0x1] %vm233, %v1722
      %v1731 = vld [vmem:[%s161 + $0x4] sm:$0x1]
      %v1732 = vld [vmem:[%s161 + $0x1c] sm:$0x1]
      %v1733 = vld [vmem:[%s161 + $0x34] sm:$0x1]
      %v1734 = vld [vmem:[%s161 + $0x4c] sm:$0x1]
      %1739 = vrot.lane.b32.xlu0 %v1731, 47
      %v1740 = vpop.permute.xlu0 %1739
      %1741 = vrot.lane.b32.xlu0 %v1732, 47
      %v1742 = vpop.permute.xlu0 %1741
      %1743 = vrot.lane.b32.xlu0 %v1733, 47
      %v1744 = vpop.permute.xlu0 %1743
      %1745 = vrot.lane.b32.xlu0 %v1734, 47
      %v1746 = vpop.permute.xlu0 %1745
      %1751 = vst.msk [vmem:[%s176 + $0x4] sm:$0x1] %vm258, %v1740
      %1752 = vst.msk [vmem:[%s176 + $0x24] sm:$0x1] %vm258, %v1742
      %1753 = vst.msk [vmem:[%s176 + $0x44] sm:$0x1] %vm258, %v1744
      %1754 = vst.msk [vmem:[%s176 + $0x64] sm:$0x1] %vm258, %v1746
      %v1755 = vld [vmem:[%s161 + $0x5] sm:$0x1]
      %v1756 = vld [vmem:[%s161 + $0x1d] sm:$0x1]
      %v1757 = vld [vmem:[%s161 + $0x35] sm:$0x1]
      %v1758 = vld [vmem:[%s161 + $0x4d] sm:$0x1]
      %1763 = vrot.lane.b32.xlu0 %v1755, 63
      %v1764 = vpop.permute.xlu0 %1763
      %1765 = vrot.lane.b32.xlu0 %v1756, 63
      %v1766 = vpop.permute.xlu0 %1765
      %1767 = vrot.lane.b32.xlu0 %v1757, 63
      %v1768 = vpop.permute.xlu0 %1767
      %1769 = vrot.lane.b32.xlu0 %v1758, 63
      %v1770 = vpop.permute.xlu0 %1769
      %1775 = vst.msk [vmem:[%s176 + $0x4] sm:$0x1] %vm283, %v1764
      %1776 = vst.msk [vmem:[%s176 + $0x24] sm:$0x1] %vm283, %v1766
      %1777 = vst.msk [vmem:[%s176 + $0x44] sm:$0x1] %vm283, %v1768
      %1778 = vst.msk [vmem:[%s176 + $0x64] sm:$0x1] %vm283, %v1770
      %v1779 = vld [vmem:[%s161 + $0x6] sm:$0x1]
      %v1780 = vld [vmem:[%s161 + $0x1e] sm:$0x1]
      %v1781 = vld [vmem:[%s161 + $0x36] sm:$0x1]
      %v1782 = vld [vmem:[%s161 + $0x4e] sm:$0x1]
      %1787 = vrot.lane.b32.xlu0 %v1779, 79
      %v1788 = vpop.permute.xlu0 %1787
      %1789 = vrot.lane.b32.xlu0 %v1780, 79
      %v1790 = vpop.permute.xlu0 %1789
      %1791 = vrot.lane.b32.xlu0 %v1781, 79
      %v1792 = vpop.permute.xlu0 %1791
      %1793 = vrot.lane.b32.xlu0 %v1782, 79
      %v1794 = vpop.permute.xlu0 %1793
      %1799 = vst.msk [vmem:[%s176 + $0x4] sm:$0x1] %vm308, %v1788
      %1800 = vst.msk [vmem:[%s176 + $0x24] sm:$0x1] %vm308, %v1790
      %1801 = vst.msk [vmem:[%s176 + $0x44] sm:$0x1] %vm308, %v1792
      %1802 = vst.msk [vmem:[%s176 + $0x64] sm:$0x1] %vm308, %v1794
      %v1803 = vld [vmem:[%s161 + $0x7] sm:$0x1]
      %v1804 = vld [vmem:[%s161 + $0x1f] sm:$0x1]
      %v1805 = vld [vmem:[%s161 + $0x37] sm:$0x1]
      %v1806 = vld [vmem:[%s161 + $0x4f] sm:$0x1]
      %1811 = vrot.lane.b32.xlu0 %v1803, 95
      %v1812 = vpop.permute.xlu0 %1811
      %1813 = vrot.lane.b32.xlu0 %v1804, 95
      %v1814 = vpop.permute.xlu0 %1813
      %1815 = vrot.lane.b32.xlu0 %v1805, 95
      %v1816 = vpop.permute.xlu0 %1815
      %1817 = vrot.lane.b32.xlu0 %v1806, 95
      %v1818 = vpop.permute.xlu0 %1817
      %1823 = vst.msk [vmem:[%s176 + $0x4] sm:$0x1] %vm333, %v1812
      %1824 = vst.msk [vmem:[%s176 + $0x24] sm:$0x1] %vm333, %v1814
      %1825 = vst.msk [vmem:[%s176 + $0x44] sm:$0x1] %vm333, %v1816
      %1826 = vst.msk [vmem:[%s176 + $0x64] sm:$0x1] %vm333, %v1818
      %v1827 = vld [vmem:[%s161 + $0x8] sm:$0x1]
      %v1828 = vld [vmem:[%s161 + $0x20] sm:$0x1]
      %v1829 = vld [vmem:[%s161 + $0x38] sm:$0x1]
      %v1830 = vld [vmem:[%s161 + $0x50] sm:$0x1]
      %1835 = vrot.lane.b32.xlu0 %v1827, 111
      %v1836 = vpop.permute.xlu0 %1835
      %1837 = vrot.lane.b32.xlu0 %v1828, 111
      %v1838 = vpop.permute.xlu0 %1837
      %1839 = vrot.lane.b32.xlu0 %v1829, 111
      %v1840 = vpop.permute.xlu0 %1839
      %1841 = vrot.lane.b32.xlu0 %v1830, 111
      %v1842 = vpop.permute.xlu0 %1841
      %1847 = vst.msk [vmem:[%s176 + $0x4] sm:$0x1] %vm358, %v1836
      %1848 = vst.msk [vmem:[%s176 + $0x24] sm:$0x1] %vm358, %v1838
      %1849 = vst.msk [vmem:[%s176 + $0x44] sm:$0x1] %vm358, %v1840
      %1850 = vst.msk [vmem:[%s176 + $0x64] sm:$0x1] %vm358, %v1842
      %v1851 = vld [vmem:[%s161 + $0x9] sm:$0x1]
      %v1852 = vld [vmem:[%s161 + $0x21] sm:$0x1]
      %v1853 = vld [vmem:[%s161 + $0x39] sm:$0x1]
      %v1854 = vld [vmem:[%s161 + $0x51] sm:$0x1]
      %1859 = vrot.lane.b32.xlu0 %v1851, 127
      %v1860 = vpop.permute.xlu0 %1859
      %1861 = vrot.lane.b32.xlu0 %v1852, 127
      %v1862 = vpop.permute.xlu0 %1861
      %1863 = vrot.lane.b32.xlu0 %v1853, 127
      %v1864 = vpop.permute.xlu0 %1863
      %1865 = vrot.lane.b32.xlu0 %v1854, 127
      %v1866 = vpop.permute.xlu0 %1865
      %1871 = vst.msk [vmem:[%s176 + $0xc] sm:$0x1] %vm183, %v1860
      %1872 = vst.msk [vmem:[%s176 + $0x2c] sm:$0x1] %vm183, %v1862
      %1873 = vst.msk [vmem:[%s176 + $0x4c] sm:$0x1] %vm183, %v1864
      %1874 = vst.msk [vmem:[%s176 + $0x6c] sm:$0x1] %vm183, %v1866
      %v1875 = vld [vmem:[%s161 + $0xa] sm:$0x1]
      %v1876 = vld [vmem:[%s161 + $0x22] sm:$0x1]
      %v1877 = vld [vmem:[%s161 + $0x3a] sm:$0x1]
      %v1878 = vld [vmem:[%s161 + $0x52] sm:$0x1]
      %1883 = vrot.lane.b32.xlu0 %v1875, 15
      %v1884 = vpop.permute.xlu0 %1883
      %1885 = vrot.lane.b32.xlu0 %v1876, 15
      %v1886 = vpop.permute.xlu0 %1885
      %1887 = vrot.lane.b32.xlu0 %v1877, 15
      %v1888 = vpop.permute.xlu0 %1887
      %1889 = vrot.lane.b32.xlu0 %v1878, 15
      %v1890 = vpop.permute.xlu0 %1889
      %1895 = vst.msk [vmem:[%s176 + $0xc] sm:$0x1] %vm208, %v1884
      %1896 = vst.msk [vmem:[%s176 + $0x2c] sm:$0x1] %vm208, %v1886
      %1897 = vst.msk [vmem:[%s176 + $0x4c] sm:$0x1] %vm208, %v1888
      %1898 = vst.msk [vmem:[%s176 + $0x6c] sm:$0x1] %vm208, %v1890
      %v1899 = vld [vmem:[%s161 + $0xb] sm:$0x1]
      %v1900 = vld [vmem:[%s161 + $0x23] sm:$0x1]
      %v1901 = vld [vmem:[%s161 + $0x3b] sm:$0x1]
      %v1902 = vld [vmem:[%s161 + $0x53] sm:$0x1]
      %1907 = vrot.lane.b32.xlu0 %v1899, 31
      %v1908 = vpop.permute.xlu0 %1907
      %1909 = vrot.lane.b32.xlu0 %v1900, 31
      %v1910 = vpop.permute.xlu0 %1909
      %1911 = vrot.lane.b32.xlu0 %v1901, 31
      %v1912 = vpop.permute.xlu0 %1911
      %1913 = vrot.lane.b32.xlu0 %v1902, 31
      %v1914 = vpop.permute.xlu0 %1913
      %1919 = vst.msk [vmem:[%s176 + $0xc] sm:$0x1] %vm233, %v1908
      %1920 = vst.msk [vmem:[%s176 + $0x2c] sm:$0x1] %vm233, %v1910
      %1921 = vst.msk [vmem:[%s176 + $0x4c] sm:$0x1] %vm233, %v1912
      %1922 = vst.msk [vmem:[%s176 + $0x6c] sm:$0x1] %vm233, %v1914
      %v1923 = vld [vmem:[%s161 + $0xc] sm:$0x1]
      %v1924 = vld [vmem:[%s161 + $0x24] sm:$0x1]
      %v1925 = vld [vmem:[%s161 + $0x3c] sm:$0x1]
      %v1926 = vld [vmem:[%s161 + $0x54] sm:$0x1]
      %1931 = vrot.lane.b32.xlu0 %v1923, 47
      %v1932 = vpop.permute.xlu0 %1931
      %1933 = vrot.lane.b32.xlu0 %v1924, 47
      %v1934 = vpop.permute.xlu0 %1933
      %1935 = vrot.lane.b32.xlu0 %v1925, 47
      %v1936 = vpop.permute.xlu0 %1935
      %1937 = vrot.lane.b32.xlu0 %v1926, 47
      %v1938 = vpop.permute.xlu0 %1937
      %1943 = vst.msk [vmem:[%s176 + $0xc] sm:$0x1] %vm258, %v1932
      %1944 = vst.msk [vmem:[%s176 + $0x2c] sm:$0x1] %vm258, %v1934
      %1945 = vst.msk [vmem:[%s176 + $0x4c] sm:$0x1] %vm258, %v1936
      %1946 = vst.msk [vmem:[%s176 + $0x6c] sm:$0x1] %vm258, %v1938
      %v1947 = vld [vmem:[%s161 + $0xd] sm:$0x1]
      %v1948 = vld [vmem:[%s161 + $0x25] sm:$0x1]
      %v1949 = vld [vmem:[%s161 + $0x3d] sm:$0x1]
      %v1950 = vld [vmem:[%s161 + $0x55] sm:$0x1]
      %1955 = vrot.lane.b32.xlu0 %v1947, 63
      %v1956 = vpop.permute.xlu0 %1955
      %1957 = vrot.lane.b32.xlu0 %v1948, 63
      %v1958 = vpop.permute.xlu0 %1957
      %1959 = vrot.lane.b32.xlu0 %v1949, 63
      %v1960 = vpop.permute.xlu0 %1959
      %1961 = vrot.lane.b32.xlu0 %v1950, 63
      %v1962 = vpop.permute.xlu0 %1961
      %1967 = vst.msk [vmem:[%s176 + $0xc] sm:$0x1] %vm283, %v1956
      %1968 = vst.msk [vmem:[%s176 + $0x2c] sm:$0x1] %vm283, %v1958
      %1969 = vst.msk [vmem:[%s176 + $0x4c] sm:$0x1] %vm283, %v1960
      %1970 = vst.msk [vmem:[%s176 + $0x6c] sm:$0x1] %vm283, %v1962
      %v1971 = vld [vmem:[%s161 + $0xe] sm:$0x1]
      %v1972 = vld [vmem:[%s161 + $0x26] sm:$0x1]
      %v1973 = vld [vmem:[%s161 + $0x3e] sm:$0x1]
      %v1974 = vld [vmem:[%s161 + $0x56] sm:$0x1]
      %1979 = vrot.lane.b32.xlu0 %v1971, 79
      %v1980 = vpop.permute.xlu0 %1979
      %1981 = vrot.lane.b32.xlu0 %v1972, 79
      %v1982 = vpop.permute.xlu0 %1981
      %1983 = vrot.lane.b32.xlu0 %v1973, 79
      %v1984 = vpop.permute.xlu0 %1983
      %1985 = vrot.lane.b32.xlu0 %v1974, 79
      %v1986 = vpop.permute.xlu0 %1985
      %1991 = vst.msk [vmem:[%s176 + $0xc] sm:$0x1] %vm308, %v1980
      %1992 = vst.msk [vmem:[%s176 + $0x2c] sm:$0x1] %vm308, %v1982
      %1993 = vst.msk [vmem:[%s176 + $0x4c] sm:$0x1] %vm308, %v1984
      %1994 = vst.msk [vmem:[%s176 + $0x6c] sm:$0x1] %vm308, %v1986
      %v1995 = vld [vmem:[%s161 + $0xf] sm:$0x1]
      %v1996 = vld [vmem:[%s161 + $0x27] sm:$0x1]
      %v1997 = vld [vmem:[%s161 + $0x3f] sm:$0x1]
      %v1998 = vld [vmem:[%s161 + $0x57] sm:$0x1]
      %2003 = vrot.lane.b32.xlu0 %v1995, 95
      %v2004 = vpop.permute.xlu0 %2003
      %2005 = vrot.lane.b32.xlu0 %v1996, 95
      %v2006 = vpop.permute.xlu0 %2005
      %2007 = vrot.lane.b32.xlu0 %v1997, 95
      %v2008 = vpop.permute.xlu0 %2007
      %2009 = vrot.lane.b32.xlu0 %v1998, 95
      %v2010 = vpop.permute.xlu0 %2009
      %2015 = vst.msk [vmem:[%s176 + $0xc] sm:$0x1] %vm333, %v2004
      %2016 = vst.msk [vmem:[%s176 + $0x2c] sm:$0x1] %vm333, %v2006
      %2017 = vst.msk [vmem:[%s176 + $0x4c] sm:$0x1] %vm333, %v2008
      %2018 = vst.msk [vmem:[%s176 + $0x6c] sm:$0x1] %vm333, %v2010
      %v2019 = vld [vmem:[%s161 + $0x10] sm:$0x1]
      %v2020 = vld [vmem:[%s161 + $0x28] sm:$0x1]
      %v2021 = vld [vmem:[%s161 + $0x40] sm:$0x1]
      %v2022 = vld [vmem:[%s161 + $0x58] sm:$0x1]
      %2027 = vrot.lane.b32.xlu0 %v2019, 111
      %v2028 = vpop.permute.xlu0 %2027
      %2029 = vrot.lane.b32.xlu0 %v2020, 111
      %v2030 = vpop.permute.xlu0 %2029
      %2031 = vrot.lane.b32.xlu0 %v2021, 111
      %v2032 = vpop.permute.xlu0 %2031
      %2033 = vrot.lane.b32.xlu0 %v2022, 111
      %v2034 = vpop.permute.xlu0 %2033
      %2039 = vst.msk [vmem:[%s176 + $0xc] sm:$0x1] %vm358, %v2028
      %2040 = vst.msk [vmem:[%s176 + $0x2c] sm:$0x1] %vm358, %v2030
      %2041 = vst.msk [vmem:[%s176 + $0x4c] sm:$0x1] %vm358, %v2032
      %2042 = vst.msk [vmem:[%s176 + $0x6c] sm:$0x1] %vm358, %v2034
      %v2043 = vld [vmem:[%s161 + $0x1] sm:$0x1]
      %v2044 = vld [vmem:[%s161 + $0x19] sm:$0x1]
      %v2045 = vld [vmem:[%s161 + $0x31] sm:$0x1]
      %v2046 = vld [vmem:[%s161 + $0x49] sm:$0x1]
      %2051 = vrot.lane.b32.xlu0 %v2043, 126
      %v2052 = vpop.permute.xlu0 %2051
      %2053 = vrot.lane.b32.xlu0 %v2044, 126
      %v2054 = vpop.permute.xlu0 %2053
      %2055 = vrot.lane.b32.xlu0 %v2045, 126
      %v2056 = vpop.permute.xlu0 %2055
      %2057 = vrot.lane.b32.xlu0 %v2046, 126
      %v2058 = vpop.permute.xlu0 %2057
      %2063 = vst.msk [vmem:[%s176 + $0x5] sm:$0x1] %vm183, %v2052
      %2064 = vst.msk [vmem:[%s176 + $0x25] sm:$0x1] %vm183, %v2054
      %2065 = vst.msk [vmem:[%s176 + $0x45] sm:$0x1] %vm183, %v2056
      %2066 = vst.msk [vmem:[%s176 + $0x65] sm:$0x1] %vm183, %v2058
      %v2067 = vld [vmem:[%s161 + $0x2] sm:$0x1]
      %v2068 = vld [vmem:[%s161 + $0x1a] sm:$0x1]
      %v2069 = vld [vmem:[%s161 + $0x32] sm:$0x1]
      %v2070 = vld [vmem:[%s161 + $0x4a] sm:$0x1]
      %2075 = vrot.lane.b32.xlu0 %v2067, 14
      %v2076 = vpop.permute.xlu0 %2075
      %2077 = vrot.lane.b32.xlu0 %v2068, 14
      %v2078 = vpop.permute.xlu0 %2077
      %2079 = vrot.lane.b32.xlu0 %v2069, 14
      %v2080 = vpop.permute.xlu0 %2079
      %2081 = vrot.lane.b32.xlu0 %v2070, 14
      %v2082 = vpop.permute.xlu0 %2081
      %2087 = vst.msk [vmem:[%s176 + $0x5] sm:$0x1] %vm208, %v2076
      %2088 = vst.msk [vmem:[%s176 + $0x25] sm:$0x1] %vm208, %v2078
      %2089 = vst.msk [vmem:[%s176 + $0x45] sm:$0x1] %vm208, %v2080
      %2090 = vst.msk [vmem:[%s176 + $0x65] sm:$0x1] %vm208, %v2082
      %v2091 = vld [vmem:[%s161 + $0x3] sm:$0x1]
      %v2092 = vld [vmem:[%s161 + $0x1b] sm:$0x1]
      %v2093 = vld [vmem:[%s161 + $0x33] sm:$0x1]
      %v2094 = vld [vmem:[%s161 + $0x4b] sm:$0x1]
      %2099 = vrot.lane.b32.xlu0 %v2091, 30
      %v2100 = vpop.permute.xlu0 %2099
      %2101 = vrot.lane.b32.xlu0 %v2092, 30
      %v2102 = vpop.permute.xlu0 %2101
      %2103 = vrot.lane.b32.xlu0 %v2093, 30
      %v2104 = vpop.permute.xlu0 %2103
      %2105 = vrot.lane.b32.xlu0 %v2094, 30
      %v2106 = vpop.permute.xlu0 %2105
      %2111 = vst.msk [vmem:[%s176 + $0x5] sm:$0x1] %vm233, %v2100
      %2112 = vst.msk [vmem:[%s176 + $0x25] sm:$0x1] %vm233, %v2102
      %2113 = vst.msk [vmem:[%s176 + $0x45] sm:$0x1] %vm233, %v2104
      %2114 = vst.msk [vmem:[%s176 + $0x65] sm:$0x1] %vm233, %v2106
      %v2115 = vld [vmem:[%s161 + $0x4] sm:$0x1]
      %v2116 = vld [vmem:[%s161 + $0x1c] sm:$0x1]
      %v2117 = vld [vmem:[%s161 + $0x34] sm:$0x1]
      %v2118 = vld [vmem:[%s161 + $0x4c] sm:$0x1]
      %2123 = vrot.lane.b32.xlu0 %v2115, 46
      %v2124 = vpop.permute.xlu0 %2123
      %2125 = vrot.lane.b32.xlu0 %v2116, 46
      %v2126 = vpop.permute.xlu0 %2125
      %2127 = vrot.lane.b32.xlu0 %v2117, 46
      %v2128 = vpop.permute.xlu0 %2127
      %2129 = vrot.lane.b32.xlu0 %v2118, 46
      %v2130 = vpop.permute.xlu0 %2129
      %2135 = vst.msk [vmem:[%s176 + $0x5] sm:$0x1] %vm258, %v2124
      %2136 = vst.msk [vmem:[%s176 + $0x25] sm:$0x1] %vm258, %v2126
      %2137 = vst.msk [vmem:[%s176 + $0x45] sm:$0x1] %vm258, %v2128
      %2138 = vst.msk [vmem:[%s176 + $0x65] sm:$0x1] %vm258, %v2130
      %v2139 = vld [vmem:[%s161 + $0x5] sm:$0x1]
      %v2140 = vld [vmem:[%s161 + $0x1d] sm:$0x1]
      %v2141 = vld [vmem:[%s161 + $0x35] sm:$0x1]
      %v2142 = vld [vmem:[%s161 + $0x4d] sm:$0x1]
      %2147 = vrot.lane.b32.xlu0 %v2139, 62
      %v2148 = vpop.permute.xlu0 %2147
      %2149 = vrot.lane.b32.xlu0 %v2140, 62
      %v2150 = vpop.permute.xlu0 %2149
      %2151 = vrot.lane.b32.xlu0 %v2141, 62
      %v2152 = vpop.permute.xlu0 %2151
      %2153 = vrot.lane.b32.xlu0 %v2142, 62
      %v2154 = vpop.permute.xlu0 %2153
      %2159 = vst.msk [vmem:[%s176 + $0x5] sm:$0x1] %vm283, %v2148
      %2160 = vst.msk [vmem:[%s176 + $0x25] sm:$0x1] %vm283, %v2150
      %2161 = vst.msk [vmem:[%s176 + $0x45] sm:$0x1] %vm283, %v2152
      %2162 = vst.msk [vmem:[%s176 + $0x65] sm:$0x1] %vm283, %v2154
      %v2163 = vld [vmem:[%s161 + $0x6] sm:$0x1]
      %v2164 = vld [vmem:[%s161 + $0x1e] sm:$0x1]
      %v2165 = vld [vmem:[%s161 + $0x36] sm:$0x1]
      %v2166 = vld [vmem:[%s161 + $0x4e] sm:$0x1]
      %2171 = vrot.lane.b32.xlu0 %v2163, 78
      %v2172 = vpop.permute.xlu0 %2171
      %2173 = vrot.lane.b32.xlu0 %v2164, 78
      %v2174 = vpop.permute.xlu0 %2173
      %2175 = vrot.lane.b32.xlu0 %v2165, 78
      %v2176 = vpop.permute.xlu0 %2175
      %2177 = vrot.lane.b32.xlu0 %v2166, 78
      %v2178 = vpop.permute.xlu0 %2177
      %2183 = vst.msk [vmem:[%s176 + $0x5] sm:$0x1] %vm308, %v2172
      %2184 = vst.msk [vmem:[%s176 + $0x25] sm:$0x1] %vm308, %v2174
      %2185 = vst.msk [vmem:[%s176 + $0x45] sm:$0x1] %vm308, %v2176
      %2186 = vst.msk [vmem:[%s176 + $0x65] sm:$0x1] %vm308, %v2178
      %v2187 = vld [vmem:[%s161 + $0x7] sm:$0x1]
      %v2188 = vld [vmem:[%s161 + $0x1f] sm:$0x1]
      %v2189 = vld [vmem:[%s161 + $0x37] sm:$0x1]
      %v2190 = vld [vmem:[%s161 + $0x4f] sm:$0x1]
      %2195 = vrot.lane.b32.xlu0 %v2187, 94
      %v2196 = vpop.permute.xlu0 %2195
      %2197 = vrot.lane.b32.xlu0 %v2188, 94
      %v2198 = vpop.permute.xlu0 %2197
      %2199 = vrot.lane.b32.xlu0 %v2189, 94
      %v2200 = vpop.permute.xlu0 %2199
      %2201 = vrot.lane.b32.xlu0 %v2190, 94
      %v2202 = vpop.permute.xlu0 %2201
      %2207 = vst.msk [vmem:[%s176 + $0x5] sm:$0x1] %vm333, %v2196
      %2208 = vst.msk [vmem:[%s176 + $0x25] sm:$0x1] %vm333, %v2198
      %2209 = vst.msk [vmem:[%s176 + $0x45] sm:$0x1] %vm333, %v2200
      %2210 = vst.msk [vmem:[%s176 + $0x65] sm:$0x1] %vm333, %v2202
      %v2211 = vld [vmem:[%s161 + $0x8] sm:$0x1]
      %v2212 = vld [vmem:[%s161 + $0x20] sm:$0x1]
      %v2213 = vld [vmem:[%s161 + $0x38] sm:$0x1]
      %v2214 = vld [vmem:[%s161 + $0x50] sm:$0x1]
      %2219 = vrot.lane.b32.xlu0 %v2211, 110
      %v2220 = vpop.permute.xlu0 %2219
      %2221 = vrot.lane.b32.xlu0 %v2212, 110
      %v2222 = vpop.permute.xlu0 %2221
      %2223 = vrot.lane.b32.xlu0 %v2213, 110
      %v2224 = vpop.permute.xlu0 %2223
      %2225 = vrot.lane.b32.xlu0 %v2214, 110
      %v2226 = vpop.permute.xlu0 %2225
      %2231 = vst.msk [vmem:[%s176 + $0x5] sm:$0x1] %vm358, %v2220
      %2232 = vst.msk [vmem:[%s176 + $0x25] sm:$0x1] %vm358, %v2222
      %2233 = vst.msk [vmem:[%s176 + $0x45] sm:$0x1] %vm358, %v2224
      %2234 = vst.msk [vmem:[%s176 + $0x65] sm:$0x1] %vm358, %v2226
      %v2235 = vld [vmem:[%s161 + $0x9] sm:$0x1]
      %v2236 = vld [vmem:[%s161 + $0x21] sm:$0x1]
      %v2237 = vld [vmem:[%s161 + $0x39] sm:$0x1]
      %v2238 = vld [vmem:[%s161 + $0x51] sm:$0x1]
      %2243 = vrot.lane.b32.xlu0 %v2235, 126
      %v2244 = vpop.permute.xlu0 %2243
      %2245 = vrot.lane.b32.xlu0 %v2236, 126
      %v2246 = vpop.permute.xlu0 %2245
      %2247 = vrot.lane.b32.xlu0 %v2237, 126
      %v2248 = vpop.permute.xlu0 %2247
      %2249 = vrot.lane.b32.xlu0 %v2238, 126
      %v2250 = vpop.permute.xlu0 %2249
      %2255 = vst.msk [vmem:[%s176 + $0xd] sm:$0x1] %vm183, %v2244
      %2256 = vst.msk [vmem:[%s176 + $0x2d] sm:$0x1] %vm183, %v2246
      %2257 = vst.msk [vmem:[%s176 + $0x4d] sm:$0x1] %vm183, %v2248
      %2258 = vst.msk [vmem:[%s176 + $0x6d] sm:$0x1] %vm183, %v2250
      %v2259 = vld [vmem:[%s161 + $0xa] sm:$0x1]
      %v2260 = vld [vmem:[%s161 + $0x22] sm:$0x1]
      %v2261 = vld [vmem:[%s161 + $0x3a] sm:$0x1]
      %v2262 = vld [vmem:[%s161 + $0x52] sm:$0x1]
      %2267 = vrot.lane.b32.xlu0 %v2259, 14
      %v2268 = vpop.permute.xlu0 %2267
      %2269 = vrot.lane.b32.xlu0 %v2260, 14
      %v2270 = vpop.permute.xlu0 %2269
      %2271 = vrot.lane.b32.xlu0 %v2261, 14
      %v2272 = vpop.permute.xlu0 %2271
      %2273 = vrot.lane.b32.xlu0 %v2262, 14
      %v2274 = vpop.permute.xlu0 %2273
      %2279 = vst.msk [vmem:[%s176 + $0xd] sm:$0x1] %vm208, %v2268
      %2280 = vst.msk [vmem:[%s176 + $0x2d] sm:$0x1] %vm208, %v2270
      %2281 = vst.msk [vmem:[%s176 + $0x4d] sm:$0x1] %vm208, %v2272
      %2282 = vst.msk [vmem:[%s176 + $0x6d] sm:$0x1] %vm208, %v2274
      %v2283 = vld [vmem:[%s161 + $0xb] sm:$0x1]
      %v2284 = vld [vmem:[%s161 + $0x23] sm:$0x1]
      %v2285 = vld [vmem:[%s161 + $0x3b] sm:$0x1]
      %v2286 = vld [vmem:[%s161 + $0x53] sm:$0x1]
      %2291 = vrot.lane.b32.xlu0 %v2283, 30
      %v2292 = vpop.permute.xlu0 %2291
      %2293 = vrot.lane.b32.xlu0 %v2284, 30
      %v2294 = vpop.permute.xlu0 %2293
      %2295 = vrot.lane.b32.xlu0 %v2285, 30
      %v2296 = vpop.permute.xlu0 %2295
      %2297 = vrot.lane.b32.xlu0 %v2286, 30
      %v2298 = vpop.permute.xlu0 %2297
      %2303 = vst.msk [vmem:[%s176 + $0xd] sm:$0x1] %vm233, %v2292
      %2304 = vst.msk [vmem:[%s176 + $0x2d] sm:$0x1] %vm233, %v2294
      %2305 = vst.msk [vmem:[%s176 + $0x4d] sm:$0x1] %vm233, %v2296
      %2306 = vst.msk [vmem:[%s176 + $0x6d] sm:$0x1] %vm233, %v2298
      %v2307 = vld [vmem:[%s161 + $0xc] sm:$0x1]
      %v2308 = vld [vmem:[%s161 + $0x24] sm:$0x1]
      %v2309 = vld [vmem:[%s161 + $0x3c] sm:$0x1]
      %v2310 = vld [vmem:[%s161 + $0x54] sm:$0x1]
      %2315 = vrot.lane.b32.xlu0 %v2307, 46
      %v2316 = vpop.permute.xlu0 %2315
      %2317 = vrot.lane.b32.xlu0 %v2308, 46
      %v2318 = vpop.permute.xlu0 %2317
      %2319 = vrot.lane.b32.xlu0 %v2309, 46
      %v2320 = vpop.permute.xlu0 %2319
      %2321 = vrot.lane.b32.xlu0 %v2310, 46
      %v2322 = vpop.permute.xlu0 %2321
      %2327 = vst.msk [vmem:[%s176 + $0xd] sm:$0x1] %vm258, %v2316
      %2328 = vst.msk [vmem:[%s176 + $0x2d] sm:$0x1] %vm258, %v2318
      %2329 = vst.msk [vmem:[%s176 + $0x4d] sm:$0x1] %vm258, %v2320
      %2330 = vst.msk [vmem:[%s176 + $0x6d] sm:$0x1] %vm258, %v2322
      %v2331 = vld [vmem:[%s161 + $0xd] sm:$0x1]
      %v2332 = vld [vmem:[%s161 + $0x25] sm:$0x1]
      %v2333 = vld [vmem:[%s161 + $0x3d] sm:$0x1]
      %v2334 = vld [vmem:[%s161 + $0x55] sm:$0x1]
      %2339 = vrot.lane.b32.xlu0 %v2331, 62
      %v2340 = vpop.permute.xlu0 %2339
      %2341 = vrot.lane.b32.xlu0 %v2332, 62
      %v2342 = vpop.permute.xlu0 %2341
      %2343 = vrot.lane.b32.xlu0 %v2333, 62
      %v2344 = vpop.permute.xlu0 %2343
      %2345 = vrot.lane.b32.xlu0 %v2334, 62
      %v2346 = vpop.permute.xlu0 %2345
      %2351 = vst.msk [vmem:[%s176 + $0xd] sm:$0x1] %vm283, %v2340
      %2352 = vst.msk [vmem:[%s176 + $0x2d] sm:$0x1] %vm283, %v2342
      %2353 = vst.msk [vmem:[%s176 + $0x4d] sm:$0x1] %vm283, %v2344
      %2354 = vst.msk [vmem:[%s176 + $0x6d] sm:$0x1] %vm283, %v2346
      %v2355 = vld [vmem:[%s161 + $0xe] sm:$0x1]
      %v2356 = vld [vmem:[%s161 + $0x26] sm:$0x1]
      %v2357 = vld [vmem:[%s161 + $0x3e] sm:$0x1]
      %v2358 = vld [vmem:[%s161 + $0x56] sm:$0x1]
      %2363 = vrot.lane.b32.xlu0 %v2355, 78
      %v2364 = vpop.permute.xlu0 %2363
      %2365 = vrot.lane.b32.xlu0 %v2356, 78
      %v2366 = vpop.permute.xlu0 %2365
      %2367 = vrot.lane.b32.xlu0 %v2357, 78
      %v2368 = vpop.permute.xlu0 %2367
      %2369 = vrot.lane.b32.xlu0 %v2358, 78
      %v2370 = vpop.permute.xlu0 %2369
      %2375 = vst.msk [vmem:[%s176 + $0xd] sm:$0x1] %vm308, %v2364
      %2376 = vst.msk [vmem:[%s176 + $0x2d] sm:$0x1] %vm308, %v2366
      %2377 = vst.msk [vmem:[%s176 + $0x4d] sm:$0x1] %vm308, %v2368
      %2378 = vst.msk [vmem:[%s176 + $0x6d] sm:$0x1] %vm308, %v2370
      %v2379 = vld [vmem:[%s161 + $0xf] sm:$0x1]
      %v2380 = vld [vmem:[%s161 + $0x27] sm:$0x1]
      %v2381 = vld [vmem:[%s161 + $0x3f] sm:$0x1]
      %v2382 = vld [vmem:[%s161 + $0x57] sm:$0x1]
      %2387 = vrot.lane.b32.xlu0 %v2379, 94
      %v2388 = vpop.permute.xlu0 %2387
      %2389 = vrot.lane.b32.xlu0 %v2380, 94
      %v2390 = vpop.permute.xlu0 %2389
      %2391 = vrot.lane.b32.xlu0 %v2381, 94
      %v2392 = vpop.permute.xlu0 %2391
      %2393 = vrot.lane.b32.xlu0 %v2382, 94
      %v2394 = vpop.permute.xlu0 %2393
      %2399 = vst.msk [vmem:[%s176 + $0xd] sm:$0x1] %vm333, %v2388
      %2400 = vst.msk [vmem:[%s176 + $0x2d] sm:$0x1] %vm333, %v2390
      %2401 = vst.msk [vmem:[%s176 + $0x4d] sm:$0x1] %vm333, %v2392
      %2402 = vst.msk [vmem:[%s176 + $0x6d] sm:$0x1] %vm333, %v2394
      %v2403 = vld [vmem:[%s161 + $0x10] sm:$0x1]
      %v2404 = vld [vmem:[%s161 + $0x28] sm:$0x1]
      %v2405 = vld [vmem:[%s161 + $0x40] sm:$0x1]
      %v2406 = vld [vmem:[%s161 + $0x58] sm:$0x1]
      %2411 = vrot.lane.b32.xlu0 %v2403, 110
      %v2412 = vpop.permute.xlu0 %2411
      %2413 = vrot.lane.b32.xlu0 %v2404, 110
      %v2414 = vpop.permute.xlu0 %2413
      %2415 = vrot.lane.b32.xlu0 %v2405, 110
      %v2416 = vpop.permute.xlu0 %2415
      %2417 = vrot.lane.b32.xlu0 %v2406, 110
      %v2418 = vpop.permute.xlu0 %2417
      %2423 = vst.msk [vmem:[%s176 + $0xd] sm:$0x1] %vm358, %v2412
      %2424 = vst.msk [vmem:[%s176 + $0x2d] sm:$0x1] %vm358, %v2414
      %2425 = vst.msk [vmem:[%s176 + $0x4d] sm:$0x1] %vm358, %v2416
      %2426 = vst.msk [vmem:[%s176 + $0x6d] sm:$0x1] %vm358, %v2418
      %v2427 = vld [vmem:[%s161 + $0x2] sm:$0x1]
      %v2428 = vld [vmem:[%s161 + $0x1a] sm:$0x1]
      %v2429 = vld [vmem:[%s161 + $0x32] sm:$0x1]
      %v2430 = vld [vmem:[%s161 + $0x4a] sm:$0x1]
      %2431 = vst.msk [vmem:[%s176 + $0x6] sm:$0x1] %vm183, %v2427
      %2432 = vst.msk [vmem:[%s176 + $0x26] sm:$0x1] %vm183, %v2428
      %2433 = vst.msk [vmem:[%s176 + $0x46] sm:$0x1] %vm183, %v2429
      %2434 = vst.msk [vmem:[%s176 + $0x66] sm:$0x1] %vm183, %v2430
      %v2435 = vld [vmem:[%s161 + $0x3] sm:$0x1]
      %v2436 = vld [vmem:[%s161 + $0x1b] sm:$0x1]
      %v2437 = vld [vmem:[%s161 + $0x33] sm:$0x1]
      %v2438 = vld [vmem:[%s161 + $0x4b] sm:$0x1]
      %2443 = vrot.lane.b32.xlu0 %v2435, 16
      %v2444 = vpop.permute.xlu0 %2443
      %2445 = vrot.lane.b32.xlu0 %v2436, 16
      %v2446 = vpop.permute.xlu0 %2445
      %2447 = vrot.lane.b32.xlu0 %v2437, 16
      %v2448 = vpop.permute.xlu0 %2447
      %2449 = vrot.lane.b32.xlu0 %v2438, 16
      %v2450 = vpop.permute.xlu0 %2449
      %2455 = vst.msk [vmem:[%s176 + $0x6] sm:$0x1] %vm208, %v2444
      %2456 = vst.msk [vmem:[%s176 + $0x26] sm:$0x1] %vm208, %v2446
      %2457 = vst.msk [vmem:[%s176 + $0x46] sm:$0x1] %vm208, %v2448
      %2458 = vst.msk [vmem:[%s176 + $0x66] sm:$0x1] %vm208, %v2450
      %v2459 = vld [vmem:[%s161 + $0x4] sm:$0x1]
      %v2460 = vld [vmem:[%s161 + $0x1c] sm:$0x1]
      %v2461 = vld [vmem:[%s161 + $0x34] sm:$0x1]
      %v2462 = vld [vmem:[%s161 + $0x4c] sm:$0x1]
      %2467 = vrot.lane.b32.xlu0 %v2459, 32
      %v2468 = vpop.permute.xlu0 %2467
      %2469 = vrot.lane.b32.xlu0 %v2460, 32
      %v2470 = vpop.permute.xlu0 %2469
      %2471 = vrot.lane.b32.xlu0 %v2461, 32
      %v2472 = vpop.permute.xlu0 %2471
      %2473 = vrot.lane.b32.xlu0 %v2462, 32
      %v2474 = vpop.permute.xlu0 %2473
      %2479 = vst.msk [vmem:[%s176 + $0x6] sm:$0x1] %vm233, %v2468
      %2480 = vst.msk [vmem:[%s176 + $0x26] sm:$0x1] %vm233, %v2470
      %2481 = vst.msk [vmem:[%s176 + $0x46] sm:$0x1] %vm233, %v2472
      %2482 = vst.msk [vmem:[%s176 + $0x66] sm:$0x1] %vm233, %v2474
      %v2483 = vld [vmem:[%s161 + $0x5] sm:$0x1]
      %v2484 = vld [vmem:[%s161 + $0x1d] sm:$0x1]
      %v2485 = vld [vmem:[%s161 + $0x35] sm:$0x1]
      %v2486 = vld [vmem:[%s161 + $0x4d] sm:$0x1]
      %2491 = vrot.lane.b32.xlu0 %v2483, 48
      %v2492 = vpop.permute.xlu0 %2491
      %2493 = vrot.lane.b32.xlu0 %v2484, 48
      %v2494 = vpop.permute.xlu0 %2493
      %2495 = vrot.lane.b32.xlu0 %v2485, 48
      %v2496 = vpop.permute.xlu0 %2495
      %2497 = vrot.lane.b32.xlu0 %v2486, 48
      %v2498 = vpop.permute.xlu0 %2497
      %2503 = vst.msk [vmem:[%s176 + $0x6] sm:$0x1] %vm258, %v2492
      %2504 = vst.msk [vmem:[%s176 + $0x26] sm:$0x1] %vm258, %v2494
      %2505 = vst.msk [vmem:[%s176 + $0x46] sm:$0x1] %vm258, %v2496
      %2506 = vst.msk [vmem:[%s176 + $0x66] sm:$0x1] %vm258, %v2498
      %v2507 = vld [vmem:[%s161 + $0x6] sm:$0x1]
      %v2508 = vld [vmem:[%s161 + $0x1e] sm:$0x1]
      %v2509 = vld [vmem:[%s161 + $0x36] sm:$0x1]
      %v2510 = vld [vmem:[%s161 + $0x4e] sm:$0x1]
      %2515 = vrot.lane.b32.xlu0 %v2507, 64
      %v2516 = vpop.permute.xlu0 %2515
      %2517 = vrot.lane.b32.xlu0 %v2508, 64
      %v2518 = vpop.permute.xlu0 %2517
      %2519 = vrot.lane.b32.xlu0 %v2509, 64
      %v2520 = vpop.permute.xlu0 %2519
      %2521 = vrot.lane.b32.xlu0 %v2510, 64
      %v2522 = vpop.permute.xlu0 %2521
      %2527 = vst.msk [vmem:[%s176 + $0x6] sm:$0x1] %vm283, %v2516
      %2528 = vst.msk [vmem:[%s176 + $0x26] sm:$0x1] %vm283, %v2518
      %2529 = vst.msk [vmem:[%s176 + $0x46] sm:$0x1] %vm283, %v2520
      %2530 = vst.msk [vmem:[%s176 + $0x66] sm:$0x1] %vm283, %v2522
      %v2531 = vld [vmem:[%s161 + $0x7] sm:$0x1]
      %v2532 = vld [vmem:[%s161 + $0x1f] sm:$0x1]
      %v2533 = vld [vmem:[%s161 + $0x37] sm:$0x1]
      %v2534 = vld [vmem:[%s161 + $0x4f] sm:$0x1]
      %2539 = vrot.lane.b32.xlu0 %v2531, 80
      %v2540 = vpop.permute.xlu0 %2539
      %2541 = vrot.lane.b32.xlu0 %v2532, 80
      %v2542 = vpop.permute.xlu0 %2541
      %2543 = vrot.lane.b32.xlu0 %v2533, 80
      %v2544 = vpop.permute.xlu0 %2543
      %2545 = vrot.lane.b32.xlu0 %v2534, 80
      %v2546 = vpop.permute.xlu0 %2545
      %2551 = vst.msk [vmem:[%s176 + $0x6] sm:$0x1] %vm308, %v2540
      %2552 = vst.msk [vmem:[%s176 + $0x26] sm:$0x1] %vm308, %v2542
      %2553 = vst.msk [vmem:[%s176 + $0x46] sm:$0x1] %vm308, %v2544
      %2554 = vst.msk [vmem:[%s176 + $0x66] sm:$0x1] %vm308, %v2546
      %v2555 = vld [vmem:[%s161 + $0x8] sm:$0x1]
      %v2556 = vld [vmem:[%s161 + $0x20] sm:$0x1]
      %v2557 = vld [vmem:[%s161 + $0x38] sm:$0x1]
      %v2558 = vld [vmem:[%s161 + $0x50] sm:$0x1]
      %2563 = vrot.lane.b32.xlu0 %v2555, 96
      %v2564 = vpop.permute.xlu0 %2563
      %2565 = vrot.lane.b32.xlu0 %v2556, 96
      %v2566 = vpop.permute.xlu0 %2565
      %2567 = vrot.lane.b32.xlu0 %v2557, 96
      %v2568 = vpop.permute.xlu0 %2567
      %2569 = vrot.lane.b32.xlu0 %v2558, 96
      %v2570 = vpop.permute.xlu0 %2569
      %2575 = vst.msk [vmem:[%s176 + $0x6] sm:$0x1] %vm333, %v2564
      %2576 = vst.msk [vmem:[%s176 + $0x26] sm:$0x1] %vm333, %v2566
      %2577 = vst.msk [vmem:[%s176 + $0x46] sm:$0x1] %vm333, %v2568
      %2578 = vst.msk [vmem:[%s176 + $0x66] sm:$0x1] %vm333, %v2570
      %v2579 = vld [vmem:[%s161 + $0x9] sm:$0x1]
      %v2580 = vld [vmem:[%s161 + $0x21] sm:$0x1]
      %v2581 = vld [vmem:[%s161 + $0x39] sm:$0x1]
      %v2582 = vld [vmem:[%s161 + $0x51] sm:$0x1]
      %2587 = vrot.lane.b32.xlu0 %v2579, 112
      %v2588 = vpop.permute.xlu0 %2587
      %2589 = vrot.lane.b32.xlu0 %v2580, 112
      %v2590 = vpop.permute.xlu0 %2589
      %2591 = vrot.lane.b32.xlu0 %v2581, 112
      %v2592 = vpop.permute.xlu0 %2591
      %2593 = vrot.lane.b32.xlu0 %v2582, 112
      %v2594 = vpop.permute.xlu0 %2593
      %2599 = vst.msk [vmem:[%s176 + $0x6] sm:$0x1] %vm358, %v2588
      %2600 = vst.msk [vmem:[%s176 + $0x26] sm:$0x1] %vm358, %v2590
      %2601 = vst.msk [vmem:[%s176 + $0x46] sm:$0x1] %vm358, %v2592
      %2602 = vst.msk [vmem:[%s176 + $0x66] sm:$0x1] %vm358, %v2594
      %v2603 = vld [vmem:[%s161 + $0xa] sm:$0x1]
      %v2604 = vld [vmem:[%s161 + $0x22] sm:$0x1]
      %v2605 = vld [vmem:[%s161 + $0x3a] sm:$0x1]
      %v2606 = vld [vmem:[%s161 + $0x52] sm:$0x1]
      %2607 = vst.msk [vmem:[%s176 + $0xe] sm:$0x1] %vm183, %v2603
      %2608 = vst.msk [vmem:[%s176 + $0x2e] sm:$0x1] %vm183, %v2604
      %2609 = vst.msk [vmem:[%s176 + $0x4e] sm:$0x1] %vm183, %v2605
      %2610 = vst.msk [vmem:[%s176 + $0x6e] sm:$0x1] %vm183, %v2606
      %v2611 = vld [vmem:[%s161 + $0xb] sm:$0x1]
      %v2612 = vld [vmem:[%s161 + $0x23] sm:$0x1]
      %v2613 = vld [vmem:[%s161 + $0x3b] sm:$0x1]
      %v2614 = vld [vmem:[%s161 + $0x53] sm:$0x1]
      %2619 = vrot.lane.b32.xlu0 %v2611, 16
      %v2620 = vpop.permute.xlu0 %2619
      %2621 = vrot.lane.b32.xlu0 %v2612, 16
      %v2622 = vpop.permute.xlu0 %2621
      %2623 = vrot.lane.b32.xlu0 %v2613, 16
      %v2624 = vpop.permute.xlu0 %2623
      %2625 = vrot.lane.b32.xlu0 %v2614, 16
      %v2626 = vpop.permute.xlu0 %2625
      %2631 = vst.msk [vmem:[%s176 + $0xe] sm:$0x1] %vm208, %v2620
      %2632 = vst.msk [vmem:[%s176 + $0x2e] sm:$0x1] %vm208, %v2622
      %2633 = vst.msk [vmem:[%s176 + $0x4e] sm:$0x1] %vm208, %v2624
      %2634 = vst.msk [vmem:[%s176 + $0x6e] sm:$0x1] %vm208, %v2626
      %v2635 = vld [vmem:[%s161 + $0xc] sm:$0x1]
      %v2636 = vld [vmem:[%s161 + $0x24] sm:$0x1]
      %v2637 = vld [vmem:[%s161 + $0x3c] sm:$0x1]
      %v2638 = vld [vmem:[%s161 + $0x54] sm:$0x1]
      %2643 = vrot.lane.b32.xlu0 %v2635, 32
      %v2644 = vpop.permute.xlu0 %2643
      %2645 = vrot.lane.b32.xlu0 %v2636, 32
      %v2646 = vpop.permute.xlu0 %2645
      %2647 = vrot.lane.b32.xlu0 %v2637, 32
      %v2648 = vpop.permute.xlu0 %2647
      %2649 = vrot.lane.b32.xlu0 %v2638, 32
      %v2650 = vpop.permute.xlu0 %2649
      %2655 = vst.msk [vmem:[%s176 + $0xe] sm:$0x1] %vm233, %v2644
      %2656 = vst.msk [vmem:[%s176 + $0x2e] sm:$0x1] %vm233, %v2646
      %2657 = vst.msk [vmem:[%s176 + $0x4e] sm:$0x1] %vm233, %v2648
      %2658 = vst.msk [vmem:[%s176 + $0x6e] sm:$0x1] %vm233, %v2650
      %v2659 = vld [vmem:[%s161 + $0xd] sm:$0x1]
      %v2660 = vld [vmem:[%s161 + $0x25] sm:$0x1]
      %v2661 = vld [vmem:[%s161 + $0x3d] sm:$0x1]
      %v2662 = vld [vmem:[%s161 + $0x55] sm:$0x1]
      %2667 = vrot.lane.b32.xlu0 %v2659, 48
      %v2668 = vpop.permute.xlu0 %2667
      %2669 = vrot.lane.b32.xlu0 %v2660, 48
      %v2670 = vpop.permute.xlu0 %2669
      %2671 = vrot.lane.b32.xlu0 %v2661, 48
      %v2672 = vpop.permute.xlu0 %2671
      %2673 = vrot.lane.b32.xlu0 %v2662, 48
      %v2674 = vpop.permute.xlu0 %2673
      %2679 = vst.msk [vmem:[%s176 + $0xe] sm:$0x1] %vm258, %v2668
      %2680 = vst.msk [vmem:[%s176 + $0x2e] sm:$0x1] %vm258, %v2670
      %2681 = vst.msk [vmem:[%s176 + $0x4e] sm:$0x1] %vm258, %v2672
      %2682 = vst.msk [vmem:[%s176 + $0x6e] sm:$0x1] %vm258, %v2674
      %v2683 = vld [vmem:[%s161 + $0xe] sm:$0x1]
      %v2684 = vld [vmem:[%s161 + $0x26] sm:$0x1]
      %v2685 = vld [vmem:[%s161 + $0x3e] sm:$0x1]
      %v2686 = vld [vmem:[%s161 + $0x56] sm:$0x1]
      %2691 = vrot.lane.b32.xlu0 %v2683, 64
      %v2692 = vpop.permute.xlu0 %2691
      %2693 = vrot.lane.b32.xlu0 %v2684, 64
      %v2694 = vpop.permute.xlu0 %2693
      %2695 = vrot.lane.b32.xlu0 %v2685, 64
      %v2696 = vpop.permute.xlu0 %2695
      %2697 = vrot.lane.b32.xlu0 %v2686, 64
      %v2698 = vpop.permute.xlu0 %2697
      %2703 = vst.msk [vmem:[%s176 + $0xe] sm:$0x1] %vm283, %v2692
      %2704 = vst.msk [vmem:[%s176 + $0x2e] sm:$0x1] %vm283, %v2694
      %2705 = vst.msk [vmem:[%s176 + $0x4e] sm:$0x1] %vm283, %v2696
      %2706 = vst.msk [vmem:[%s176 + $0x6e] sm:$0x1] %vm283, %v2698
      %v2707 = vld [vmem:[%s161 + $0xf] sm:$0x1]
      %v2708 = vld [vmem:[%s161 + $0x27] sm:$0x1]
      %v2709 = vld [vmem:[%s161 + $0x3f] sm:$0x1]
      %v2710 = vld [vmem:[%s161 + $0x57] sm:$0x1]
      %2715 = vrot.lane.b32.xlu0 %v2707, 80
      %v2716 = vpop.permute.xlu0 %2715
      %2717 = vrot.lane.b32.xlu0 %v2708, 80
      %v2718 = vpop.permute.xlu0 %2717
      %2719 = vrot.lane.b32.xlu0 %v2709, 80
      %v2720 = vpop.permute.xlu0 %2719
      %2721 = vrot.lane.b32.xlu0 %v2710, 80
      %v2722 = vpop.permute.xlu0 %2721
      %2727 = vst.msk [vmem:[%s176 + $0xe] sm:$0x1] %vm308, %v2716
      %2728 = vst.msk [vmem:[%s176 + $0x2e] sm:$0x1] %vm308, %v2718
      %2729 = vst.msk [vmem:[%s176 + $0x4e] sm:$0x1] %vm308, %v2720
      %2730 = vst.msk [vmem:[%s176 + $0x6e] sm:$0x1] %vm308, %v2722
      %v2731 = vld [vmem:[%s161 + $0x10] sm:$0x1]
      %v2732 = vld [vmem:[%s161 + $0x28] sm:$0x1]
      %v2733 = vld [vmem:[%s161 + $0x40] sm:$0x1]
      %v2734 = vld [vmem:[%s161 + $0x58] sm:$0x1]
      %2739 = vrot.lane.b32.xlu0 %v2731, 96
      %v2740 = vpop.permute.xlu0 %2739
      %2741 = vrot.lane.b32.xlu0 %v2732, 96
      %v2742 = vpop.permute.xlu0 %2741
      %2743 = vrot.lane.b32.xlu0 %v2733, 96
      %v2744 = vpop.permute.xlu0 %2743
      %2745 = vrot.lane.b32.xlu0 %v2734, 96
      %v2746 = vpop.permute.xlu0 %2745
      %2751 = vst.msk [vmem:[%s176 + $0xe] sm:$0x1] %vm333, %v2740
      %2752 = vst.msk [vmem:[%s176 + $0x2e] sm:$0x1] %vm333, %v2742
      %2753 = vst.msk [vmem:[%s176 + $0x4e] sm:$0x1] %vm333, %v2744
      %2754 = vst.msk [vmem:[%s176 + $0x6e] sm:$0x1] %vm333, %v2746
      %v2755 = vld [vmem:[%s161 + $0x11] sm:$0x1]
      %v2756 = vld [vmem:[%s161 + $0x29] sm:$0x1]
      %v2757 = vld [vmem:[%s161 + $0x41] sm:$0x1]
      %v2758 = vld [vmem:[%s161 + $0x59] sm:$0x1]
      %2763 = vrot.lane.b32.xlu0 %v2755, 112
      %v2764 = vpop.permute.xlu0 %2763
      %2765 = vrot.lane.b32.xlu0 %v2756, 112
      %v2766 = vpop.permute.xlu0 %2765
      %2767 = vrot.lane.b32.xlu0 %v2757, 112
      %v2768 = vpop.permute.xlu0 %2767
      %2769 = vrot.lane.b32.xlu0 %v2758, 112
      %v2770 = vpop.permute.xlu0 %2769
      %2775 = vst.msk [vmem:[%s176 + $0xe] sm:$0x1] %vm358, %v2764
      %2776 = vst.msk [vmem:[%s176 + $0x2e] sm:$0x1] %vm358, %v2766
      %2777 = vst.msk [vmem:[%s176 + $0x4e] sm:$0x1] %vm358, %v2768
      %2778 = vst.msk [vmem:[%s176 + $0x6e] sm:$0x1] %vm358, %v2770
      %v2779 = vld [vmem:[%s161 + $0x2] sm:$0x1]
      %v2780 = vld [vmem:[%s161 + $0x1a] sm:$0x1]
      %v2781 = vld [vmem:[%s161 + $0x32] sm:$0x1]
      %v2782 = vld [vmem:[%s161 + $0x4a] sm:$0x1]
      %2787 = vrot.lane.b32.xlu0 %v2779, 127
      %v2788 = vpop.permute.xlu0 %2787
      %2789 = vrot.lane.b32.xlu0 %v2780, 127
      %v2790 = vpop.permute.xlu0 %2789
      %2791 = vrot.lane.b32.xlu0 %v2781, 127
      %v2792 = vpop.permute.xlu0 %2791
      %2793 = vrot.lane.b32.xlu0 %v2782, 127
      %v2794 = vpop.permute.xlu0 %2793
      %2799 = vst.msk [vmem:[%s176 + $0x7] sm:$0x1] %vm183, %v2788
      %2800 = vst.msk [vmem:[%s176 + $0x27] sm:$0x1] %vm183, %v2790
      %2801 = vst.msk [vmem:[%s176 + $0x47] sm:$0x1] %vm183, %v2792
      %2802 = vst.msk [vmem:[%s176 + $0x67] sm:$0x1] %vm183, %v2794
      %v2803 = vld [vmem:[%s161 + $0x3] sm:$0x1]
      %v2804 = vld [vmem:[%s161 + $0x1b] sm:$0x1]
      %v2805 = vld [vmem:[%s161 + $0x33] sm:$0x1]
      %v2806 = vld [vmem:[%s161 + $0x4b] sm:$0x1]
      %2811 = vrot.lane.b32.xlu0 %v2803, 15
      %v2812 = vpop.permute.xlu0 %2811
      %2813 = vrot.lane.b32.xlu0 %v2804, 15
      %v2814 = vpop.permute.xlu0 %2813
      %2815 = vrot.lane.b32.xlu0 %v2805, 15
      %v2816 = vpop.permute.xlu0 %2815
      %2817 = vrot.lane.b32.xlu0 %v2806, 15
      %v2818 = vpop.permute.xlu0 %2817
      %2823 = vst.msk [vmem:[%s176 + $0x7] sm:$0x1] %vm208, %v2812
      %2824 = vst.msk [vmem:[%s176 + $0x27] sm:$0x1] %vm208, %v2814
      %2825 = vst.msk [vmem:[%s176 + $0x47] sm:$0x1] %vm208, %v2816
      %2826 = vst.msk [vmem:[%s176 + $0x67] sm:$0x1] %vm208, %v2818
      %v2827 = vld [vmem:[%s161 + $0x4] sm:$0x1]
      %v2828 = vld [vmem:[%s161 + $0x1c] sm:$0x1]
      %v2829 = vld [vmem:[%s161 + $0x34] sm:$0x1]
      %v2830 = vld [vmem:[%s161 + $0x4c] sm:$0x1]
      %2835 = vrot.lane.b32.xlu0 %v2827, 31
      %v2836 = vpop.permute.xlu0 %2835
      %2837 = vrot.lane.b32.xlu0 %v2828, 31
      %v2838 = vpop.permute.xlu0 %2837
      %2839 = vrot.lane.b32.xlu0 %v2829, 31
      %v2840 = vpop.permute.xlu0 %2839
      %2841 = vrot.lane.b32.xlu0 %v2830, 31
      %v2842 = vpop.permute.xlu0 %2841
      %2847 = vst.msk [vmem:[%s176 + $0x7] sm:$0x1] %vm233, %v2836
      %2848 = vst.msk [vmem:[%s176 + $0x27] sm:$0x1] %vm233, %v2838
      %2849 = vst.msk [vmem:[%s176 + $0x47] sm:$0x1] %vm233, %v2840
      %2850 = vst.msk [vmem:[%s176 + $0x67] sm:$0x1] %vm233, %v2842
      %v2851 = vld [vmem:[%s161 + $0x5] sm:$0x1]
      %v2852 = vld [vmem:[%s161 + $0x1d] sm:$0x1]
      %v2853 = vld [vmem:[%s161 + $0x35] sm:$0x1]
      %v2854 = vld [vmem:[%s161 + $0x4d] sm:$0x1]
      %2859 = vrot.lane.b32.xlu0 %v2851, 47
      %v2860 = vpop.permute.xlu0 %2859
      %2861 = vrot.lane.b32.xlu0 %v2852, 47
      %v2862 = vpop.permute.xlu0 %2861
      %2863 = vrot.lane.b32.xlu0 %v2853, 47
      %v2864 = vpop.permute.xlu0 %2863
      %2865 = vrot.lane.b32.xlu0 %v2854, 47
      %v2866 = vpop.permute.xlu0 %2865
      %2871 = vst.msk [vmem:[%s176 + $0x7] sm:$0x1] %vm258, %v2860
      %2872 = vst.msk [vmem:[%s176 + $0x27] sm:$0x1] %vm258, %v2862
      %2873 = vst.msk [vmem:[%s176 + $0x47] sm:$0x1] %vm258, %v2864
      %2874 = vst.msk [vmem:[%s176 + $0x67] sm:$0x1] %vm258, %v2866
      %v2875 = vld [vmem:[%s161 + $0x6] sm:$0x1]
      %v2876 = vld [vmem:[%s161 + $0x1e] sm:$0x1]
      %v2877 = vld [vmem:[%s161 + $0x36] sm:$0x1]
      %v2878 = vld [vmem:[%s161 + $0x4e] sm:$0x1]
      %2883 = vrot.lane.b32.xlu0 %v2875, 63
      %v2884 = vpop.permute.xlu0 %2883
      %2885 = vrot.lane.b32.xlu0 %v2876, 63
      %v2886 = vpop.permute.xlu0 %2885
      %2887 = vrot.lane.b32.xlu0 %v2877, 63
      %v2888 = vpop.permute.xlu0 %2887
      %2889 = vrot.lane.b32.xlu0 %v2878, 63
      %v2890 = vpop.permute.xlu0 %2889
      %2895 = vst.msk [vmem:[%s176 + $0x7] sm:$0x1] %vm283, %v2884
      %2896 = vst.msk [vmem:[%s176 + $0x27] sm:$0x1] %vm283, %v2886
      %2897 = vst.msk [vmem:[%s176 + $0x47] sm:$0x1] %vm283, %v2888
      %2898 = vst.msk [vmem:[%s176 + $0x67] sm:$0x1] %vm283, %v2890
      %v2899 = vld [vmem:[%s161 + $0x7] sm:$0x1]
      %v2900 = vld [vmem:[%s161 + $0x1f] sm:$0x1]
      %v2901 = vld [vmem:[%s161 + $0x37] sm:$0x1]
      %v2902 = vld [vmem:[%s161 + $0x4f] sm:$0x1]
      %2907 = vrot.lane.b32.xlu0 %v2899, 79
      %v2908 = vpop.permute.xlu0 %2907
      %2909 = vrot.lane.b32.xlu0 %v2900, 79
      %v2910 = vpop.permute.xlu0 %2909
      %2911 = vrot.lane.b32.xlu0 %v2901, 79
      %v2912 = vpop.permute.xlu0 %2911
      %2913 = vrot.lane.b32.xlu0 %v2902, 79
      %v2914 = vpop.permute.xlu0 %2913
      %2919 = vst.msk [vmem:[%s176 + $0x7] sm:$0x1] %vm308, %v2908
      %2920 = vst.msk [vmem:[%s176 + $0x27] sm:$0x1] %vm308, %v2910
      %2921 = vst.msk [vmem:[%s176 + $0x47] sm:$0x1] %vm308, %v2912
      %2922 = vst.msk [vmem:[%s176 + $0x67] sm:$0x1] %vm308, %v2914
      %v2923 = vld [vmem:[%s161 + $0x8] sm:$0x1]
      %v2924 = vld [vmem:[%s161 + $0x20] sm:$0x1]
      %v2925 = vld [vmem:[%s161 + $0x38] sm:$0x1]
      %v2926 = vld [vmem:[%s161 + $0x50] sm:$0x1]
      %2931 = vrot.lane.b32.xlu0 %v2923, 95
      %v2932 = vpop.permute.xlu0 %2931
      %2933 = vrot.lane.b32.xlu0 %v2924, 95
      %v2934 = vpop.permute.xlu0 %2933
      %2935 = vrot.lane.b32.xlu0 %v2925, 95
      %v2936 = vpop.permute.xlu0 %2935
      %2937 = vrot.lane.b32.xlu0 %v2926, 95
      %v2938 = vpop.permute.xlu0 %2937
      %2943 = vst.msk [vmem:[%s176 + $0x7] sm:$0x1] %vm333, %v2932
      %2944 = vst.msk [vmem:[%s176 + $0x27] sm:$0x1] %vm333, %v2934
      %2945 = vst.msk [vmem:[%s176 + $0x47] sm:$0x1] %vm333, %v2936
      %2946 = vst.msk [vmem:[%s176 + $0x67] sm:$0x1] %vm333, %v2938
      %v2947 = vld [vmem:[%s161 + $0x9] sm:$0x1]
      %v2948 = vld [vmem:[%s161 + $0x21] sm:$0x1]
      %v2949 = vld [vmem:[%s161 + $0x39] sm:$0x1]
      %v2950 = vld [vmem:[%s161 + $0x51] sm:$0x1]
      %2955 = vrot.lane.b32.xlu0 %v2947, 111
      %v2956 = vpop.permute.xlu0 %2955
      %2957 = vrot.lane.b32.xlu0 %v2948, 111
      %v2958 = vpop.permute.xlu0 %2957
      %2959 = vrot.lane.b32.xlu0 %v2949, 111
      %v2960 = vpop.permute.xlu0 %2959
      %2961 = vrot.lane.b32.xlu0 %v2950, 111
      %v2962 = vpop.permute.xlu0 %2961
      %2967 = vst.msk [vmem:[%s176 + $0x7] sm:$0x1] %vm358, %v2956
      %2968 = vst.msk [vmem:[%s176 + $0x27] sm:$0x1] %vm358, %v2958
      %2969 = vst.msk [vmem:[%s176 + $0x47] sm:$0x1] %vm358, %v2960
      %2970 = vst.msk [vmem:[%s176 + $0x67] sm:$0x1] %vm358, %v2962
      %v2971 = vld [vmem:[%s161 + $0xa] sm:$0x1]
      %v2972 = vld [vmem:[%s161 + $0x22] sm:$0x1]
      %v2973 = vld [vmem:[%s161 + $0x3a] sm:$0x1]
      %v2974 = vld [vmem:[%s161 + $0x52] sm:$0x1]
      %2979 = vrot.lane.b32.xlu0 %v2971, 127
      %v2980 = vpop.permute.xlu0 %2979
      %2981 = vrot.lane.b32.xlu0 %v2972, 127
      %v2982 = vpop.permute.xlu0 %2981
      %2983 = vrot.lane.b32.xlu0 %v2973, 127
      %v2984 = vpop.permute.xlu0 %2983
      %2985 = vrot.lane.b32.xlu0 %v2974, 127
      %v2986 = vpop.permute.xlu0 %2985
      %2991 = vst.msk [vmem:[%s176 + $0xf] sm:$0x1] %vm183, %v2980
      %2992 = vst.msk [vmem:[%s176 + $0x2f] sm:$0x1] %vm183, %v2982
      %2993 = vst.msk [vmem:[%s176 + $0x4f] sm:$0x1] %vm183, %v2984
      %2994 = vst.msk [vmem:[%s176 + $0x6f] sm:$0x1] %vm183, %v2986
      %v2995 = vld [vmem:[%s161 + $0xb] sm:$0x1]
      %v2996 = vld [vmem:[%s161 + $0x23] sm:$0x1]
      %v2997 = vld [vmem:[%s161 + $0x3b] sm:$0x1]
      %v2998 = vld [vmem:[%s161 + $0x53] sm:$0x1]
      %3003 = vrot.lane.b32.xlu0 %v2995, 15
      %v3004 = vpop.permute.xlu0 %3003
      %3005 = vrot.lane.b32.xlu0 %v2996, 15
      %v3006 = vpop.permute.xlu0 %3005
      %3007 = vrot.lane.b32.xlu0 %v2997, 15
      %v3008 = vpop.permute.xlu0 %3007
      %3009 = vrot.lane.b32.xlu0 %v2998, 15
      %v3010 = vpop.permute.xlu0 %3009
      %3015 = vst.msk [vmem:[%s176 + $0xf] sm:$0x1] %vm208, %v3004
      %3016 = vst.msk [vmem:[%s176 + $0x2f] sm:$0x1] %vm208, %v3006
      %3017 = vst.msk [vmem:[%s176 + $0x4f] sm:$0x1] %vm208, %v3008
      %3018 = vst.msk [vmem:[%s176 + $0x6f] sm:$0x1] %vm208, %v3010
      %v3019 = vld [vmem:[%s161 + $0xc] sm:$0x1]
      %v3020 = vld [vmem:[%s161 + $0x24] sm:$0x1]
      %v3021 = vld [vmem:[%s161 + $0x3c] sm:$0x1]
      %v3022 = vld [vmem:[%s161 + $0x54] sm:$0x1]
      %3027 = vrot.lane.b32.xlu0 %v3019, 31
      %v3028 = vpop.permute.xlu0 %3027
      %3029 = vrot.lane.b32.xlu0 %v3020, 31
      %v3030 = vpop.permute.xlu0 %3029
      %3031 = vrot.lane.b32.xlu0 %v3021, 31
      %v3032 = vpop.permute.xlu0 %3031
      %3033 = vrot.lane.b32.xlu0 %v3022, 31
      %v3034 = vpop.permute.xlu0 %3033
      %3039 = vst.msk [vmem:[%s176 + $0xf] sm:$0x1] %vm233, %v3028
      %3040 = vst.msk [vmem:[%s176 + $0x2f] sm:$0x1] %vm233, %v3030
      %3041 = vst.msk [vmem:[%s176 + $0x4f] sm:$0x1] %vm233, %v3032
      %3042 = vst.msk [vmem:[%s176 + $0x6f] sm:$0x1] %vm233, %v3034
      %v3043 = vld [vmem:[%s161 + $0xd] sm:$0x1]
      %v3044 = vld [vmem:[%s161 + $0x25] sm:$0x1]
      %v3045 = vld [vmem:[%s161 + $0x3d] sm:$0x1]
      %v3046 = vld [vmem:[%s161 + $0x55] sm:$0x1]
      %3051 = vrot.lane.b32.xlu0 %v3043, 47
      %v3052 = vpop.permute.xlu0 %3051
      %3053 = vrot.lane.b32.xlu0 %v3044, 47
      %v3054 = vpop.permute.xlu0 %3053
      %3055 = vrot.lane.b32.xlu0 %v3045, 47
      %v3056 = vpop.permute.xlu0 %3055
      %3057 = vrot.lane.b32.xlu0 %v3046, 47
      %v3058 = vpop.permute.xlu0 %3057
      %3063 = vst.msk [vmem:[%s176 + $0xf] sm:$0x1] %vm258, %v3052
      %3064 = vst.msk [vmem:[%s176 + $0x2f] sm:$0x1] %vm258, %v3054
      %3065 = vst.msk [vmem:[%s176 + $0x4f] sm:$0x1] %vm258, %v3056
      %3066 = vst.msk [vmem:[%s176 + $0x6f] sm:$0x1] %vm258, %v3058
      %v3067 = vld [vmem:[%s161 + $0xe] sm:$0x1]
      %v3068 = vld [vmem:[%s161 + $0x26] sm:$0x1]
      %v3069 = vld [vmem:[%s161 + $0x3e] sm:$0x1]
      %v3070 = vld [vmem:[%s161 + $0x56] sm:$0x1]
      %3075 = vrot.lane.b32.xlu0 %v3067, 63
      %v3076 = vpop.permute.xlu0 %3075
      %3077 = vrot.lane.b32.xlu0 %v3068, 63
      %v3078 = vpop.permute.xlu0 %3077
      %3079 = vrot.lane.b32.xlu0 %v3069, 63
      %v3080 = vpop.permute.xlu0 %3079
      %3081 = vrot.lane.b32.xlu0 %v3070, 63
      %v3082 = vpop.permute.xlu0 %3081
      %3087 = vst.msk [vmem:[%s176 + $0xf] sm:$0x1] %vm283, %v3076
      %3088 = vst.msk [vmem:[%s176 + $0x2f] sm:$0x1] %vm283, %v3078
      %3089 = vst.msk [vmem:[%s176 + $0x4f] sm:$0x1] %vm283, %v3080
      %3090 = vst.msk [vmem:[%s176 + $0x6f] sm:$0x1] %vm283, %v3082
      %v3091 = vld [vmem:[%s161 + $0xf] sm:$0x1]
      %v3092 = vld [vmem:[%s161 + $0x27] sm:$0x1]
      %v3093 = vld [vmem:[%s161 + $0x3f] sm:$0x1]
      %v3094 = vld [vmem:[%s161 + $0x57] sm:$0x1]
      %3099 = vrot.lane.b32.xlu0 %v3091, 79
      %v3100 = vpop.permute.xlu0 %3099
      %3101 = vrot.lane.b32.xlu0 %v3092, 79
      %v3102 = vpop.permute.xlu0 %3101
      %3103 = vrot.lane.b32.xlu0 %v3093, 79
      %v3104 = vpop.permute.xlu0 %3103
      %3105 = vrot.lane.b32.xlu0 %v3094, 79
      %v3106 = vpop.permute.xlu0 %3105
      %3111 = vst.msk [vmem:[%s176 + $0xf] sm:$0x1] %vm308, %v3100
      %3112 = vst.msk [vmem:[%s176 + $0x2f] sm:$0x1] %vm308, %v3102
      %3113 = vst.msk [vmem:[%s176 + $0x4f] sm:$0x1] %vm308, %v3104
      %3114 = vst.msk [vmem:[%s176 + $0x6f] sm:$0x1] %vm308, %v3106
      %v3115 = vld [vmem:[%s161 + $0x10] sm:$0x1]
      %v3116 = vld [vmem:[%s161 + $0x28] sm:$0x1]
      %v3117 = vld [vmem:[%s161 + $0x40] sm:$0x1]
      %v3118 = vld [vmem:[%s161 + $0x58] sm:$0x1]
      %3123 = vrot.lane.b32.xlu0 %v3115, 95
      %v3124 = vpop.permute.xlu0 %3123
      %3125 = vrot.lane.b32.xlu0 %v3116, 95
      %v3126 = vpop.permute.xlu0 %3125
      %3127 = vrot.lane.b32.xlu0 %v3117, 95
      %v3128 = vpop.permute.xlu0 %3127
      %3129 = vrot.lane.b32.xlu0 %v3118, 95
      %v3130 = vpop.permute.xlu0 %3129
      %3135 = vst.msk [vmem:[%s176 + $0xf] sm:$0x1] %vm333, %v3124
      %3136 = vst.msk [vmem:[%s176 + $0x2f] sm:$0x1] %vm333, %v3126
      %3137 = vst.msk [vmem:[%s176 + $0x4f] sm:$0x1] %vm333, %v3128
      %3138 = vst.msk [vmem:[%s176 + $0x6f] sm:$0x1] %vm333, %v3130
      %v3139 = vld [vmem:[%s161 + $0x11] sm:$0x1]
      %v3140 = vld [vmem:[%s161 + $0x29] sm:$0x1]
      %v3141 = vld [vmem:[%s161 + $0x41] sm:$0x1]
      %v3142 = vld [vmem:[%s161 + $0x59] sm:$0x1]
      %3147 = vrot.lane.b32.xlu0 %v3139, 111
      %v3148 = vpop.permute.xlu0 %3147
      %3149 = vrot.lane.b32.xlu0 %v3140, 111
      %v3150 = vpop.permute.xlu0 %3149
      %3151 = vrot.lane.b32.xlu0 %v3141, 111
      %v3152 = vpop.permute.xlu0 %3151
      %3153 = vrot.lane.b32.xlu0 %v3142, 111
      %v3154 = vpop.permute.xlu0 %3153
      %3159 = vst.msk [vmem:[%s176 + $0xf] sm:$0x1] %vm358, %v3148
      %3160 = vst.msk [vmem:[%s176 + $0x2f] sm:$0x1] %vm358, %v3150
      %3161 = vst.msk [vmem:[%s176 + $0x4f] sm:$0x1] %vm358, %v3152
      %3162 = vst.msk [vmem:[%s176 + $0x6f] sm:$0x1] %vm358, %v3154
      %v3163 = vld [vmem:[%s161 + $0x2] sm:$0x1]
      %v3164 = vld [vmem:[%s161 + $0x1a] sm:$0x1]
      %v3165 = vld [vmem:[%s161 + $0x32] sm:$0x1]
      %v3166 = vld [vmem:[%s161 + $0x4a] sm:$0x1]
      %3171 = vrot.lane.b32.xlu0 %v3163, 126
      %v3172 = vpop.permute.xlu0 %3171
      %3173 = vrot.lane.b32.xlu0 %v3164, 126
      %v3174 = vpop.permute.xlu0 %3173
      %3175 = vrot.lane.b32.xlu0 %v3165, 126
      %v3176 = vpop.permute.xlu0 %3175
      %3177 = vrot.lane.b32.xlu0 %v3166, 126
      %v3178 = vpop.permute.xlu0 %3177
      %3183 = vst.msk [vmem:[%s176 + $0x10] sm:$0x1] %vm183, %v3172
      %3184 = vst.msk [vmem:[%s176 + $0x30] sm:$0x1] %vm183, %v3174
      %3185 = vst.msk [vmem:[%s176 + $0x50] sm:$0x1] %vm183, %v3176
      %3186 = vst.msk [vmem:[%s176 + $0x70] sm:$0x1] %vm183, %v3178
      %v3187 = vld [vmem:[%s161 + $0x3] sm:$0x1]
      %v3188 = vld [vmem:[%s161 + $0x1b] sm:$0x1]
      %v3189 = vld [vmem:[%s161 + $0x33] sm:$0x1]
      %v3190 = vld [vmem:[%s161 + $0x4b] sm:$0x1]
      %3195 = vrot.lane.b32.xlu0 %v3187, 14
      %v3196 = vpop.permute.xlu0 %3195
      %3197 = vrot.lane.b32.xlu0 %v3188, 14
      %v3198 = vpop.permute.xlu0 %3197
      %3199 = vrot.lane.b32.xlu0 %v3189, 14
      %v3200 = vpop.permute.xlu0 %3199
      %3201 = vrot.lane.b32.xlu0 %v3190, 14
      %v3202 = vpop.permute.xlu0 %3201
      %3207 = vst.msk [vmem:[%s176 + $0x10] sm:$0x1] %vm208, %v3196
      %3208 = vst.msk [vmem:[%s176 + $0x30] sm:$0x1] %vm208, %v3198
      %3209 = vst.msk [vmem:[%s176 + $0x50] sm:$0x1] %vm208, %v3200
      %3210 = vst.msk [vmem:[%s176 + $0x70] sm:$0x1] %vm208, %v3202
      %v3211 = vld [vmem:[%s161 + $0x4] sm:$0x1]
      %v3212 = vld [vmem:[%s161 + $0x1c] sm:$0x1]
      %v3213 = vld [vmem:[%s161 + $0x34] sm:$0x1]
      %v3214 = vld [vmem:[%s161 + $0x4c] sm:$0x1]
      %3219 = vrot.lane.b32.xlu0 %v3211, 30
      %v3220 = vpop.permute.xlu0 %3219
      %3221 = vrot.lane.b32.xlu0 %v3212, 30
      %v3222 = vpop.permute.xlu0 %3221
      %3223 = vrot.lane.b32.xlu0 %v3213, 30
      %v3224 = vpop.permute.xlu0 %3223
      %3225 = vrot.lane.b32.xlu0 %v3214, 30
      %v3226 = vpop.permute.xlu0 %3225
      %3231 = vst.msk [vmem:[%s176 + $0x10] sm:$0x1] %vm233, %v3220
      %3232 = vst.msk [vmem:[%s176 + $0x30] sm:$0x1] %vm233, %v3222
      %3233 = vst.msk [vmem:[%s176 + $0x50] sm:$0x1] %vm233, %v3224
      %3234 = vst.msk [vmem:[%s176 + $0x70] sm:$0x1] %vm233, %v3226
      %v3235 = vld [vmem:[%s161 + $0x5] sm:$0x1]
      %v3236 = vld [vmem:[%s161 + $0x1d] sm:$0x1]
      %v3237 = vld [vmem:[%s161 + $0x35] sm:$0x1]
      %v3238 = vld [vmem:[%s161 + $0x4d] sm:$0x1]
      %3243 = vrot.lane.b32.xlu0 %v3235, 46
      %v3244 = vpop.permute.xlu0 %3243
      %3245 = vrot.lane.b32.xlu0 %v3236, 46
      %v3246 = vpop.permute.xlu0 %3245
      %3247 = vrot.lane.b32.xlu0 %v3237, 46
      %v3248 = vpop.permute.xlu0 %3247
      %3249 = vrot.lane.b32.xlu0 %v3238, 46
      %v3250 = vpop.permute.xlu0 %3249
      %3255 = vst.msk [vmem:[%s176 + $0x10] sm:$0x1] %vm258, %v3244
      %3256 = vst.msk [vmem:[%s176 + $0x30] sm:$0x1] %vm258, %v3246
      %3257 = vst.msk [vmem:[%s176 + $0x50] sm:$0x1] %vm258, %v3248
      %3258 = vst.msk [vmem:[%s176 + $0x70] sm:$0x1] %vm258, %v3250
      %v3259 = vld [vmem:[%s161 + $0x6] sm:$0x1]
      %v3260 = vld [vmem:[%s161 + $0x1e] sm:$0x1]
      %v3261 = vld [vmem:[%s161 + $0x36] sm:$0x1]
      %v3262 = vld [vmem:[%s161 + $0x4e] sm:$0x1]
      %3267 = vrot.lane.b32.xlu0 %v3259, 62
      %v3268 = vpop.permute.xlu0 %3267
      %3269 = vrot.lane.b32.xlu0 %v3260, 62
      %v3270 = vpop.permute.xlu0 %3269
      %3271 = vrot.lane.b32.xlu0 %v3261, 62
      %v3272 = vpop.permute.xlu0 %3271
      %3273 = vrot.lane.b32.xlu0 %v3262, 62
      %v3274 = vpop.permute.xlu0 %3273
      %3279 = vst.msk [vmem:[%s176 + $0x10] sm:$0x1] %vm283, %v3268
      %3280 = vst.msk [vmem:[%s176 + $0x30] sm:$0x1] %vm283, %v3270
      %3281 = vst.msk [vmem:[%s176 + $0x50] sm:$0x1] %vm283, %v3272
      %3282 = vst.msk [vmem:[%s176 + $0x70] sm:$0x1] %vm283, %v3274
      %v3283 = vld [vmem:[%s161 + $0x7] sm:$0x1]
      %v3284 = vld [vmem:[%s161 + $0x1f] sm:$0x1]
      %v3285 = vld [vmem:[%s161 + $0x37] sm:$0x1]
      %v3286 = vld [vmem:[%s161 + $0x4f] sm:$0x1]
      %3291 = vrot.lane.b32.xlu0 %v3283, 78
      %v3292 = vpop.permute.xlu0 %3291
      %3293 = vrot.lane.b32.xlu0 %v3284, 78
      %v3294 = vpop.permute.xlu0 %3293
      %3295 = vrot.lane.b32.xlu0 %v3285, 78
      %v3296 = vpop.permute.xlu0 %3295
      %3297 = vrot.lane.b32.xlu0 %v3286, 78
      %v3298 = vpop.permute.xlu0 %3297
      %3303 = vst.msk [vmem:[%s176 + $0x10] sm:$0x1] %vm308, %v3292
      %3304 = vst.msk [vmem:[%s176 + $0x30] sm:$0x1] %vm308, %v3294
      %3305 = vst.msk [vmem:[%s176 + $0x50] sm:$0x1] %vm308, %v3296
      %3306 = vst.msk [vmem:[%s176 + $0x70] sm:$0x1] %vm308, %v3298
      %v3307 = vld [vmem:[%s161 + $0x8] sm:$0x1]
      %v3308 = vld [vmem:[%s161 + $0x20] sm:$0x1]
      %v3309 = vld [vmem:[%s161 + $0x38] sm:$0x1]
      %v3310 = vld [vmem:[%s161 + $0x50] sm:$0x1]
      %3315 = vrot.lane.b32.xlu0 %v3307, 94
      %v3316 = vpop.permute.xlu0 %3315
      %3317 = vrot.lane.b32.xlu0 %v3308, 94
      %v3318 = vpop.permute.xlu0 %3317
      %3319 = vrot.lane.b32.xlu0 %v3309, 94
      %v3320 = vpop.permute.xlu0 %3319
      %3321 = vrot.lane.b32.xlu0 %v3310, 94
      %v3322 = vpop.permute.xlu0 %3321
      %3327 = vst.msk [vmem:[%s176 + $0x10] sm:$0x1] %vm333, %v3316
      %3328 = vst.msk [vmem:[%s176 + $0x30] sm:$0x1] %vm333, %v3318
      %3329 = vst.msk [vmem:[%s176 + $0x50] sm:$0x1] %vm333, %v3320
      %3330 = vst.msk [vmem:[%s176 + $0x70] sm:$0x1] %vm333, %v3322
      %v3331 = vld [vmem:[%s161 + $0x9] sm:$0x1]
      %v3332 = vld [vmem:[%s161 + $0x21] sm:$0x1]
      %v3333 = vld [vmem:[%s161 + $0x39] sm:$0x1]
      %v3334 = vld [vmem:[%s161 + $0x51] sm:$0x1]
      %3339 = vrot.lane.b32.xlu0 %v3331, 110
      %v3340 = vpop.permute.xlu0 %3339
      %3341 = vrot.lane.b32.xlu0 %v3332, 110
      %v3342 = vpop.permute.xlu0 %3341
      %3343 = vrot.lane.b32.xlu0 %v3333, 110
      %v3344 = vpop.permute.xlu0 %3343
      %3345 = vrot.lane.b32.xlu0 %v3334, 110
      %v3346 = vpop.permute.xlu0 %3345
      %3351 = vst.msk [vmem:[%s176 + $0x10] sm:$0x1] %vm358, %v3340
      %3352 = vst.msk [vmem:[%s176 + $0x30] sm:$0x1] %vm358, %v3342
      %3353 = vst.msk [vmem:[%s176 + $0x50] sm:$0x1] %vm358, %v3344
      %3354 = vst.msk [vmem:[%s176 + $0x70] sm:$0x1] %vm358, %v3346
      %v3355 = vld [vmem:[%s161 + $0xa] sm:$0x1]
      %v3356 = vld [vmem:[%s161 + $0x22] sm:$0x1]
      %v3357 = vld [vmem:[%s161 + $0x3a] sm:$0x1]
      %v3358 = vld [vmem:[%s161 + $0x52] sm:$0x1]
      %3363 = vrot.lane.b32.xlu0 %v3355, 126
      %v3364 = vpop.permute.xlu0 %3363
      %3365 = vrot.lane.b32.xlu0 %v3356, 126
      %v3366 = vpop.permute.xlu0 %3365
      %3367 = vrot.lane.b32.xlu0 %v3357, 126
      %v3368 = vpop.permute.xlu0 %3367
      %3369 = vrot.lane.b32.xlu0 %v3358, 126
      %v3370 = vpop.permute.xlu0 %3369
      %3375 = vst.msk [vmem:[%s176 + $0x18] sm:$0x1] %vm183, %v3364
      %3376 = vst.msk [vmem:[%s176 + $0x38] sm:$0x1] %vm183, %v3366
      %3377 = vst.msk [vmem:[%s176 + $0x58] sm:$0x1] %vm183, %v3368
      %3378 = vst.msk [vmem:[%s176 + $0x78] sm:$0x1] %vm183, %v3370
      %v3379 = vld [vmem:[%s161 + $0xb] sm:$0x1]
      %v3380 = vld [vmem:[%s161 + $0x23] sm:$0x1]
      %v3381 = vld [vmem:[%s161 + $0x3b] sm:$0x1]
      %v3382 = vld [vmem:[%s161 + $0x53] sm:$0x1]
      %3387 = vrot.lane.b32.xlu0 %v3379, 14
      %v3388 = vpop.permute.xlu0 %3387
      %3389 = vrot.lane.b32.xlu0 %v3380, 14
      %v3390 = vpop.permute.xlu0 %3389
      %3391 = vrot.lane.b32.xlu0 %v3381, 14
      %v3392 = vpop.permute.xlu0 %3391
      %3393 = vrot.lane.b32.xlu0 %v3382, 14
      %v3394 = vpop.permute.xlu0 %3393
      %3399 = vst.msk [vmem:[%s176 + $0x18] sm:$0x1] %vm208, %v3388
      %3400 = vst.msk [vmem:[%s176 + $0x38] sm:$0x1] %vm208, %v3390
      %3401 = vst.msk [vmem:[%s176 + $0x58] sm:$0x1] %vm208, %v3392
      %3402 = vst.msk [vmem:[%s176 + $0x78] sm:$0x1] %vm208, %v3394
      %v3403 = vld [vmem:[%s161 + $0xc] sm:$0x1]
      %v3404 = vld [vmem:[%s161 + $0x24] sm:$0x1]
      %v3405 = vld [vmem:[%s161 + $0x3c] sm:$0x1]
      %v3406 = vld [vmem:[%s161 + $0x54] sm:$0x1]
      %3411 = vrot.lane.b32.xlu0 %v3403, 30
      %v3412 = vpop.permute.xlu0 %3411
      %3413 = vrot.lane.b32.xlu0 %v3404, 30
      %v3414 = vpop.permute.xlu0 %3413
      %3415 = vrot.lane.b32.xlu0 %v3405, 30
      %v3416 = vpop.permute.xlu0 %3415
      %3417 = vrot.lane.b32.xlu0 %v3406, 30
      %v3418 = vpop.permute.xlu0 %3417
      %3423 = vst.msk [vmem:[%s176 + $0x18] sm:$0x1] %vm233, %v3412
      %3424 = vst.msk [vmem:[%s176 + $0x38] sm:$0x1] %vm233, %v3414
      %3425 = vst.msk [vmem:[%s176 + $0x58] sm:$0x1] %vm233, %v3416
      %3426 = vst.msk [vmem:[%s176 + $0x78] sm:$0x1] %vm233, %v3418
      %v3427 = vld [vmem:[%s161 + $0xd] sm:$0x1]
      %v3428 = vld [vmem:[%s161 + $0x25] sm:$0x1]
      %v3429 = vld [vmem:[%s161 + $0x3d] sm:$0x1]
      %v3430 = vld [vmem:[%s161 + $0x55] sm:$0x1]
      %3435 = vrot.lane.b32.xlu0 %v3427, 46
      %v3436 = vpop.permute.xlu0 %3435
      %3437 = vrot.lane.b32.xlu0 %v3428, 46
      %v3438 = vpop.permute.xlu0 %3437
      %3439 = vrot.lane.b32.xlu0 %v3429, 46
      %v3440 = vpop.permute.xlu0 %3439
      %3441 = vrot.lane.b32.xlu0 %v3430, 46
      %v3442 = vpop.permute.xlu0 %3441
      %3447 = vst.msk [vmem:[%s176 + $0x18] sm:$0x1] %vm258, %v3436
      %3448 = vst.msk [vmem:[%s176 + $0x38] sm:$0x1] %vm258, %v3438
      %3449 = vst.msk [vmem:[%s176 + $0x58] sm:$0x1] %vm258, %v3440
      %3450 = vst.msk [vmem:[%s176 + $0x78] sm:$0x1] %vm258, %v3442
      %v3451 = vld [vmem:[%s161 + $0xe] sm:$0x1]
      %v3452 = vld [vmem:[%s161 + $0x26] sm:$0x1]
      %v3453 = vld [vmem:[%s161 + $0x3e] sm:$0x1]
      %v3454 = vld [vmem:[%s161 + $0x56] sm:$0x1]
      %3459 = vrot.lane.b32.xlu0 %v3451, 62
      %v3460 = vpop.permute.xlu0 %3459
      %3461 = vrot.lane.b32.xlu0 %v3452, 62
      %v3462 = vpop.permute.xlu0 %3461
      %3463 = vrot.lane.b32.xlu0 %v3453, 62
      %v3464 = vpop.permute.xlu0 %3463
      %3465 = vrot.lane.b32.xlu0 %v3454, 62
      %v3466 = vpop.permute.xlu0 %3465
      %3471 = vst.msk [vmem:[%s176 + $0x18] sm:$0x1] %vm283, %v3460
      %3472 = vst.msk [vmem:[%s176 + $0x38] sm:$0x1] %vm283, %v3462
      %3473 = vst.msk [vmem:[%s176 + $0x58] sm:$0x1] %vm283, %v3464
      %3474 = vst.msk [vmem:[%s176 + $0x78] sm:$0x1] %vm283, %v3466
      %v3475 = vld [vmem:[%s161 + $0xf] sm:$0x1]
      %v3476 = vld [vmem:[%s161 + $0x27] sm:$0x1]
      %v3477 = vld [vmem:[%s161 + $0x3f] sm:$0x1]
      %v3478 = vld [vmem:[%s161 + $0x57] sm:$0x1]
      %3483 = vrot.lane.b32.xlu0 %v3475, 78
      %v3484 = vpop.permute.xlu0 %3483
      %3485 = vrot.lane.b32.xlu0 %v3476, 78
      %v3486 = vpop.permute.xlu0 %3485
      %3487 = vrot.lane.b32.xlu0 %v3477, 78
      %v3488 = vpop.permute.xlu0 %3487
      %3489 = vrot.lane.b32.xlu0 %v3478, 78
      %v3490 = vpop.permute.xlu0 %3489
      %3495 = vst.msk [vmem:[%s176 + $0x18] sm:$0x1] %vm308, %v3484
      %3496 = vst.msk [vmem:[%s176 + $0x38] sm:$0x1] %vm308, %v3486
      %3497 = vst.msk [vmem:[%s176 + $0x58] sm:$0x1] %vm308, %v3488
      %3498 = vst.msk [vmem:[%s176 + $0x78] sm:$0x1] %vm308, %v3490
      %v3499 = vld [vmem:[%s161 + $0x10] sm:$0x1]
      %v3500 = vld [vmem:[%s161 + $0x28] sm:$0x1]
      %v3501 = vld [vmem:[%s161 + $0x40] sm:$0x1]
      %v3502 = vld [vmem:[%s161 + $0x58] sm:$0x1]
      %3507 = vrot.lane.b32.xlu0 %v3499, 94
      %v3508 = vpop.permute.xlu0 %3507
      %3509 = vrot.lane.b32.xlu0 %v3500, 94
      %v3510 = vpop.permute.xlu0 %3509
      %3511 = vrot.lane.b32.xlu0 %v3501, 94
      %v3512 = vpop.permute.xlu0 %3511
      %3513 = vrot.lane.b32.xlu0 %v3502, 94
      %v3514 = vpop.permute.xlu0 %3513
      %3519 = vst.msk [vmem:[%s176 + $0x18] sm:$0x1] %vm333, %v3508
      %3520 = vst.msk [vmem:[%s176 + $0x38] sm:$0x1] %vm333, %v3510
      %3521 = vst.msk [vmem:[%s176 + $0x58] sm:$0x1] %vm333, %v3512
      %3522 = vst.msk [vmem:[%s176 + $0x78] sm:$0x1] %vm333, %v3514
      %v3523 = vld [vmem:[%s161 + $0x11] sm:$0x1]
      %v3524 = vld [vmem:[%s161 + $0x29] sm:$0x1]
      %v3525 = vld [vmem:[%s161 + $0x41] sm:$0x1]
      %v3526 = vld [vmem:[%s161 + $0x59] sm:$0x1]
      %3531 = vrot.lane.b32.xlu0 %v3523, 110
      %v3532 = vpop.permute.xlu0 %3531
      %3533 = vrot.lane.b32.xlu0 %v3524, 110
      %v3534 = vpop.permute.xlu0 %3533
      %3535 = vrot.lane.b32.xlu0 %v3525, 110
      %v3536 = vpop.permute.xlu0 %3535
      %3537 = vrot.lane.b32.xlu0 %v3526, 110
      %v3538 = vpop.permute.xlu0 %3537
      %3543 = vst.msk [vmem:[%s176 + $0x18] sm:$0x1] %vm358, %v3532
      %3544 = vst.msk [vmem:[%s176 + $0x38] sm:$0x1] %vm358, %v3534
      %3545 = vst.msk [vmem:[%s176 + $0x58] sm:$0x1] %vm358, %v3536
      %3546 = vst.msk [vmem:[%s176 + $0x78] sm:$0x1] %vm358, %v3538
      %s3547 = smul.u32 4, %s18
      %s3548 = smul.u32 2, %s19
      %p3549 = scmp.lt.s32.totalorder %s17, 1
      %s3550 = scalar_select %p3549, %s17, 1
      %p3551 = scmp.lt.s32.totalorder %s3547, 3
      %s3552 = scalar_select %p3551, %s3547, 3
      %p3553 = scmp.lt.s32.totalorder %s3548, 1
      %s3554 = scalar_select %p3553, %s3548, 1
      %s3555 = smul.addr %s3552, 4
      %s3556 = sadd.s32 %s3554, %s3555
      %s3557 = smul.addr %s3550, 16
      %s3558 = sadd.s32 %s3556, %s3557
      %s3559 = smul.addr %s3558, 8
      %s3560 = scalar_lea.vmem %s1, %s3559
      // Predicated region
      $region25: #{tpu_custom_call.1} parent=23 // pred_check
        %p3561 = pneg %p81
      $region26: #{tpu_custom_call.1} parent=23 // pred_check_branch
        %3563 = sbr.rel (%p3561) target = $region28
      $region27: #{tpu_custom_call.1} parent=23 // pred_region
        %s3564 = smul.u32 4, %s18
        %s3565 = smul.u32 2, %s19
      $region28: #{tpu_custom_call.1} parent=23 // pred_fallthru
        _
    $region24: #{tpu_custom_call.1} parent=5 // pred_fallthru
      _
    %p3566 = scmp.le.s32.totalorder 2, %s7
    // Predicated region
    $region29: #{tpu_custom_call.1} parent=5 // pred_check
      %p3567 = pneg %p3566
    $region30: #{tpu_custom_call.1} parent=5 // pred_check_branch
      %3569 = sbr.rel (%p3567) target = $region32
    $region31: #{tpu_custom_call.1} parent=5 // pred_region
      %s3570 = ssub.s32 %s7, 2
      // Predicated region
      $region33: #{tpu_custom_call.1} parent=31 // pred_check
        %p3571 = pneg %p87
      $region34: #{tpu_custom_call.1} parent=31 // pred_check_branch
        %3573 = sbr.rel (%p3571) target = $region36
      $region35: #{tpu_custom_call.1} parent=31 // pred_region
        %s3574 = smul.u32 4, %s21
        %s3575 = smul.u32 2, %s22
        %p3576 = scmp.lt.s32.totalorder %s20, 1
        %s3577 = scalar_select %p3576, %s20, 1
        %p3578 = scmp.lt.s32.totalorder %s3574, 3
        %s3579 = scalar_select %p3578, %s3574, 3
        %p3580 = scmp.lt.s32.totalorder %s3575, 1
        %s3581 = scalar_select %p3580, %s3575, 1
        %s3582 = smul.addr %s3579, 4
        %s3583 = sadd.s32 %s3581, %s3582
        %s3584 = smul.addr %s3577, 16
        %s3585 = sadd.s32 %s3583, %s3584
        %s3586 = smul.addr %s3585, 8
        %s3587 = scalar_lea.vmem %s1, %s3586
      $region36: #{tpu_custom_call.1} parent=31 // pred_fallthru
        _
    $region32: #{tpu_custom_call.1} parent=5 // pred_fallthru
      _
  $region6: #{tpu_custom_call.1} parent=0 // loop_footer
    %s11 = sadd.s32 1, %s7
  $region7: #{tpu_custom_call.1} parent=0 // loop_footer_branch
    %6 = sbr.rel target = $region3
  $region8: #{tpu_custom_call.1} parent=0 // loop_exit
    _

</llo_original>
